<compile_context>
chip_gen: v6e
topology: v6e:2x2x1
jax: 0.10.0
libtpu: 0.0.40
codegen_flags: <defaults>
</compile_context>

<pallas_src>
import functools

import jax
import jax.numpy as jnp
from jax.experimental import pallas as pl
from jax.experimental.pallas import tpu as pltpu

BN_EPS = 1e-5
_TMP_LEAD = 128          # 128-aligned lead halo of the dj-shift scratch


# ----------------------------------------------------------------------------
# elementwise helpers (used both in-kernel and in the pure-JAX reference)
# ----------------------------------------------------------------------------
def _hardswish(x):
    return x * jnp.clip(x + 3.0, 0.0, 6.0) * (1.0 / 6.0)


def _hardsigmoid(x):
    return jnp.clip(x + 3.0, 0.0, 6.0) * (1.0 / 6.0)


# ----------------------------------------------------------------------------
# Pallas kernel: B_TILE images per grid step, everything resident in VMEM.
# Working layout per image: (C, H*W) — spatial on lanes, channels on sublanes.
# ----------------------------------------------------------------------------
def _mbconv_kernel(*refs, H, W, kh, kw, base, use_skip, has_expand, bias_off):
    if has_expand:
        (x_ref, exp_w_ref, dw_w_ref, se_w1_ref, se_w2_ref, pw_w_ref, b_ref,
         o_ref, ypad_ref, tmp_ref) = refs
    else:
        (x_ref, dw_w_ref, se_w1_ref, se_w2_ref, pw_w_ref, b_ref,
         o_ref, ypad_ref, tmp_ref) = refs
        exp_w_ref = None

    HW = H * W
    ph, pw_ = kh // 2, kw // 2
    B = x_ref.shape[0]
    Cmid = dw_w_ref.shape[0]
    Lpad = ypad_ref.shape[1]
    TPAD = tmp_ref.shape[2]

    # ---- hoisted weight / bias loads (VMEM -> vregs, once per grid step) ----
    def b_slice(name):
        off, size = bias_off[name]
        return b_ref[off:off + size, :]

    dw_w = dw_w_ref[...]                                  # (Cmid, kh*kw)
    dw_b = b_slice("dw_b")
    se_w1 = se_w1_ref[...]
    se_b1 = b_slice("se_b1")
    se_w2 = se_w2_ref[...]
    se_b2 = b_slice("se_b2")
    pw_w = pw_w_ref[...]
    pw_b = b_slice("pw_b")
    if has_expand:
        exp_w = exp_w_ref[...]
        exp_b = b_slice("exp_b")

    # ---- hoisted per-dj column-wrap masks (independent of the image) --------
    col = jax.lax.broadcasted_iota(jnp.int32, (1, HW), 1) % W
    valid_mask = {}
    for kj in range(kw):
        dj = kj - pw_
        if dj > 0:
            valid_mask[kj] = col < (W - dj)               # col + dj >= 0 is trivially true
        elif dj < 0:
            valid_mask[kj] = col >= (-dj)                 # col + dj < W is trivially true

    # ---- zero the scratch halos ONCE per grid step ---------------------------
    # (per-step, never gated on program_id: safe under megacore "parallel").
    tail = Lpad - base - HW
    if base > 0:
        ypad_ref[:, :base] = jnp.zeros((Cmid, base), jnp.float32)
    if tail > 0:
        ypad_ref[:, base + HW:] = jnp.zeros((Cmid, tail), jnp.float32)
    if kw > 1:
        t_tail = TPAD - _TMP_LEAD - HW
        tmp_ref[:, :, :_TMP_LEAD] = jnp.zeros(
            (tmp_ref.shape[0], Cmid, _TMP_LEAD), jnp.float32)
        if t_tail > 0:
            tmp_ref[:, :, _TMP_LEAD + HW:] = jnp.zeros(
                (tmp_ref.shape[0], Cmid, t_tail), jnp.float32)

    # ---- per-image pipeline (unrolled: amortizes per-grid-step overhead) -----
    for b in range(B):
        x2d = x_ref[b].astype(jnp.float32)                # (Cin, HW), lane-dense

        # expand: 1x1 conv (BN pre-folded) -> Hardswish
        if has_expand:
            y = jnp.dot(exp_w, x2d, preferred_element_type=jnp.float32)
            y = _hardswish(y + exp_b)
        else:
            y = x2d

        # depthwise KxK, stride 1, "same" padding.
        # Body written once (128-aligned, lane-dense) into the zero-haloed
        # scratch; kh row windows loaded once; per dj the weighted row-sum is
        # shifted via a 128-aligned store + one offset load, masked ONCE, then
        # accumulated.  Row out-of-range taps land in the zero halo for free.
        ypad_ref[:, base:base + HW] = y
        rowwins = [ypad_ref[:, base + (ki - ph) * W: base + (ki - ph) * W + HW]
                   for ki in range(kh)]                   # kh loads (Cmid, HW)

        acc = None
        for kj in range(kw):
            dj = kj - pw_
            s_kj = None                                   # sum_ki row[ki] * w[ki, kj]
            for ki in range(kh):
                tap = ki * kw + kj
                term = rowwins[ki] * dw_w[:, tap:tap + 1]
                s_kj = term if s_kj is None else s_kj + term
            if dj == 0:
                contrib = s_kj
            else:
                slot = kj if kj < pw_ else kj - 1         # 0 .. kw-2
                tmp_ref[slot, :, _TMP_LEAD:_TMP_LEAD + HW] = s_kj
                shifted = tmp_ref[slot, :, _TMP_LEAD + dj:_TMP_LEAD + dj + HW]
                contrib = jnp.where(valid_mask[kj], shifted, 0.0)
            acc = contrib if acc is None else acc + contrib
        z = _hardswish(acc + dw_b)                        # (Cmid, HW)

        # squeeze & excite (global avg pool)
        pooled = jnp.mean(z, axis=1, keepdims=True)       # (Cmid, 1) lane reduce
        s = jnp.dot(se_w1, pooled, preferred_element_type=jnp.float32)
        s = _hardswish(s + se_b1)                         # (Csq, 1)
        s = jnp.dot(se_w2, s, preferred_element_type=jnp.float32)
        s = _hardsigmoid(s + se_b2)                       # (Cmid, 1)
        z = z * s

        # pointwise 1x1 conv (BN pre-folded) + skip
        out = jnp.dot(pw_w, z, preferred_element_type=jnp.float32) + pw_b
        if use_skip:
            out = out + x2d
        o_ref[b] = out.astype(o_ref.dtype)                # lane-dense (Cout, HW)


# ----------------------------------------------------------------------------
# Host-side BatchNorm folding (inference).  BN rows = [gamma, beta, mean, var].
# ----------------------------------------------------------------------------
def fold_block_params(raw, eps=BN_EPS):
    def bn_fold(bn):
        gamma, beta, mean, var = bn
        scale = gamma * jax.lax.rsqrt(var + eps)
        return scale, beta - mean * scale

    folded = {}
    if "exp_w" in raw:
        s, b = bn_fold(raw["exp_bn"])
        folded["exp_w"] = raw["exp_w"] * s[:, None]       # (Cmid, Cin)
        folded["exp_b"] = b[:, None]                      # (Cmid, 1)
    s, b = bn_fold(raw["dw_bn"])
    folded["dw_w"] = raw["dw_w"] * s[:, None]             # (Cmid, kh*kw)
    folded["dw_b"] = b[:, None]                           # (Cmid, 1)
    folded["se_w1"] = raw["se_w1"]                        # (Csq, Cmid)
    folded["se_b1"] = raw["se_b1"][:, None]               # (Csq, 1)
    folded["se_w2"] = raw["se_w2"]                        # (Cmid, Csq)
    folded["se_b2"] = raw["se_b2"][:, None]               # (Cmid, 1)
    s, b = bn_fold(raw["pw_bn"])
    folded["pw_w"] = raw["pw_w"] * s[:, None]             # (Cout, Cmid)
    folded["pw_b"] = b[:, None]                           # (Cout, 1)
    return folded


def _vmem_capacity_bytes():
    try:
        info = pltpu.get_tpu_info()
        for attr in ("vmem_capacity_bytes", "vmem_bytes"):
            cap = getattr(info, attr, None)
            if cap:
                return int(cap)
    except Exception:
        pass
    return 64 * 1024 * 1024                               # conservative (v7x)


# ----------------------------------------------------------------------------
# Wrapper (NCHW in / NCHW out, matching the PyTorch module)
# ----------------------------------------------------------------------------
def mobilenet_block(x, raw_params, *, kernel_size=(3, 3), stride=(1, 1),
                    use_skipconn=True, bn_eps=BN_EPS):
    assert stride == (1, 1), "only stride 1 implemented"   # TODO(synk): general stride
    kh, kw = kernel_size
    assert kh % 2 == 1 and kw % 2 == 1, "only odd kernels implemented"

    N, Cin, H, W = x.shape
    HW = H * W
    has_expand = "exp_w" in raw_params
    p = fold_block_params(raw_params, bn_eps)
    Cmid = p["dw_w"].shape[0]
    Cout = p["pw_w"].shape[0]
    use_skip = bool(use_skipconn and stride == (1, 1) and Cin == Cout)

    # depthwise scratch geometry: row halo + 128-aligned body offset
    ph, pw_ = kh // 2, kw // 2
    halo = ph * W
    base = ((halo + 127) // 128) * 128 if halo > 0 else 0
    Lpad = base + HW + halo
    TPAD = _TMP_LEAD + HW + 128
    kwm1 = max(kw - 1, 1)

    # pack the small bias vectors into one array (8-row-aligned segments)
    bias_names = (["exp_b"] if has_expand else []) + ["dw_b", "se_b1", "se_b2", "pw_b"]
    parts, bias_off, rows = [], {}, 0
    for name in bias_names:
        arr = p[name]
        c = arr.shape[0]
        bias_off[name] = (rows, c)
        cpad = ((c + 7) // 8) * 8
        if cpad > c:
            arr = jnp.concatenate([arr, jnp.zeros((cpad - c, 1), arr.dtype)], axis=0)
        parts.append(arr)
        rows += cpad
    bias_pack = jnp.concatenate(parts, axis=0)            # (rows, 1)

    weight_arrays = ([p["exp_w"]] if has_expand else []) + [
        p["dw_w"], p["se_w1"], p["se_w2"], p["pw_w"], bias_pack]

    x_flat = x.reshape(N, Cin, HW)

    # ---- choose B_TILE and the VMEM limit from the actual working set --------
    vmem_cap = _vmem_capacity_bytes()
    weight_bytes = sum(int(w.size) * 4 for w in weight_arrays)

    def est(bt):
        io = 2 * bt * (Cin + Cout) * HW * 4               # double-buffered x/out blocks
        scratch = (Cmid * Lpad + kwm1 * Cmid * TPAD) * 4
        temps = (kh + 8) * Cmid * HW * 4                  # rowwins + y/acc/z live set
        return io + scratch + temps + 2 * weight_bytes

    budget = vmem_cap // 2
    b_tile = 1
    for cand in range(min(N, 8), 0, -1):
        if N % cand == 0 and est(cand) <= budget:
            b_tile = cand
            break
    vmem_limit = int(min(max(2 * est(b_tile), 32 * 1024 * 1024),
                         int(0.9 * vmem_cap)))

    kernel = functools.partial(_mbconv_kernel, H=H, W=W, kh=kh, kw=kw,
                               base=base, use_skip=use_skip,
                               has_expand=has_expand, bias_off=bias_off)

    in_specs = [pl.BlockSpec((b_tile, Cin, HW), lambda n: (n, 0, 0))]
    in_specs += [pl.BlockSpec(w.shape, (lambda n, _nd=w.ndim: (0,) * _nd))
                 for w in weight_arrays]

    out = pl.pallas_call(
        kernel,
        out_shape=jax.ShapeDtypeStruct((N, Cout, HW), x.dtype),
        grid=(N // b_tile,),
        in_specs=in_specs,
        out_specs=pl.BlockSpec((b_tile, Cout, HW), lambda n: (n, 0, 0)),
        scratch_shapes=[pltpu.VMEM((Cmid, Lpad), jnp.float32),
                        pltpu.VMEM((kwm1, Cmid, TPAD), jnp.float32)],
        compiler_params=pltpu.CompilerParams(
            dimension_semantics=("parallel",),
            vmem_limit_bytes=vmem_limit),
    )(x_flat, *weight_arrays)

    return out.reshape(N, Cout, H, W)


# ----------------------------------------------------------------------------
# Pure-JAX reference on the UNFOLDED params (validates the BN fold too)
# ----------------------------------------------------------------------------
def reference(x, raw, kernel_size, use_skipconn, eps=BN_EPS):
    kh, kw = kernel_size
    N, Cin, H, W = x.shape

    def bn_nchw(v, bn):
        gamma, beta, mean, var = bn
        scale = gamma * jax.lax.rsqrt(var + eps)
        return ((v - mean[None, :, None, None]) * scale[None, :, None, None]
                + beta[None, :, None, None])

    y = x
    if "exp_w" in raw:
        y = jnp.einsum("oc,nchw->nohw", raw["exp_w"], x)
        y = _hardswish(bn_nchw(y, raw["exp_bn"]))
    Cmid = y.shape[1]
    dwk = raw["dw_w"].reshape(Cmid, 1, kh, kw)
    z = jax.lax.conv_general_dilated(
        y, dwk, window_strides=(1, 1), padding="SAME",
        dimension_numbers=("NCHW", "OIHW", "NCHW"),
        feature_group_count=Cmid)
    z = _hardswish(bn_nchw(z, raw["dw_bn"]))
    pooled = z.mean(axis=(2, 3))                                   # (N, Cmid)
    s = _hardswish(pooled @ raw["se_w1"].T + raw["se_b1"][None, :])
    s = _hardsigmoid(s @ raw["se_w2"].T + raw["se_b2"][None, :])
    z = z * s[:, :, None, None]
    out = jnp.einsum("oc,nchw->nohw", raw["pw_w"], z)
    out = bn_nchw(out, raw["pw_bn"])
    if use_skipconn and out.shape[1] == Cin:
        out = out + x
    return out


if __name__ == "__main__":
    key = jax.random.PRNGKey(0)

    def bn_params(k, c):
        kk = jax.random.split(k, 4)
        gamma = 1.0 + 0.1 * jax.random.normal(kk[0], (c,), jnp.float32)
        beta = 0.1 * jax.random.normal(kk[1], (c,), jnp.float32)
        mean = 0.05 * jax.random.normal(kk[2], (c,), jnp.float32)
        var = 1.0 + 0.1 * jax.random.uniform(kk[3], (c,), jnp.float32)
        return jnp.stack([gamma, beta, mean, var]).astype(jnp.float32)

    def make_raw(k, cin, cout, expand_ratio, se_ratio, kh, kw):
        cmid = int(cin * expand_ratio)
        csq = max(1, int(cmid / (se_ratio * expand_ratio)))
        ks = jax.random.split(k, 10)

        def rnd(kk, shape, scale=0.3):
            return scale * jax.random.normal(kk, shape, jnp.float32)

        raw = {
            "dw_w": rnd(ks[0], (cmid, kh * kw)),
            "dw_bn": bn_params(ks[1], cmid),
            "se_w1": rnd(ks[2], (csq, cmid)),
            "se_b1": rnd(ks[3], (csq,), 0.1),
            "se_w2": rnd(ks[4], (cmid, csq)),
            "se_b2": rnd(ks[5], (cmid,), 0.1),
            "pw_w": rnd(ks[6], (cout, cmid)),
            "pw_bn": bn_params(ks[7], cout),
        }
        if expand_ratio != 1:
            raw["exp_w"] = rnd(ks[8], (cmid, cin))
            raw["exp_bn"] = bn_params(ks[9], cmid)
        return raw

    # (N, H, W, Cin, Cout, expand_ratio, se_ratio, k)
    configs = [
        (4, 16, 16, 8, 8, 2.0, 1.0, 3),     # expand block, 3x3, skip connection
        (2, 16, 16, 16, 16, 1.0, 1.0, 5),   # no-expand block, 5x5, skip connection
    ]
    for idx, (N, H, W, Cin, Cout, er, sr, k) in enumerate(configs):
        kx, kp = jax.random.split(jax.random.fold_in(key, idx))
        raw = make_raw(kp, Cin, Cout, er, sr, k, k)
        x = jax.random.normal(kx, (N, Cin, H, W), jnp.float32)

        out = mobilenet_block(x, raw, kernel_size=(k, k), stride=(1, 1),
                              use_skipconn=True)
        out = jax.block_until_ready(out)

        ref = reference(x, raw, (k, k), use_skipconn=True)
        assert out.shape == ref.shape == (N, Cout, H, W)
        max_err = float(jnp.max(jnp.abs(out - ref)))
        assert max_err < 1e-3, f"config {idx}: mismatch, max abs err = {max_err}"

    print("KERNEL_OK")
</pallas_src>

<mosaic_0001>
module attributes {stable_mosaic.version = 11 : i64} {
  func.func @_mbconv_kernel(%arg0: i32, %arg1: memref<4x8x256xf32, #tpu.memory_space<vmem>>, %arg2: memref<16x8xf32, #tpu.memory_space<vmem>>, %arg3: memref<16x9xf32, #tpu.memory_space<vmem>>, %arg4: memref<8x16xf32, #tpu.memory_space<vmem>>, %arg5: memref<16x8xf32, #tpu.memory_space<vmem>>, %arg6: memref<8x16xf32, #tpu.memory_space<vmem>>, %arg7: memref<64x1xf32, #tpu.memory_space<vmem>>, %arg8: memref<4x8x256xf32, #tpu.memory_space<vmem>>, %arg9: memref<16x400xf32, #tpu.memory_space<vmem>>, %arg10: memref<2x16x512xf32, #tpu.memory_space<vmem>>) attributes {dimension_semantics = [#tpu.dimension_semantics<parallel>], iteration_bounds = array<i64: 1>, scalar_prefetch = 0 : i64, scratch_operands = 2 : i64, tpu.core_type = #tpu.core_type<tc>, window_params = [{transform_indices = @transform_0, window_bounds = array<i64: 4, 8, 256>}, {pipeline_mode = #tpu.pipeline_mode<synchronous>, transform_indices = @transform_1, window_bounds = array<i64: 16, 8>}, {pipeline_mode = #tpu.pipeline_mode<synchronous>, transform_indices = @transform_2, window_bounds = array<i64: 16, 9>}, {pipeline_mode = #tpu.pipeline_mode<synchronous>, transform_indices = @transform_3, window_bounds = array<i64: 8, 16>}, {pipeline_mode = #tpu.pipeline_mode<synchronous>, transform_indices = @transform_4, window_bounds = array<i64: 16, 8>}, {pipeline_mode = #tpu.pipeline_mode<synchronous>, transform_indices = @transform_5, window_bounds = array<i64: 8, 16>}, {pipeline_mode = #tpu.pipeline_mode<synchronous>, transform_indices = @transform_6, window_bounds = array<i64: 64, 1>}, {transform_indices = @transform_7, window_bounds = array<i64: 4, 8, 256>}]} {
    %c0 = arith.constant 0 : index
    %c0_0 = arith.constant 0 : index
    %0 = vector.load %arg3[%c0, %c0_0] : memref<16x9xf32, #tpu.memory_space<vmem>>, vector<16x9xf32>
    %c16 = arith.constant 16 : index
    %c0_1 = arith.constant 0 : index
    %1 = vector.load %arg7[%c16, %c0_1] : memref<64x1xf32, #tpu.memory_space<vmem>>, vector<16x1xf32>
    %c0_2 = arith.constant 0 : index
    %c0_3 = arith.constant 0 : index
    %2 = vector.load %arg4[%c0_2, %c0_3] : memref<8x16xf32, #tpu.memory_space<vmem>>, vector<8x16xf32>
    %c32 = arith.constant 32 : index
    %c0_4 = arith.constant 0 : index
    %3 = vector.load %arg7[%c32, %c0_4] : memref<64x1xf32, #tpu.memory_space<vmem>>, vector<8x1xf32>
    %c0_5 = arith.constant 0 : index
    %c0_6 = arith.constant 0 : index
    %4 = vector.load %arg5[%c0_5, %c0_6] : memref<16x8xf32, #tpu.memory_space<vmem>>, vector<16x8xf32>
    %c40 = arith.constant 40 : index
    %c0_7 = arith.constant 0 : index
    %5 = vector.load %arg7[%c40, %c0_7] : memref<64x1xf32, #tpu.memory_space<vmem>>, vector<16x1xf32>
    %c0_8 = arith.constant 0 : index
    %c0_9 = arith.constant 0 : index
    %6 = vector.load %arg6[%c0_8, %c0_9] : memref<8x16xf32, #tpu.memory_space<vmem>>, vector<8x16xf32>
    %c56 = arith.constant 56 : index
    %c0_10 = arith.constant 0 : index
    %7 = vector.load %arg7[%c56, %c0_10] : memref<64x1xf32, #tpu.memory_space<vmem>>, vector<8x1xf32>
    %c0_11 = arith.constant 0 : index
    %c0_12 = arith.constant 0 : index
    %8 = vector.load %arg2[%c0_11, %c0_12] : memref<16x8xf32, #tpu.memory_space<vmem>>, vector<16x8xf32>
    %c0_13 = arith.constant 0 : index
    %c0_14 = arith.constant 0 : index
    %9 = vector.load %arg7[%c0_13, %c0_14] : memref<64x1xf32, #tpu.memory_space<vmem>>, vector<16x1xf32>
    %10 = tpu.iota {dimensions = array<i32: 1>} : vector<1x256xi32>
    %c16_i32 = arith.constant 16 : i32
    %c0_i32 = arith.constant 0 : i32
    %11 = arith.cmpi eq, %c16_i32, %c0_i32 : i32
    %c1_i32 = arith.constant 1 : i32
    %12 = arith.select %11, %c1_i32, %c16_i32 : i32
    %13 = vector.broadcast %12 : i32 to vector<1x256xi32>
    %14 = arith.remsi %10, %13 : vector<1x256xi32>
    %c0_i32_15 = arith.constant 0 : i32
    %15 = vector.broadcast %c0_i32_15 : i32 to vector<1x256xi32>
    %16 = arith.cmpi ne, %14, %15 : vector<1x256xi32>
    %c0_i32_16 = arith.constant 0 : i32
    %17 = vector.broadcast %c0_i32_16 : i32 to vector<1x256xi32>
    %18 = arith.cmpi slt, %14, %17 : vector<1x256xi32>
    %c0_i32_17 = arith.constant 0 : i32
    %19 = arith.cmpi slt, %12, %c0_i32_17 : i32
    %20 = vector.broadcast %19 : i1 to vector<1x256xi1>
    %21 = vector.broadcast %20 : vector<1x256xi1> to vector<1x256xi1>
    %22 = arith.xori %18, %21 : vector<1x256xi1>
    %23 = arith.andi %22, %16 : vector<1x256xi1>
    %24 = vector.broadcast %12 : i32 to vector<1x256xi32>
    %25 = arith.addi %14, %24 : vector<1x256xi32>
    %26 = arith.select %23, %25, %14 : vector<1x256xi1>, vector<1x256xi32>
    %c1_i32_18 = arith.constant 1 : i32
    %27 = vector.broadcast %c1_i32_18 : i32 to vector<1x256xi32>
    %28 = arith.cmpi sge, %26, %27 : vector<1x256xi32>
    %c15_i32 = arith.constant 15 : i32
    %29 = vector.broadcast %c15_i32 : i32 to vector<1x256xi32>
    %30 = arith.cmpi slt, %26, %29 : vector<1x256xi32>
    %cst = arith.constant 0.000000e+00 : f32
    %31 = vector.broadcast %cst : f32 to vector<16x128xf32>
    %c0_19 = arith.constant 0 : index
    %c0_20 = arith.constant 0 : index
    %32 = vector.load %arg9[%c0_19, %c0_20] : memref<16x400xf32, #tpu.memory_space<vmem>>, vector<16x128xf32>
    tpu.vector_store %arg9[%c0_19, %c0_20], %31 {strides = array<i32>} : memref<16x400xf32, #tpu.memory_space<vmem>>, vector<16x128xf32>,
    %cst_21 = arith.constant 0.000000e+00 : f32
    %33 = vector.broadcast %cst_21 : f32 to vector<16x16xf32>
    %c0_22 = arith.constant 0 : index
    %c384 = arith.constant 384 : index
    %34 = vector.load %arg9[%c0_22, %c384] : memref<16x400xf32, #tpu.memory_space<vmem>>, vector<16x16xf32>
    tpu.vector_store %arg9[%c0_22, %c384], %33 {strides = array<i32>} : memref<16x400xf32, #tpu.memory_space<vmem>>, vector<16x16xf32>,
    %cst_23 = arith.constant 0.000000e+00 : f32
    %35 = vector.broadcast %cst_23 : f32 to vector<2x16x128xf32>
    %c0_24 = arith.constant 0 : index
    %c0_25 = arith.constant 0 : index
    %c0_26 = arith.constant 0 : index
    %36 = vector.load %arg10[%c0_24, %c0_25, %c0_26] : memref<2x16x512xf32, #tpu.memory_space<vmem>>, vector<2x16x128xf32>
    tpu.vector_store %arg10[%c0_24, %c0_25, %c0_26], %35 {strides = array<i32>} : memref<2x16x512xf32, #tpu.memory_space<vmem>>, vector<2x16x128xf32>,
    %cst_27 = arith.constant 0.000000e+00 : f32
    %37 = vector.broadcast %cst_27 : f32 to vector<2x16x128xf32>
    %c0_28 = arith.constant 0 : index
    %c0_29 = arith.constant 0 : index
    %c384_30 = arith.constant 384 : index
    %38 = vector.load %arg10[%c0_28, %c0_29, %c384_30] : memref<2x16x512xf32, #tpu.memory_space<vmem>>, vector<2x16x128xf32>
    tpu.vector_store %arg10[%c0_28, %c0_29, %c384_30], %37 {strides = array<i32>} : memref<2x16x512xf32, #tpu.memory_space<vmem>>, vector<2x16x128xf32>,
    %c0_31 = arith.constant 0 : index
    %c0_32 = arith.constant 0 : index
    %c0_33 = arith.constant 0 : index
    %39 = vector.load %arg1[%c0_31, %c0_32, %c0_33] : memref<4x8x256xf32, #tpu.memory_space<vmem>>, vector<1x8x256xf32>
    %40 = vector.shape_cast %39 : vector<1x8x256xf32> to vector<8x256xf32>
    %cst_34 = arith.constant dense<0.000000e+00> : vector<16x256xf32>
    %41 = tpu.matmul %8, %40, %cst_34 {dimension_numbers = #tpu.dot_dimension_numbers<[1], [0], [0], [1], [0, 0, 1, 1], [], []>} : vector<16x8xf32>, vector<8x256xf32>, vector<16x256xf32> -> vector<16x256xf32>
    %42 = vector.broadcast %9 : vector<16x1xf32> to vector<16x256xf32>
    %43 = arith.addf %41, %42 : vector<16x256xf32>
    %cst_35 = arith.constant 3.000000e+00 : f32
    %44 = vector.broadcast %cst_35 : f32 to vector<16x256xf32>
    %45 = arith.addf %43, %44 : vector<16x256xf32>
    %cst_36 = arith.constant 0.000000e+00 : f32
    %cst_37 = arith.constant 6.000000e+00 : f32
    %46 = vector.broadcast %cst_36 : f32 to vector<16x256xf32>
    %47 = arith.maximumf %46, %45 : vector<16x256xf32>
    %48 = vector.broadcast %cst_37 : f32 to vector<16x256xf32>
    %49 = arith.minimumf %48, %47 : vector<16x256xf32>
    %50 = arith.mulf %43, %49 : vector<16x256xf32>
    %cst_38 = arith.constant 0.166666672 : f32
    %51 = vector.broadcast %cst_38 : f32 to vector<16x256xf32>
    %52 = arith.mulf %50, %51 : vector<16x256xf32>
    %c0_39 = arith.constant 0 : index
    %c128 = arith.constant 128 : index
    %53 = vector.load %arg9[%c0_39, %c128] : memref<16x400xf32, #tpu.memory_space<vmem>>, vector<16x256xf32>
    tpu.vector_store %arg9[%c0_39, %c128], %52 {strides = array<i32>} : memref<16x400xf32, #tpu.memory_space<vmem>>, vector<16x256xf32>,
    %c0_40 = arith.constant 0 : index
    %c112 = arith.constant 112 : index
    %54 = vector.load %arg9[%c0_40, %c112] : memref<16x400xf32, #tpu.memory_space<vmem>>, vector<16x256xf32>
    %c0_41 = arith.constant 0 : index
    %c128_42 = arith.constant 128 : index
    %55 = vector.load %arg9[%c0_41, %c128_42] : memref<16x400xf32, #tpu.memory_space<vmem>>, vector<16x256xf32>
    %c0_43 = arith.constant 0 : index
    %c144 = arith.constant 144 : index
    %56 = vector.load %arg9[%c0_43, %c144] : memref<16x400xf32, #tpu.memory_space<vmem>>, vector<16x256xf32>
    %57 = vector.extract_strided_slice %0 {offsets = [0, 0], sizes = [16, 1], strides = [1, 1]} : vector<16x9xf32> to vector<16x1xf32>
    %58 = vector.broadcast %57 : vector<16x1xf32> to vector<16x256xf32>
    %59 = arith.mulf %54, %58 : vector<16x256xf32>
    %60 = vector.extract_strided_slice %0 {offsets = [0, 3], sizes = [16, 1], strides = [1, 1]} : vector<16x9xf32> to vector<16x1xf32>
    %61 = vector.broadcast %60 : vector<16x1xf32> to vector<16x256xf32>
    %62 = arith.mulf %55, %61 : vector<16x256xf32>
    %63 = arith.addf %59, %62 : vector<16x256xf32>
    %64 = vector.extract_strided_slice %0 {offsets = [0, 6], sizes = [16, 1], strides = [1, 1]} : vector<16x9xf32> to vector<16x1xf32>
    %65 = vector.broadcast %64 : vector<16x1xf32> to vector<16x256xf32>
    %66 = arith.mulf %56, %65 : vector<16x256xf32>
    %67 = arith.addf %63, %66 : vector<16x256xf32>
    %c0_44 = arith.constant 0 : index
    %c0_45 = arith.constant 0 : index
    %c128_46 = arith.constant 128 : index
    %68 = vector.load %arg10[%c0_44, %c0_45, %c128_46] : memref<2x16x512xf32, #tpu.memory_space<vmem>>, vector<1x16x256xf32>
    %69 = vector.shape_cast %68 : vector<1x16x256xf32> to vector<16x256xf32>
    %70 = vector.shape_cast %67 : vector<16x256xf32> to vector<1x16x256xf32>
    tpu.vector_store %arg10[%c0_44, %c0_45, %c128_46], %70 {strides = array<i32>} : memref<2x16x512xf32, #tpu.memory_space<vmem>>, vector<1x16x256xf32>,
    %c0_47 = arith.constant 0 : index
    %c0_48 = arith.constant 0 : index
    %c127 = arith.constant 127 : index
    %71 = vector.load %arg10[%c0_47, %c0_48, %c127] : memref<2x16x512xf32, #tpu.memory_space<vmem>>, vector<1x16x256xf32>
    %72 = vector.shape_cast %71 : vector<1x16x256xf32> to vector<16x256xf32>
    %cst_49 = arith.constant 0.000000e+00 : f32
    %73 = vector.shape_cast %28 : vector<1x256xi1> to vector<1x256xi1>
    %74 = vector.broadcast %73 : vector<1x256xi1> to vector<16x256xi1>
    %75 = vector.broadcast %cst_49 : f32 to vector<16x256xf32>
    %76 = arith.select %74, %72, %75 : vector<16x256xi1>, vector<16x256xf32>
    %77 = vector.extract_strided_slice %0 {offsets = [0, 1], sizes = [16, 1], strides = [1, 1]} : vector<16x9xf32> to vector<16x1xf32>
    %78 = vector.broadcast %77 : vector<16x1xf32> to vector<16x256xf32>
    %79 = arith.mulf %54, %78 : vector<16x256xf32>
    %80 = vector.extract_strided_slice %0 {offsets = [0, 4], sizes = [16, 1], strides = [1, 1]} : vector<16x9xf32> to vector<16x1xf32>
    %81 = vector.broadcast %80 : vector<16x1xf32> to vector<16x256xf32>
    %82 = arith.mulf %55, %81 : vector<16x256xf32>
    %83 = arith.addf %79, %82 : vector<16x256xf32>
    %84 = vector.extract_strided_slice %0 {offsets = [0, 7], sizes = [16, 1], strides = [1, 1]} : vector<16x9xf32> to vector<16x1xf32>
    %85 = vector.broadcast %84 : vector<16x1xf32> to vector<16x256xf32>
    %86 = arith.mulf %56, %85 : vector<16x256xf32>
    %87 = arith.addf %83, %86 : vector<16x256xf32>
    %88 = arith.addf %76, %87 : vector<16x256xf32>
    %89 = vector.extract_strided_slice %0 {offsets = [0, 2], sizes = [16, 1], strides = [1, 1]} : vector<16x9xf32> to vector<16x1xf32>
    %90 = vector.broadcast %89 : vector<16x1xf32> to vector<16x256xf32>
    %91 = arith.mulf %54, %90 : vector<16x256xf32>
    %92 = vector.extract_strided_slice %0 {offsets = [0, 5], sizes = [16, 1], strides = [1, 1]} : vector<16x9xf32> to vector<16x1xf32>
    %93 = vector.broadcast %92 : vector<16x1xf32> to vector<16x256xf32>
    %94 = arith.mulf %55, %93 : vector<16x256xf32>
    %95 = arith.addf %91, %94 : vector<16x256xf32>
    %96 = vector.extract_strided_slice %0 {offsets = [0, 8], sizes = [16, 1], strides = [1, 1]} : vector<16x9xf32> to vector<16x1xf32>
    %97 = vector.broadcast %96 : vector<16x1xf32> to vector<16x256xf32>
    %98 = arith.mulf %56, %97 : vector<16x256xf32>
    %99 = arith.addf %95, %98 : vector<16x256xf32>
    %c1 = arith.constant 1 : index
    %c0_50 = arith.constant 0 : index
    %c128_51 = arith.constant 128 : index
    %100 = vector.load %arg10[%c1, %c0_50, %c128_51] : memref<2x16x512xf32, #tpu.memory_space<vmem>>, vector<1x16x256xf32>
    %101 = vector.shape_cast %100 : vector<1x16x256xf32> to vector<16x256xf32>
    %102 = vector.shape_cast %99 : vector<16x256xf32> to vector<1x16x256xf32>
    tpu.vector_store %arg10[%c1, %c0_50, %c128_51], %102 {strides = array<i32>} : memref<2x16x512xf32, #tpu.memory_space<vmem>>, vector<1x16x256xf32>,
    %c1_52 = arith.constant 1 : index
    %c0_53 = arith.constant 0 : index
    %c129 = arith.constant 129 : index
    %103 = vector.load %arg10[%c1_52, %c0_53, %c129] : memref<2x16x512xf32, #tpu.memory_space<vmem>>, vector<1x16x256xf32>
    %104 = vector.shape_cast %103 : vector<1x16x256xf32> to vector<16x256xf32>
    %cst_54 = arith.constant 0.000000e+00 : f32
    %105 = vector.shape_cast %30 : vector<1x256xi1> to vector<1x256xi1>
    %106 = vector.broadcast %105 : vector<1x256xi1> to vector<16x256xi1>
    %107 = vector.broadcast %cst_54 : f32 to vector<16x256xf32>
    %108 = arith.select %106, %104, %107 : vector<16x256xi1>, vector<16x256xf32>
    %109 = arith.addf %88, %108 : vector<16x256xf32>
    %110 = vector.broadcast %1 : vector<16x1xf32> to vector<16x256xf32>
    %111 = arith.addf %109, %110 : vector<16x256xf32>
    %cst_55 = arith.constant 3.000000e+00 : f32
    %112 = vector.broadcast %cst_55 : f32 to vector<16x256xf32>
    %113 = arith.addf %111, %112 : vector<16x256xf32>
    %cst_56 = arith.constant 0.000000e+00 : f32
    %cst_57 = arith.constant 6.000000e+00 : f32
    %114 = vector.broadcast %cst_56 : f32 to vector<16x256xf32>
    %115 = arith.maximumf %114, %113 : vector<16x256xf32>
    %116 = vector.broadcast %cst_57 : f32 to vector<16x256xf32>
    %117 = arith.minimumf %116, %115 : vector<16x256xf32>
    %118 = arith.mulf %111, %117 : vector<16x256xf32>
    %cst_58 = arith.constant 0.166666672 : f32
    %119 = vector.broadcast %cst_58 : f32 to vector<16x256xf32>
    %120 = arith.mulf %118, %119 : vector<16x256xf32>
    %cst_59 = arith.constant dense<0.000000e+00> : vector<16xf32>
    %121 = vector.multi_reduction <add>, %120, %cst_59 [1] : vector<16x256xf32> to vector<16xf32>
    %122 = vector.shape_cast %121 : vector<16xf32> to vector<16x1xf32>
    %cst_60 = arith.constant 2.560000e+02 : f32
    %123 = vector.broadcast %cst_60 : f32 to vector<16x1xf32>
    %124 = arith.divf %122, %123 : vector<16x1xf32>
    %cst_61 = arith.constant dense<0.000000e+00> : vector<8x1xf32>
    %125 = tpu.matmul %2, %124, %cst_61 {dimension_numbers = #tpu.dot_dimension_numbers<[1], [0], [0], [1], [0, 0, 1, 1], [], []>} : vector<8x16xf32>, vector<16x1xf32>, vector<8x1xf32> -> vector<8x1xf32>
    %126 = arith.addf %125, %3 : vector<8x1xf32>
    %cst_62 = arith.constant 3.000000e+00 : f32
    %127 = vector.broadcast %cst_62 : f32 to vector<8x1xf32>
    %128 = arith.addf %126, %127 : vector<8x1xf32>
    %cst_63 = arith.constant 0.000000e+00 : f32
    %cst_64 = arith.constant 6.000000e+00 : f32
    %129 = vector.broadcast %cst_63 : f32 to vector<8x1xf32>
    %130 = arith.maximumf %129, %128 : vector<8x1xf32>
    %131 = vector.broadcast %cst_64 : f32 to vector<8x1xf32>
    %132 = arith.minimumf %131, %130 : vector<8x1xf32>
    %133 = arith.mulf %126, %132 : vector<8x1xf32>
    %cst_65 = arith.constant 0.166666672 : f32
    %134 = vector.broadcast %cst_65 : f32 to vector<8x1xf32>
    %135 = arith.mulf %133, %134 : vector<8x1xf32>
    %cst_66 = arith.constant dense<0.000000e+00> : vector<16x1xf32>
    %136 = tpu.matmul %4, %135, %cst_66 {dimension_numbers = #tpu.dot_dimension_numbers<[1], [0], [0], [1], [0, 0, 1, 1], [], []>} : vector<16x8xf32>, vector<8x1xf32>, vector<16x1xf32> -> vector<16x1xf32>
    %137 = arith.addf %136, %5 : vector<16x1xf32>
    %cst_67 = arith.constant 3.000000e+00 : f32
    %138 = vector.broadcast %cst_67 : f32 to vector<16x1xf32>
    %139 = arith.addf %137, %138 : vector<16x1xf32>
    %cst_68 = arith.constant 0.000000e+00 : f32
    %cst_69 = arith.constant 6.000000e+00 : f32
    %140 = vector.broadcast %cst_68 : f32 to vector<16x1xf32>
    %141 = arith.maximumf %140, %139 : vector<16x1xf32>
    %142 = vector.broadcast %cst_69 : f32 to vector<16x1xf32>
    %143 = arith.minimumf %142, %141 : vector<16x1xf32>
    %cst_70 = arith.constant 0.166666672 : f32
    %144 = vector.broadcast %cst_70 : f32 to vector<16x1xf32>
    %145 = arith.mulf %143, %144 : vector<16x1xf32>
    %146 = vector.broadcast %145 : vector<16x1xf32> to vector<16x256xf32>
    %147 = arith.mulf %120, %146 : vector<16x256xf32>
    %cst_71 = arith.constant dense<0.000000e+00> : vector<8x256xf32>
    %148 = tpu.matmul %6, %147, %cst_71 {dimension_numbers = #tpu.dot_dimension_numbers<[1], [0], [0], [1], [0, 0, 1, 1], [], []>} : vector<8x16xf32>, vector<16x256xf32>, vector<8x256xf32> -> vector<8x256xf32>
    %149 = vector.broadcast %7 : vector<8x1xf32> to vector<8x256xf32>
    %150 = arith.addf %148, %149 : vector<8x256xf32>
    %151 = arith.addf %150, %40 : vector<8x256xf32>
    %c0_72 = arith.constant 0 : index
    %c0_73 = arith.constant 0 : index
    %c0_74 = arith.constant 0 : index
    %152 = vector.load %arg8[%c0_72, %c0_73, %c0_74] : memref<4x8x256xf32, #tpu.memory_space<vmem>>, vector<1x8x256xf32>
    %153 = vector.shape_cast %152 : vector<1x8x256xf32> to vector<8x256xf32>
    %154 = vector.shape_cast %151 : vector<8x256xf32> to vector<1x8x256xf32>
    tpu.vector_store %arg8[%c0_72, %c0_73, %c0_74], %154 {strides = array<i32>} : memref<4x8x256xf32, #tpu.memory_space<vmem>>, vector<1x8x256xf32>,
    %c1_75 = arith.constant 1 : index
    %c0_76 = arith.constant 0 : index
    %c0_77 = arith.constant 0 : index
    %155 = vector.load %arg1[%c1_75, %c0_76, %c0_77] : memref<4x8x256xf32, #tpu.memory_space<vmem>>, vector<1x8x256xf32>
    %156 = vector.shape_cast %155 : vector<1x8x256xf32> to vector<8x256xf32>
    %cst_78 = arith.constant dense<0.000000e+00> : vector<16x256xf32>
    %157 = tpu.matmul %8, %156, %cst_78 {dimension_numbers = #tpu.dot_dimension_numbers<[1], [0], [0], [1], [0, 0, 1, 1], [], []>} : vector<16x8xf32>, vector<8x256xf32>, vector<16x256xf32> -> vector<16x256xf32>
    %158 = vector.broadcast %9 : vector<16x1xf32> to vector<16x256xf32>
    %159 = arith.addf %157, %158 : vector<16x256xf32>
    %cst_79 = arith.constant 3.000000e+00 : f32
    %160 = vector.broadcast %cst_79 : f32 to vector<16x256xf32>
    %161 = arith.addf %159, %160 : vector<16x256xf32>
    %cst_80 = arith.constant 0.000000e+00 : f32
    %cst_81 = arith.constant 6.000000e+00 : f32
    %162 = vector.broadcast %cst_80 : f32 to vector<16x256xf32>
    %163 = arith.maximumf %162, %161 : vector<16x256xf32>
    %164 = vector.broadcast %cst_81 : f32 to vector<16x256xf32>
    %165 = arith.minimumf %164, %163 : vector<16x256xf32>
    %166 = arith.mulf %159, %165 : vector<16x256xf32>
    %cst_82 = arith.constant 0.166666672 : f32
    %167 = vector.broadcast %cst_82 : f32 to vector<16x256xf32>
    %168 = arith.mulf %166, %167 : vector<16x256xf32>
    %c0_83 = arith.constant 0 : index
    %c128_84 = arith.constant 128 : index
    %169 = vector.load %arg9[%c0_83, %c128_84] : memref<16x400xf32, #tpu.memory_space<vmem>>, vector<16x256xf32>
    tpu.vector_store %arg9[%c0_83, %c128_84], %168 {strides = array<i32>} : memref<16x400xf32, #tpu.memory_space<vmem>>, vector<16x256xf32>,
    %c0_85 = arith.constant 0 : index
    %c112_86 = arith.constant 112 : index
    %170 = vector.load %arg9[%c0_85, %c112_86] : memref<16x400xf32, #tpu.memory_space<vmem>>, vector<16x256xf32>
    %c0_87 = arith.constant 0 : index
    %c128_88 = arith.constant 128 : index
    %171 = vector.load %arg9[%c0_87, %c128_88] : memref<16x400xf32, #tpu.memory_space<vmem>>, vector<16x256xf32>
    %c0_89 = arith.constant 0 : index
    %c144_90 = arith.constant 144 : index
    %172 = vector.load %arg9[%c0_89, %c144_90] : memref<16x400xf32, #tpu.memory_space<vmem>>, vector<16x256xf32>
    %173 = vector.extract_strided_slice %0 {offsets = [0, 0], sizes = [16, 1], strides = [1, 1]} : vector<16x9xf32> to vector<16x1xf32>
    %174 = vector.broadcast %173 : vector<16x1xf32> to vector<16x256xf32>
    %175 = arith.mulf %170, %174 : vector<16x256xf32>
    %176 = vector.extract_strided_slice %0 {offsets = [0, 3], sizes = [16, 1], strides = [1, 1]} : vector<16x9xf32> to vector<16x1xf32>
    %177 = vector.broadcast %176 : vector<16x1xf32> to vector<16x256xf32>
    %178 = arith.mulf %171, %177 : vector<16x256xf32>
    %179 = arith.addf %175, %178 : vector<16x256xf32>
    %180 = vector.extract_strided_slice %0 {offsets = [0, 6], sizes = [16, 1], strides = [1, 1]} : vector<16x9xf32> to vector<16x1xf32>
    %181 = vector.broadcast %180 : vector<16x1xf32> to vector<16x256xf32>
    %182 = arith.mulf %172, %181 : vector<16x256xf32>
    %183 = arith.addf %179, %182 : vector<16x256xf32>
    %c0_91 = arith.constant 0 : index
    %c0_92 = arith.constant 0 : index
    %c128_93 = arith.constant 128 : index
    %184 = vector.load %arg10[%c0_91, %c0_92, %c128_93] : memref<2x16x512xf32, #tpu.memory_space<vmem>>, vector<1x16x256xf32>
    %185 = vector.shape_cast %184 : vector<1x16x256xf32> to vector<16x256xf32>
    %186 = vector.shape_cast %183 : vector<16x256xf32> to vector<1x16x256xf32>
    tpu.vector_store %arg10[%c0_91, %c0_92, %c128_93], %186 {strides = array<i32>} : memref<2x16x512xf32, #tpu.memory_space<vmem>>, vector<1x16x256xf32>,
    %c0_94 = arith.constant 0 : index
    %c0_95 = arith.constant 0 : index
    %c127_96 = arith.constant 127 : index
    %187 = vector.load %arg10[%c0_94, %c0_95, %c127_96] : memref<2x16x512xf32, #tpu.memory_space<vmem>>, vector<1x16x256xf32>
    %188 = vector.shape_cast %187 : vector<1x16x256xf32> to vector<16x256xf32>
    %cst_97 = arith.constant 0.000000e+00 : f32
    %189 = vector.shape_cast %28 : vector<1x256xi1> to vector<1x256xi1>
    %190 = vector.broadcast %189 : vector<1x256xi1> to vector<16x256xi1>
    %191 = vector.broadcast %cst_97 : f32 to vector<16x256xf32>
    %192 = arith.select %190, %188, %191 : vector<16x256xi1>, vector<16x256xf32>
    %193 = vector.extract_strided_slice %0 {offsets = [0, 1], sizes = [16, 1], strides = [1, 1]} : vector<16x9xf32> to vector<16x1xf32>
    %194 = vector.broadcast %193 : vector<16x1xf32> to vector<16x256xf32>
    %195 = arith.mulf %170, %194 : vector<16x256xf32>
    %196 = vector.extract_strided_slice %0 {offsets = [0, 4], sizes = [16, 1], strides = [1, 1]} : vector<16x9xf32> to vector<16x1xf32>
    %197 = vector.broadcast %196 : vector<16x1xf32> to vector<16x256xf32>
    %198 = arith.mulf %171, %197 : vector<16x256xf32>
    %199 = arith.addf %195, %198 : vector<16x256xf32>
    %200 = vector.extract_strided_slice %0 {offsets = [0, 7], sizes = [16, 1], strides = [1, 1]} : vector<16x9xf32> to vector<16x1xf32>
    %201 = vector.broadcast %200 : vector<16x1xf32> to vector<16x256xf32>
    %202 = arith.mulf %172, %201 : vector<16x256xf32>
    %203 = arith.addf %199, %202 : vector<16x256xf32>
    %204 = arith.addf %192, %203 : vector<16x256xf32>
    %205 = vector.extract_strided_slice %0 {offsets = [0, 2], sizes = [16, 1], strides = [1, 1]} : vector<16x9xf32> to vector<16x1xf32>
    %206 = vector.broadcast %205 : vector<16x1xf32> to vector<16x256xf32>
    %207 = arith.mulf %170, %206 : vector<16x256xf32>
    %208 = vector.extract_strided_slice %0 {offsets = [0, 5], sizes = [16, 1], strides = [1, 1]} : vector<16x9xf32> to vector<16x1xf32>
    %209 = vector.broadcast %208 : vector<16x1xf32> to vector<16x256xf32>
    %210 = arith.mulf %171, %209 : vector<16x256xf32>
    %211 = arith.addf %207, %210 : vector<16x256xf32>
    %212 = vector.extract_strided_slice %0 {offsets = [0, 8], sizes = [16, 1], strides = [1, 1]} : vector<16x9xf32> to vector<16x1xf32>
    %213 = vector.broadcast %212 : vector<16x1xf32> to vector<16x256xf32>
    %214 = arith.mulf %172, %213 : vector<16x256xf32>
    %215 = arith.addf %211, %214 : vector<16x256xf32>
    %c1_98 = arith.constant 1 : index
    %c0_99 = arith.constant 0 : index
    %c128_100 = arith.constant 128 : index
    %216 = vector.load %arg10[%c1_98, %c0_99, %c128_100] : memref<2x16x512xf32, #tpu.memory_space<vmem>>, vector<1x16x256xf32>
    %217 = vector.shape_cast %216 : vector<1x16x256xf32> to vector<16x256xf32>
    %218 = vector.shape_cast %215 : vector<16x256xf32> to vector<1x16x256xf32>
    tpu.vector_store %arg10[%c1_98, %c0_99, %c128_100], %218 {strides = array<i32>} : memref<2x16x512xf32, #tpu.memory_space<vmem>>, vector<1x16x256xf32>,
    %c1_101 = arith.constant 1 : index
    %c0_102 = arith.constant 0 : index
    %c129_103 = arith.constant 129 : index
    %219 = vector.load %arg10[%c1_101, %c0_102, %c129_103] : memref<2x16x512xf32, #tpu.memory_space<vmem>>, vector<1x16x256xf32>
    %220 = vector.shape_cast %219 : vector<1x16x256xf32> to vector<16x256xf32>
    %cst_104 = arith.constant 0.000000e+00 : f32
    %221 = vector.shape_cast %30 : vector<1x256xi1> to vector<1x256xi1>
    %222 = vector.broadcast %221 : vector<1x256xi1> to vector<16x256xi1>
    %223 = vector.broadcast %cst_104 : f32 to vector<16x256xf32>
    %224 = arith.select %222, %220, %223 : vector<16x256xi1>, vector<16x256xf32>
    %225 = arith.addf %204, %224 : vector<16x256xf32>
    %226 = vector.broadcast %1 : vector<16x1xf32> to vector<16x256xf32>
    %227 = arith.addf %225, %226 : vector<16x256xf32>
    %cst_105 = arith.constant 3.000000e+00 : f32
    %228 = vector.broadcast %cst_105 : f32 to vector<16x256xf32>
    %229 = arith.addf %227, %228 : vector<16x256xf32>
    %cst_106 = arith.constant 0.000000e+00 : f32
    %cst_107 = arith.constant 6.000000e+00 : f32
    %230 = vector.broadcast %cst_106 : f32 to vector<16x256xf32>
    %231 = arith.maximumf %230, %229 : vector<16x256xf32>
    %232 = vector.broadcast %cst_107 : f32 to vector<16x256xf32>
    %233 = arith.minimumf %232, %231 : vector<16x256xf32>
    %234 = arith.mulf %227, %233 : vector<16x256xf32>
    %cst_108 = arith.constant 0.166666672 : f32
    %235 = vector.broadcast %cst_108 : f32 to vector<16x256xf32>
    %236 = arith.mulf %234, %235 : vector<16x256xf32>
    %cst_109 = arith.constant dense<0.000000e+00> : vector<16xf32>
    %237 = vector.multi_reduction <add>, %236, %cst_109 [1] : vector<16x256xf32> to vector<16xf32>
    %238 = vector.shape_cast %237 : vector<16xf32> to vector<16x1xf32>
    %cst_110 = arith.constant 2.560000e+02 : f32
    %239 = vector.broadcast %cst_110 : f32 to vector<16x1xf32>
    %240 = arith.divf %238, %239 : vector<16x1xf32>
    %cst_111 = arith.constant dense<0.000000e+00> : vector<8x1xf32>
    %241 = tpu.matmul %2, %240, %cst_111 {dimension_numbers = #tpu.dot_dimension_numbers<[1], [0], [0], [1], [0, 0, 1, 1], [], []>} : vector<8x16xf32>, vector<16x1xf32>, vector<8x1xf32> -> vector<8x1xf32>
    %242 = arith.addf %241, %3 : vector<8x1xf32>
    %cst_112 = arith.constant 3.000000e+00 : f32
    %243 = vector.broadcast %cst_112 : f32 to vector<8x1xf32>
    %244 = arith.addf %242, %243 : vector<8x1xf32>
    %cst_113 = arith.constant 0.000000e+00 : f32
    %cst_114 = arith.constant 6.000000e+00 : f32
    %245 = vector.broadcast %cst_113 : f32 to vector<8x1xf32>
    %246 = arith.maximumf %245, %244 : vector<8x1xf32>
    %247 = vector.broadcast %cst_114 : f32 to vector<8x1xf32>
    %248 = arith.minimumf %247, %246 : vector<8x1xf32>
    %249 = arith.mulf %242, %248 : vector<8x1xf32>
    %cst_115 = arith.constant 0.166666672 : f32
    %250 = vector.broadcast %cst_115 : f32 to vector<8x1xf32>
    %251 = arith.mulf %249, %250 : vector<8x1xf32>
    %cst_116 = arith.constant dense<0.000000e+00> : vector<16x1xf32>
    %252 = tpu.matmul %4, %251, %cst_116 {dimension_numbers = #tpu.dot_dimension_numbers<[1], [0], [0], [1], [0, 0, 1, 1], [], []>} : vector<16x8xf32>, vector<8x1xf32>, vector<16x1xf32> -> vector<16x1xf32>
    %253 = arith.addf %252, %5 : vector<16x1xf32>
    %cst_117 = arith.constant 3.000000e+00 : f32
    %254 = vector.broadcast %cst_117 : f32 to vector<16x1xf32>
    %255 = arith.addf %253, %254 : vector<16x1xf32>
    %cst_118 = arith.constant 0.000000e+00 : f32
    %cst_119 = arith.constant 6.000000e+00 : f32
    %256 = vector.broadcast %cst_118 : f32 to vector<16x1xf32>
    %257 = arith.maximumf %256, %255 : vector<16x1xf32>
    %258 = vector.broadcast %cst_119 : f32 to vector<16x1xf32>
    %259 = arith.minimumf %258, %257 : vector<16x1xf32>
    %cst_120 = arith.constant 0.166666672 : f32
    %260 = vector.broadcast %cst_120 : f32 to vector<16x1xf32>
    %261 = arith.mulf %259, %260 : vector<16x1xf32>
    %262 = vector.broadcast %261 : vector<16x1xf32> to vector<16x256xf32>
    %263 = arith.mulf %236, %262 : vector<16x256xf32>
    %cst_121 = arith.constant dense<0.000000e+00> : vector<8x256xf32>
    %264 = tpu.matmul %6, %263, %cst_121 {dimension_numbers = #tpu.dot_dimension_numbers<[1], [0], [0], [1], [0, 0, 1, 1], [], []>} : vector<8x16xf32>, vector<16x256xf32>, vector<8x256xf32> -> vector<8x256xf32>
    %265 = vector.broadcast %7 : vector<8x1xf32> to vector<8x256xf32>
    %266 = arith.addf %264, %265 : vector<8x256xf32>
    %267 = arith.addf %266, %156 : vector<8x256xf32>
    %c1_122 = arith.constant 1 : index
    %c0_123 = arith.constant 0 : index
    %c0_124 = arith.constant 0 : index
    %268 = vector.load %arg8[%c1_122, %c0_123, %c0_124] : memref<4x8x256xf32, #tpu.memory_space<vmem>>, vector<1x8x256xf32>
    %269 = vector.shape_cast %268 : vector<1x8x256xf32> to vector<8x256xf32>
    %270 = vector.shape_cast %267 : vector<8x256xf32> to vector<1x8x256xf32>
    tpu.vector_store %arg8[%c1_122, %c0_123, %c0_124], %270 {strides = array<i32>} : memref<4x8x256xf32, #tpu.memory_space<vmem>>, vector<1x8x256xf32>,
    %c2 = arith.constant 2 : index
    %c0_125 = arith.constant 0 : index
    %c0_126 = arith.constant 0 : index
    %271 = vector.load %arg1[%c2, %c0_125, %c0_126] : memref<4x8x256xf32, #tpu.memory_space<vmem>>, vector<1x8x256xf32>
    %272 = vector.shape_cast %271 : vector<1x8x256xf32> to vector<8x256xf32>
    %cst_127 = arith.constant dense<0.000000e+00> : vector<16x256xf32>
    %273 = tpu.matmul %8, %272, %cst_127 {dimension_numbers = #tpu.dot_dimension_numbers<[1], [0], [0], [1], [0, 0, 1, 1], [], []>} : vector<16x8xf32>, vector<8x256xf32>, vector<16x256xf32> -> vector<16x256xf32>
    %274 = vector.broadcast %9 : vector<16x1xf32> to vector<16x256xf32>
    %275 = arith.addf %273, %274 : vector<16x256xf32>
    %cst_128 = arith.constant 3.000000e+00 : f32
    %276 = vector.broadcast %cst_128 : f32 to vector<16x256xf32>
    %277 = arith.addf %275, %276 : vector<16x256xf32>
    %cst_129 = arith.constant 0.000000e+00 : f32
    %cst_130 = arith.constant 6.000000e+00 : f32
    %278 = vector.broadcast %cst_129 : f32 to vector<16x256xf32>
    %279 = arith.maximumf %278, %277 : vector<16x256xf32>
    %280 = vector.broadcast %cst_130 : f32 to vector<16x256xf32>
    %281 = arith.minimumf %280, %279 : vector<16x256xf32>
    %282 = arith.mulf %275, %281 : vector<16x256xf32>
    %cst_131 = arith.constant 0.166666672 : f32
    %283 = vector.broadcast %cst_131 : f32 to vector<16x256xf32>
    %284 = arith.mulf %282, %283 : vector<16x256xf32>
    %c0_132 = arith.constant 0 : index
    %c128_133 = arith.constant 128 : index
    %285 = vector.load %arg9[%c0_132, %c128_133] : memref<16x400xf32, #tpu.memory_space<vmem>>, vector<16x256xf32>
    tpu.vector_store %arg9[%c0_132, %c128_133], %284 {strides = array<i32>} : memref<16x400xf32, #tpu.memory_space<vmem>>, vector<16x256xf32>,
    %c0_134 = arith.constant 0 : index
    %c112_135 = arith.constant 112 : index
    %286 = vector.load %arg9[%c0_134, %c112_135] : memref<16x400xf32, #tpu.memory_space<vmem>>, vector<16x256xf32>
    %c0_136 = arith.constant 0 : index
    %c128_137 = arith.constant 128 : index
    %287 = vector.load %arg9[%c0_136, %c128_137] : memref<16x400xf32, #tpu.memory_space<vmem>>, vector<16x256xf32>
    %c0_138 = arith.constant 0 : index
    %c144_139 = arith.constant 144 : index
    %288 = vector.load %arg9[%c0_138, %c144_139] : memref<16x400xf32, #tpu.memory_space<vmem>>, vector<16x256xf32>
    %289 = vector.extract_strided_slice %0 {offsets = [0, 0], sizes = [16, 1], strides = [1, 1]} : vector<16x9xf32> to vector<16x1xf32>
    %290 = vector.broadcast %289 : vector<16x1xf32> to vector<16x256xf32>
    %291 = arith.mulf %286, %290 : vector<16x256xf32>
    %292 = vector.extract_strided_slice %0 {offsets = [0, 3], sizes = [16, 1], strides = [1, 1]} : vector<16x9xf32> to vector<16x1xf32>
    %293 = vector.broadcast %292 : vector<16x1xf32> to vector<16x256xf32>
    %294 = arith.mulf %287, %293 : vector<16x256xf32>
    %295 = arith.addf %291, %294 : vector<16x256xf32>
    %296 = vector.extract_strided_slice %0 {offsets = [0, 6], sizes = [16, 1], strides = [1, 1]} : vector<16x9xf32> to vector<16x1xf32>
    %297 = vector.broadcast %296 : vector<16x1xf32> to vector<16x256xf32>
    %298 = arith.mulf %288, %297 : vector<16x256xf32>
    %299 = arith.addf %295, %298 : vector<16x256xf32>
    %c0_140 = arith.constant 0 : index
    %c0_141 = arith.constant 0 : index
    %c128_142 = arith.constant 128 : index
    %300 = vector.load %arg10[%c0_140, %c0_141, %c128_142] : memref<2x16x512xf32, #tpu.memory_space<vmem>>, vector<1x16x256xf32>
    %301 = vector.shape_cast %300 : vector<1x16x256xf32> to vector<16x256xf32>
    %302 = vector.shape_cast %299 : vector<16x256xf32> to vector<1x16x256xf32>
    tpu.vector_store %arg10[%c0_140, %c0_141, %c128_142], %302 {strides = array<i32>} : memref<2x16x512xf32, #tpu.memory_space<vmem>>, vector<1x16x256xf32>,
    %c0_143 = arith.constant 0 : index
    %c0_144 = arith.constant 0 : index
    %c127_145 = arith.constant 127 : index
    %303 = vector.load %arg10[%c0_143, %c0_144, %c127_145] : memref<2x16x512xf32, #tpu.memory_space<vmem>>, vector<1x16x256xf32>
    %304 = vector.shape_cast %303 : vector<1x16x256xf32> to vector<16x256xf32>
    %cst_146 = arith.constant 0.000000e+00 : f32
    %305 = vector.shape_cast %28 : vector<1x256xi1> to vector<1x256xi1>
    %306 = vector.broadcast %305 : vector<1x256xi1> to vector<16x256xi1>
    %307 = vector.broadcast %cst_146 : f32 to vector<16x256xf32>
    %308 = arith.select %306, %304, %307 : vector<16x256xi1>, vector<16x256xf32>
    %309 = vector.extract_strided_slice %0 {offsets = [0, 1], sizes = [16, 1], strides = [1, 1]} : vector<16x9xf32> to vector<16x1xf32>
    %310 = vector.broadcast %309 : vector<16x1xf32> to vector<16x256xf32>
    %311 = arith.mulf %286, %310 : vector<16x256xf32>
    %312 = vector.extract_strided_slice %0 {offsets = [0, 4], sizes = [16, 1], strides = [1, 1]} : vector<16x9xf32> to vector<16x1xf32>
    %313 = vector.broadcast %312 : vector<16x1xf32> to vector<16x256xf32>
    %314 = arith.mulf %287, %313 : vector<16x256xf32>
    %315 = arith.addf %311, %314 : vector<16x256xf32>
    %316 = vector.extract_strided_slice %0 {offsets = [0, 7], sizes = [16, 1], strides = [1, 1]} : vector<16x9xf32> to vector<16x1xf32>
    %317 = vector.broadcast %316 : vector<16x1xf32> to vector<16x256xf32>
    %318 = arith.mulf %288, %317 : vector<16x256xf32>
    %319 = arith.addf %315, %318 : vector<16x256xf32>
    %320 = arith.addf %308, %319 : vector<16x256xf32>
    %321 = vector.extract_strided_slice %0 {offsets = [0, 2], sizes = [16, 1], strides = [1, 1]} : vector<16x9xf32> to vector<16x1xf32>
    %322 = vector.broadcast %321 : vector<16x1xf32> to vector<16x256xf32>
    %323 = arith.mulf %286, %322 : vector<16x256xf32>
    %324 = vector.extract_strided_slice %0 {offsets = [0, 5], sizes = [16, 1], strides = [1, 1]} : vector<16x9xf32> to vector<16x1xf32>
    %325 = vector.broadcast %324 : vector<16x1xf32> to vector<16x256xf32>
    %326 = arith.mulf %287, %325 : vector<16x256xf32>
    %327 = arith.addf %323, %326 : vector<16x256xf32>
    %328 = vector.extract_strided_slice %0 {offsets = [0, 8], sizes = [16, 1], strides = [1, 1]} : vector<16x9xf32> to vector<16x1xf32>
    %329 = vector.broadcast %328 : vector<16x1xf32> to vector<16x256xf32>
    %330 = arith.mulf %288, %329 : vector<16x256xf32>
    %331 = arith.addf %327, %330 : vector<16x256xf32>
    %c1_147 = arith.constant 1 : index
    %c0_148 = arith.constant 0 : index
    %c128_149 = arith.constant 128 : index
    %332 = vector.load %arg10[%c1_147, %c0_148, %c128_149] : memref<2x16x512xf32, #tpu.memory_space<vmem>>, vector<1x16x256xf32>
    %333 = vector.shape_cast %332 : vector<1x16x256xf32> to vector<16x256xf32>
    %334 = vector.shape_cast %331 : vector<16x256xf32> to vector<1x16x256xf32>
    tpu.vector_store %arg10[%c1_147, %c0_148, %c128_149], %334 {strides = array<i32>} : memref<2x16x512xf32, #tpu.memory_space<vmem>>, vector<1x16x256xf32>,
    %c1_150 = arith.constant 1 : index
    %c0_151 = arith.constant 0 : index
    %c129_152 = arith.constant 129 : index
    %335 = vector.load %arg10[%c1_150, %c0_151, %c129_152] : memref<2x16x512xf32, #tpu.memory_space<vmem>>, vector<1x16x256xf32>
    %336 = vector.shape_cast %335 : vector<1x16x256xf32> to vector<16x256xf32>
    %cst_153 = arith.constant 0.000000e+00 : f32
    %337 = vector.shape_cast %30 : vector<1x256xi1> to vector<1x256xi1>
    %338 = vector.broadcast %337 : vector<1x256xi1> to vector<16x256xi1>
    %339 = vector.broadcast %cst_153 : f32 to vector<16x256xf32>
    %340 = arith.select %338, %336, %339 : vector<16x256xi1>, vector<16x256xf32>
    %341 = arith.addf %320, %340 : vector<16x256xf32>
    %342 = vector.broadcast %1 : vector<16x1xf32> to vector<16x256xf32>
    %343 = arith.addf %341, %342 : vector<16x256xf32>
    %cst_154 = arith.constant 3.000000e+00 : f32
    %344 = vector.broadcast %cst_154 : f32 to vector<16x256xf32>
    %345 = arith.addf %343, %344 : vector<16x256xf32>
    %cst_155 = arith.constant 0.000000e+00 : f32
    %cst_156 = arith.constant 6.000000e+00 : f32
    %346 = vector.broadcast %cst_155 : f32 to vector<16x256xf32>
    %347 = arith.maximumf %346, %345 : vector<16x256xf32>
    %348 = vector.broadcast %cst_156 : f32 to vector<16x256xf32>
    %349 = arith.minimumf %348, %347 : vector<16x256xf32>
    %350 = arith.mulf %343, %349 : vector<16x256xf32>
    %cst_157 = arith.constant 0.166666672 : f32
    %351 = vector.broadcast %cst_157 : f32 to vector<16x256xf32>
    %352 = arith.mulf %350, %351 : vector<16x256xf32>
    %cst_158 = arith.constant dense<0.000000e+00> : vector<16xf32>
    %353 = vector.multi_reduction <add>, %352, %cst_158 [1] : vector<16x256xf32> to vector<16xf32>
    %354 = vector.shape_cast %353 : vector<16xf32> to vector<16x1xf32>
    %cst_159 = arith.constant 2.560000e+02 : f32
    %355 = vector.broadcast %cst_159 : f32 to vector<16x1xf32>
    %356 = arith.divf %354, %355 : vector<16x1xf32>
    %cst_160 = arith.constant dense<0.000000e+00> : vector<8x1xf32>
    %357 = tpu.matmul %2, %356, %cst_160 {dimension_numbers = #tpu.dot_dimension_numbers<[1], [0], [0], [1], [0, 0, 1, 1], [], []>} : vector<8x16xf32>, vector<16x1xf32>, vector<8x1xf32> -> vector<8x1xf32>
    %358 = arith.addf %357, %3 : vector<8x1xf32>
    %cst_161 = arith.constant 3.000000e+00 : f32
    %359 = vector.broadcast %cst_161 : f32 to vector<8x1xf32>
    %360 = arith.addf %358, %359 : vector<8x1xf32>
    %cst_162 = arith.constant 0.000000e+00 : f32
    %cst_163 = arith.constant 6.000000e+00 : f32
    %361 = vector.broadcast %cst_162 : f32 to vector<8x1xf32>
    %362 = arith.maximumf %361, %360 : vector<8x1xf32>
    %363 = vector.broadcast %cst_163 : f32 to vector<8x1xf32>
    %364 = arith.minimumf %363, %362 : vector<8x1xf32>
    %365 = arith.mulf %358, %364 : vector<8x1xf32>
    %cst_164 = arith.constant 0.166666672 : f32
    %366 = vector.broadcast %cst_164 : f32 to vector<8x1xf32>
    %367 = arith.mulf %365, %366 : vector<8x1xf32>
    %cst_165 = arith.constant dense<0.000000e+00> : vector<16x1xf32>
    %368 = tpu.matmul %4, %367, %cst_165 {dimension_numbers = #tpu.dot_dimension_numbers<[1], [0], [0], [1], [0, 0, 1, 1], [], []>} : vector<16x8xf32>, vector<8x1xf32>, vector<16x1xf32> -> vector<16x1xf32>
    %369 = arith.addf %368, %5 : vector<16x1xf32>
    %cst_166 = arith.constant 3.000000e+00 : f32
    %370 = vector.broadcast %cst_166 : f32 to vector<16x1xf32>
    %371 = arith.addf %369, %370 : vector<16x1xf32>
    %cst_167 = arith.constant 0.000000e+00 : f32
    %cst_168 = arith.constant 6.000000e+00 : f32
    %372 = vector.broadcast %cst_167 : f32 to vector<16x1xf32>
    %373 = arith.maximumf %372, %371 : vector<16x1xf32>
    %374 = vector.broadcast %cst_168 : f32 to vector<16x1xf32>
    %375 = arith.minimumf %374, %373 : vector<16x1xf32>
    %cst_169 = arith.constant 0.166666672 : f32
    %376 = vector.broadcast %cst_169 : f32 to vector<16x1xf32>
    %377 = arith.mulf %375, %376 : vector<16x1xf32>
    %378 = vector.broadcast %377 : vector<16x1xf32> to vector<16x256xf32>
    %379 = arith.mulf %352, %378 : vector<16x256xf32>
    %cst_170 = arith.constant dense<0.000000e+00> : vector<8x256xf32>
    %380 = tpu.matmul %6, %379, %cst_170 {dimension_numbers = #tpu.dot_dimension_numbers<[1], [0], [0], [1], [0, 0, 1, 1], [], []>} : vector<8x16xf32>, vector<16x256xf32>, vector<8x256xf32> -> vector<8x256xf32>
    %381 = vector.broadcast %7 : vector<8x1xf32> to vector<8x256xf32>
    %382 = arith.addf %380, %381 : vector<8x256xf32>
    %383 = arith.addf %382, %272 : vector<8x256xf32>
    %c2_171 = arith.constant 2 : index
    %c0_172 = arith.constant 0 : index
    %c0_173 = arith.constant 0 : index
    %384 = vector.load %arg8[%c2_171, %c0_172, %c0_173] : memref<4x8x256xf32, #tpu.memory_space<vmem>>, vector<1x8x256xf32>
    %385 = vector.shape_cast %384 : vector<1x8x256xf32> to vector<8x256xf32>
    %386 = vector.shape_cast %383 : vector<8x256xf32> to vector<1x8x256xf32>
    tpu.vector_store %arg8[%c2_171, %c0_172, %c0_173], %386 {strides = array<i32>} : memref<4x8x256xf32, #tpu.memory_space<vmem>>, vector<1x8x256xf32>,
    %c3 = arith.constant 3 : index
    %c0_174 = arith.constant 0 : index
    %c0_175 = arith.constant 0 : index
    %387 = vector.load %arg1[%c3, %c0_174, %c0_175] : memref<4x8x256xf32, #tpu.memory_space<vmem>>, vector<1x8x256xf32>
    %388 = vector.shape_cast %387 : vector<1x8x256xf32> to vector<8x256xf32>
    %cst_176 = arith.constant dense<0.000000e+00> : vector<16x256xf32>
    %389 = tpu.matmul %8, %388, %cst_176 {dimension_numbers = #tpu.dot_dimension_numbers<[1], [0], [0], [1], [0, 0, 1, 1], [], []>} : vector<16x8xf32>, vector<8x256xf32>, vector<16x256xf32> -> vector<16x256xf32>
    %390 = vector.broadcast %9 : vector<16x1xf32> to vector<16x256xf32>
    %391 = arith.addf %389, %390 : vector<16x256xf32>
    %cst_177 = arith.constant 3.000000e+00 : f32
    %392 = vector.broadcast %cst_177 : f32 to vector<16x256xf32>
    %393 = arith.addf %391, %392 : vector<16x256xf32>
    %cst_178 = arith.constant 0.000000e+00 : f32
    %cst_179 = arith.constant 6.000000e+00 : f32
    %394 = vector.broadcast %cst_178 : f32 to vector<16x256xf32>
    %395 = arith.maximumf %394, %393 : vector<16x256xf32>
    %396 = vector.broadcast %cst_179 : f32 to vector<16x256xf32>
    %397 = arith.minimumf %396, %395 : vector<16x256xf32>
    %398 = arith.mulf %391, %397 : vector<16x256xf32>
    %cst_180 = arith.constant 0.166666672 : f32
    %399 = vector.broadcast %cst_180 : f32 to vector<16x256xf32>
    %400 = arith.mulf %398, %399 : vector<16x256xf32>
    %c0_181 = arith.constant 0 : index
    %c128_182 = arith.constant 128 : index
    %401 = vector.load %arg9[%c0_181, %c128_182] : memref<16x400xf32, #tpu.memory_space<vmem>>, vector<16x256xf32>
    tpu.vector_store %arg9[%c0_181, %c128_182], %400 {strides = array<i32>} : memref<16x400xf32, #tpu.memory_space<vmem>>, vector<16x256xf32>,
    %c0_183 = arith.constant 0 : index
    %c112_184 = arith.constant 112 : index
    %402 = vector.load %arg9[%c0_183, %c112_184] : memref<16x400xf32, #tpu.memory_space<vmem>>, vector<16x256xf32>
    %c0_185 = arith.constant 0 : index
    %c128_186 = arith.constant 128 : index
    %403 = vector.load %arg9[%c0_185, %c128_186] : memref<16x400xf32, #tpu.memory_space<vmem>>, vector<16x256xf32>
    %c0_187 = arith.constant 0 : index
    %c144_188 = arith.constant 144 : index
    %404 = vector.load %arg9[%c0_187, %c144_188] : memref<16x400xf32, #tpu.memory_space<vmem>>, vector<16x256xf32>
    %405 = vector.extract_strided_slice %0 {offsets = [0, 0], sizes = [16, 1], strides = [1, 1]} : vector<16x9xf32> to vector<16x1xf32>
    %406 = vector.broadcast %405 : vector<16x1xf32> to vector<16x256xf32>
    %407 = arith.mulf %402, %406 : vector<16x256xf32>
    %408 = vector.extract_strided_slice %0 {offsets = [0, 3], sizes = [16, 1], strides = [1, 1]} : vector<16x9xf32> to vector<16x1xf32>
    %409 = vector.broadcast %408 : vector<16x1xf32> to vector<16x256xf32>
    %410 = arith.mulf %403, %409 : vector<16x256xf32>
    %411 = arith.addf %407, %410 : vector<16x256xf32>
    %412 = vector.extract_strided_slice %0 {offsets = [0, 6], sizes = [16, 1], strides = [1, 1]} : vector<16x9xf32> to vector<16x1xf32>
    %413 = vector.broadcast %412 : vector<16x1xf32> to vector<16x256xf32>
    %414 = arith.mulf %404, %413 : vector<16x256xf32>
    %415 = arith.addf %411, %414 : vector<16x256xf32>
    %c0_189 = arith.constant 0 : index
    %c0_190 = arith.constant 0 : index
    %c128_191 = arith.constant 128 : index
    %416 = vector.load %arg10[%c0_189, %c0_190, %c128_191] : memref<2x16x512xf32, #tpu.memory_space<vmem>>, vector<1x16x256xf32>
    %417 = vector.shape_cast %416 : vector<1x16x256xf32> to vector<16x256xf32>
    %418 = vector.shape_cast %415 : vector<16x256xf32> to vector<1x16x256xf32>
    tpu.vector_store %arg10[%c0_189, %c0_190, %c128_191], %418 {strides = array<i32>} : memref<2x16x512xf32, #tpu.memory_space<vmem>>, vector<1x16x256xf32>,
    %c0_192 = arith.constant 0 : index
    %c0_193 = arith.constant 0 : index
    %c127_194 = arith.constant 127 : index
    %419 = vector.load %arg10[%c0_192, %c0_193, %c127_194] : memref<2x16x512xf32, #tpu.memory_space<vmem>>, vector<1x16x256xf32>
    %420 = vector.shape_cast %419 : vector<1x16x256xf32> to vector<16x256xf32>
    %cst_195 = arith.constant 0.000000e+00 : f32
    %421 = vector.shape_cast %28 : vector<1x256xi1> to vector<1x256xi1>
    %422 = vector.broadcast %421 : vector<1x256xi1> to vector<16x256xi1>
    %423 = vector.broadcast %cst_195 : f32 to vector<16x256xf32>
    %424 = arith.select %422, %420, %423 : vector<16x256xi1>, vector<16x256xf32>
    %425 = vector.extract_strided_slice %0 {offsets = [0, 1], sizes = [16, 1], strides = [1, 1]} : vector<16x9xf32> to vector<16x1xf32>
    %426 = vector.broadcast %425 : vector<16x1xf32> to vector<16x256xf32>
    %427 = arith.mulf %402, %426 : vector<16x256xf32>
    %428 = vector.extract_strided_slice %0 {offsets = [0, 4], sizes = [16, 1], strides = [1, 1]} : vector<16x9xf32> to vector<16x1xf32>
    %429 = vector.broadcast %428 : vector<16x1xf32> to vector<16x256xf32>
    %430 = arith.mulf %403, %429 : vector<16x256xf32>
    %431 = arith.addf %427, %430 : vector<16x256xf32>
    %432 = vector.extract_strided_slice %0 {offsets = [0, 7], sizes = [16, 1], strides = [1, 1]} : vector<16x9xf32> to vector<16x1xf32>
    %433 = vector.broadcast %432 : vector<16x1xf32> to vector<16x256xf32>
    %434 = arith.mulf %404, %433 : vector<16x256xf32>
    %435 = arith.addf %431, %434 : vector<16x256xf32>
    %436 = arith.addf %424, %435 : vector<16x256xf32>
    %437 = vector.extract_strided_slice %0 {offsets = [0, 2], sizes = [16, 1], strides = [1, 1]} : vector<16x9xf32> to vector<16x1xf32>
    %438 = vector.broadcast %437 : vector<16x1xf32> to vector<16x256xf32>
    %439 = arith.mulf %402, %438 : vector<16x256xf32>
    %440 = vector.extract_strided_slice %0 {offsets = [0, 5], sizes = [16, 1], strides = [1, 1]} : vector<16x9xf32> to vector<16x1xf32>
    %441 = vector.broadcast %440 : vector<16x1xf32> to vector<16x256xf32>
    %442 = arith.mulf %403, %441 : vector<16x256xf32>
    %443 = arith.addf %439, %442 : vector<16x256xf32>
    %444 = vector.extract_strided_slice %0 {offsets = [0, 8], sizes = [16, 1], strides = [1, 1]} : vector<16x9xf32> to vector<16x1xf32>
    %445 = vector.broadcast %444 : vector<16x1xf32> to vector<16x256xf32>
    %446 = arith.mulf %404, %445 : vector<16x256xf32>
    %447 = arith.addf %443, %446 : vector<16x256xf32>
    %c1_196 = arith.constant 1 : index
    %c0_197 = arith.constant 0 : index
    %c128_198 = arith.constant 128 : index
    %448 = vector.load %arg10[%c1_196, %c0_197, %c128_198] : memref<2x16x512xf32, #tpu.memory_space<vmem>>, vector<1x16x256xf32>
    %449 = vector.shape_cast %448 : vector<1x16x256xf32> to vector<16x256xf32>
    %450 = vector.shape_cast %447 : vector<16x256xf32> to vector<1x16x256xf32>
    tpu.vector_store %arg10[%c1_196, %c0_197, %c128_198], %450 {strides = array<i32>} : memref<2x16x512xf32, #tpu.memory_space<vmem>>, vector<1x16x256xf32>,
    %c1_199 = arith.constant 1 : index
    %c0_200 = arith.constant 0 : index
    %c129_201 = arith.constant 129 : index
    %451 = vector.load %arg10[%c1_199, %c0_200, %c129_201] : memref<2x16x512xf32, #tpu.memory_space<vmem>>, vector<1x16x256xf32>
    %452 = vector.shape_cast %451 : vector<1x16x256xf32> to vector<16x256xf32>
    %cst_202 = arith.constant 0.000000e+00 : f32
    %453 = vector.shape_cast %30 : vector<1x256xi1> to vector<1x256xi1>
    %454 = vector.broadcast %453 : vector<1x256xi1> to vector<16x256xi1>
    %455 = vector.broadcast %cst_202 : f32 to vector<16x256xf32>
    %456 = arith.select %454, %452, %455 : vector<16x256xi1>, vector<16x256xf32>
    %457 = arith.addf %436, %456 : vector<16x256xf32>
    %458 = vector.broadcast %1 : vector<16x1xf32> to vector<16x256xf32>
    %459 = arith.addf %457, %458 : vector<16x256xf32>
    %cst_203 = arith.constant 3.000000e+00 : f32
    %460 = vector.broadcast %cst_203 : f32 to vector<16x256xf32>
    %461 = arith.addf %459, %460 : vector<16x256xf32>
    %cst_204 = arith.constant 0.000000e+00 : f32
    %cst_205 = arith.constant 6.000000e+00 : f32
    %462 = vector.broadcast %cst_204 : f32 to vector<16x256xf32>
    %463 = arith.maximumf %462, %461 : vector<16x256xf32>
    %464 = vector.broadcast %cst_205 : f32 to vector<16x256xf32>
    %465 = arith.minimumf %464, %463 : vector<16x256xf32>
    %466 = arith.mulf %459, %465 : vector<16x256xf32>
    %cst_206 = arith.constant 0.166666672 : f32
    %467 = vector.broadcast %cst_206 : f32 to vector<16x256xf32>
    %468 = arith.mulf %466, %467 : vector<16x256xf32>
    %cst_207 = arith.constant dense<0.000000e+00> : vector<16xf32>
    %469 = vector.multi_reduction <add>, %468, %cst_207 [1] : vector<16x256xf32> to vector<16xf32>
    %470 = vector.shape_cast %469 : vector<16xf32> to vector<16x1xf32>
    %cst_208 = arith.constant 2.560000e+02 : f32
    %471 = vector.broadcast %cst_208 : f32 to vector<16x1xf32>
    %472 = arith.divf %470, %471 : vector<16x1xf32>
    %cst_209 = arith.constant dense<0.000000e+00> : vector<8x1xf32>
    %473 = tpu.matmul %2, %472, %cst_209 {dimension_numbers = #tpu.dot_dimension_numbers<[1], [0], [0], [1], [0, 0, 1, 1], [], []>} : vector<8x16xf32>, vector<16x1xf32>, vector<8x1xf32> -> vector<8x1xf32>
    %474 = arith.addf %473, %3 : vector<8x1xf32>
    %cst_210 = arith.constant 3.000000e+00 : f32
    %475 = vector.broadcast %cst_210 : f32 to vector<8x1xf32>
    %476 = arith.addf %474, %475 : vector<8x1xf32>
    %cst_211 = arith.constant 0.000000e+00 : f32
    %cst_212 = arith.constant 6.000000e+00 : f32
    %477 = vector.broadcast %cst_211 : f32 to vector<8x1xf32>
    %478 = arith.maximumf %477, %476 : vector<8x1xf32>
    %479 = vector.broadcast %cst_212 : f32 to vector<8x1xf32>
    %480 = arith.minimumf %479, %478 : vector<8x1xf32>
    %481 = arith.mulf %474, %480 : vector<8x1xf32>
    %cst_213 = arith.constant 0.166666672 : f32
    %482 = vector.broadcast %cst_213 : f32 to vector<8x1xf32>
    %483 = arith.mulf %481, %482 : vector<8x1xf32>
    %cst_214 = arith.constant dense<0.000000e+00> : vector<16x1xf32>
    %484 = tpu.matmul %4, %483, %cst_214 {dimension_numbers = #tpu.dot_dimension_numbers<[1], [0], [0], [1], [0, 0, 1, 1], [], []>} : vector<16x8xf32>, vector<8x1xf32>, vector<16x1xf32> -> vector<16x1xf32>
    %485 = arith.addf %484, %5 : vector<16x1xf32>
    %cst_215 = arith.constant 3.000000e+00 : f32
    %486 = vector.broadcast %cst_215 : f32 to vector<16x1xf32>
    %487 = arith.addf %485, %486 : vector<16x1xf32>
    %cst_216 = arith.constant 0.000000e+00 : f32
    %cst_217 = arith.constant 6.000000e+00 : f32
    %488 = vector.broadcast %cst_216 : f32 to vector<16x1xf32>
    %489 = arith.maximumf %488, %487 : vector<16x1xf32>
    %490 = vector.broadcast %cst_217 : f32 to vector<16x1xf32>
    %491 = arith.minimumf %490, %489 : vector<16x1xf32>
    %cst_218 = arith.constant 0.166666672 : f32
    %492 = vector.broadcast %cst_218 : f32 to vector<16x1xf32>
    %493 = arith.mulf %491, %492 : vector<16x1xf32>
    %494 = vector.broadcast %493 : vector<16x1xf32> to vector<16x256xf32>
    %495 = arith.mulf %468, %494 : vector<16x256xf32>
    %cst_219 = arith.constant dense<0.000000e+00> : vector<8x256xf32>
    %496 = tpu.matmul %6, %495, %cst_219 {dimension_numbers = #tpu.dot_dimension_numbers<[1], [0], [0], [1], [0, 0, 1, 1], [], []>} : vector<8x16xf32>, vector<16x256xf32>, vector<8x256xf32> -> vector<8x256xf32>
    %497 = vector.broadcast %7 : vector<8x1xf32> to vector<8x256xf32>
    %498 = arith.addf %496, %497 : vector<8x256xf32>
    %499 = arith.addf %498, %388 : vector<8x256xf32>
    %c3_220 = arith.constant 3 : index
    %c0_221 = arith.constant 0 : index
    %c0_222 = arith.constant 0 : index
    %500 = vector.load %arg8[%c3_220, %c0_221, %c0_222] : memref<4x8x256xf32, #tpu.memory_space<vmem>>, vector<1x8x256xf32>
    %501 = vector.shape_cast %500 : vector<1x8x256xf32> to vector<8x256xf32>
    %502 = vector.shape_cast %499 : vector<8x256xf32> to vector<1x8x256xf32>
    tpu.vector_store %arg8[%c3_220, %c0_221, %c0_222], %502 {strides = array<i32>} : memref<4x8x256xf32, #tpu.memory_space<vmem>>, vector<1x8x256xf32>,
    return
  }
  func.func @transform_0(%arg0: i32) -> (i32, i32, i32) {
    %c0_i32 = arith.constant 0 : i32
    %c0_i32_0 = arith.constant 0 : i32
    %c0_i32_1 = arith.constant 0 : i32
    return %arg0, %c0_i32, %c0_i32_0 : i32, i32, i32
  }
  func.func @transform_1(%arg0: i32) -> (i32, i32) {
    %c0_i32 = arith.constant 0 : i32
    %c0_i32_0 = arith.constant 0 : i32
    %c0_i32_1 = arith.constant 0 : i32
    return %c0_i32, %c0_i32_0 : i32, i32
  }
  func.func @transform_2(%arg0: i32) -> (i32, i32) {
    %c0_i32 = arith.constant 0 : i32
    %c0_i32_0 = arith.constant 0 : i32
    %c0_i32_1 = arith.constant 0 : i32
    return %c0_i32, %c0_i32_0 : i32, i32
  }
  func.func @transform_3(%arg0: i32) -> (i32, i32) {
    %c0_i32 = arith.constant 0 : i32
    %c0_i32_0 = arith.constant 0 : i32
    %c0_i32_1 = arith.constant 0 : i32
    return %c0_i32, %c0_i32_0 : i32, i32
  }
  func.func @transform_4(%arg0: i32) -> (i32, i32) {
    %c0_i32 = arith.constant 0 : i32
    %c0_i32_0 = arith.constant 0 : i32
    %c0_i32_1 = arith.constant 0 : i32
    return %c0_i32, %c0_i32_0 : i32, i32
  }
  func.func @transform_5(%arg0: i32) -> (i32, i32) {
    %c0_i32 = arith.constant 0 : i32
    %c0_i32_0 = arith.constant 0 : i32
    %c0_i32_1 = arith.constant 0 : i32
    return %c0_i32, %c0_i32_0 : i32, i32
  }
  func.func @transform_6(%arg0: i32) -> (i32, i32) {
    %c0_i32 = arith.constant 0 : i32
    %c0_i32_0 = arith.constant 0 : i32
    %c0_i32_1 = arith.constant 0 : i32
    return %c0_i32, %c0_i32_0 : i32, i32
  }
  func.func @transform_7(%arg0: i32) -> (i32, i32, i32) {
    %c0_i32 = arith.constant 0 : i32
    %c0_i32_0 = arith.constant 0 : i32
    %c0_i32_1 = arith.constant 0 : i32
    return %arg0, %c0_i32, %c0_i32_0 : i32, i32, i32
  }
}

</mosaic_0001>

<llo_original>
// kernel: tpu_custom_call.1
$region0: #{tpu_custom_call.1}
  #allocation0 [shape = 'u32[]', space=smem, size = 0x4, offset = 0x4, fixed_abs, tag = 'smem constant byte address 0x4 - core index']
  #allocation1 [shape = 'u32[144,128]{1,0:T(1,128)}', space=vmem, size = 0x12000, scoped, tag = 'internal scratch']
  #allocation2 [shape = 'f32[16,400]{1,0:T(8,128)}', space=vmem, size = 0x8000, scoped, tag = 'scratch operand']
  #allocation3 [shape = 'f32[2,16,512]{2,1,0:T(8,128)}', space=vmem, size = 0x10000, scoped, tag = 'scratch operand']
  %s0 = inlined_call_operand.vmem [shape: f32[4,8,256], index: 0, kind: input, shape index: {}]
  %s1 = inlined_call_operand.vmem [shape: f32[16,8], index: 1, kind: input, shape index: {}]
  %s2 = inlined_call_operand.vmem [shape: f32[16,9], index: 2, kind: input, shape index: {}]
  %s3 = inlined_call_operand.vmem [shape: f32[8,16], index: 3, kind: input, shape index: {}]
  %s4 = inlined_call_operand.vmem [shape: f32[16,8], index: 4, kind: input, shape index: {}]
  %s5 = inlined_call_operand.vmem [shape: f32[8,16], index: 5, kind: input, shape index: {}]
  %s6 = inlined_call_operand.vmem [shape: f32[64,1], index: 6, kind: input, shape index: {}]
  %s7 = inlined_call_operand.hbm [shape: f32[4,8,256], index: 7, kind: output, shape index: {}]
  %s8 = sld [smem:[#allocation0]]
  $region38: #{tpu_custom_call.1} parent=0
    _
  %s10 = ssub.s32 1, %s8
  %s11 = scalar_select 0, %s10, %s8
  $region1: #{tpu_custom_call.1} parent=0
    #allocation4 [shape = 'u8[32768]{0}', space=vmem, size = 0x8000, scoped, tag = 'output window, operand 0, single buffered']
    #allocation5 [shape = 's32[1]{0}', space=sflag, size = 0x4, scoped, tag = 'scoped memory for tpu_custom_call.1']
    %12 = vsyncpa [#allocation5], 0
    // Predicated region
    $region2: #{tpu_custom_call.1} parent=1 // pred_check
      _
    $region3: #{tpu_custom_call.1} parent=1 // pred_check_branch
      %14 = sbr.rel (0) target = $region5
    $region4: #{tpu_custom_call.1} parent=1 // pred_region
      _
    $region5: #{tpu_custom_call.1} parent=1 // pred_fallthru
      _
    // Predicated region
    $region6: #{tpu_custom_call.1} parent=1 // pred_check
      _
    $region7: #{tpu_custom_call.1} parent=1 // pred_check_branch
      %16 = sbr.rel (0) target = $region9
    $region8: #{tpu_custom_call.1} parent=1 // pred_region
      _
    $region9: #{tpu_custom_call.1} parent=1 // pred_fallthru
      _
    // Predicated region
    $region10: #{tpu_custom_call.1} parent=1 // pred_check
      _
    $region11: #{tpu_custom_call.1} parent=1 // pred_check_branch
      %18 = sbr.rel (0) target = $region13
    $region12: #{tpu_custom_call.1} parent=1 // pred_region
      _
    $region13: #{tpu_custom_call.1} parent=1 // pred_fallthru
      _
    // Predicated region
    $region14: #{tpu_custom_call.1} parent=1 // pred_check
      _
    $region15: #{tpu_custom_call.1} parent=1 // pred_check_branch
      %20 = sbr.rel (0) target = $region17
    $region16: #{tpu_custom_call.1} parent=1 // pred_region
      _
    $region17: #{tpu_custom_call.1} parent=1 // pred_fallthru
      _
    // Predicated region
    $region18: #{tpu_custom_call.1} parent=1 // pred_check
      _
    $region19: #{tpu_custom_call.1} parent=1 // pred_check_branch
      %22 = sbr.rel (0) target = $region21
    $region20: #{tpu_custom_call.1} parent=1 // pred_region
      _
    $region21: #{tpu_custom_call.1} parent=1 // pred_fallthru
      _
    // Predicated region
    $region22: #{tpu_custom_call.1} parent=1 // pred_check
      _
    $region23: #{tpu_custom_call.1} parent=1 // pred_check_branch
      %24 = sbr.rel (0) target = $region25
    $region24: #{tpu_custom_call.1} parent=1 // pred_region
      _
    $region25: #{tpu_custom_call.1} parent=1 // pred_fallthru
      _
    // Predicated region
    $region26: #{tpu_custom_call.1} parent=1 // pred_check
      _
    $region27: #{tpu_custom_call.1} parent=1 // pred_check_branch
      %26 = sbr.rel (0) target = $region29
    $region28: #{tpu_custom_call.1} parent=1 // pred_region
      _
    $region29: #{tpu_custom_call.1} parent=1 // pred_fallthru
      _
    %v27 = vld [vmem:[%s2] sm:$0xff]
    %v28 = vld [vmem:[%s2 + $0x8] sm:$0xff]
    %v29 = vld [vmem:[%s6 + $0x10] sm:$0xff]
    %v30 = vld [vmem:[%s6 + $0x18] sm:$0xff]
    %v31 = vld [vmem:[%s3] sm:$0xff]
    %v32 = vld [vmem:[%s6 + $0x20] sm:$0xff]
    %v33 = vld [vmem:[%s4] sm:$0xff]
    %v34 = vld [vmem:[%s4 + $0x8] sm:$0xff]
    %v35 = vld [vmem:[%s6 + $0x28] sm:$0xff]
    %v36 = vld [vmem:[%s6 + $0x30] sm:$0xff]
    %v37 = vld [vmem:[%s5] sm:$0xff]
    %v38 = vld [vmem:[%s6 + $0x38] sm:$0xff]
    %v39 = vld [vmem:[%s1] sm:$0xff]
    %v40 = vld [vmem:[%s1 + $0x8] sm:$0xff]
    %v41 = vld [vmem:[%s6] sm:$0xff]
    %v42 = vld [vmem:[%s6 + $0x8] sm:$0xff]
    %v43 = vlaneseq
    %v44 = vand.u32 %v43, 127
    %v45 = vadd.s32 %v44, 128
    %vm46 = vcmp.lt.s32.totalorder %v44, 0
    %v47 = vsub.s32 0, %v44
    %v48 = vsel %vm46, %v47, %v44
    %v49 = vshrl.u32 %v48, 4
    %v50 = vand.u32 %v48, 15
    %v51 = vsub.s32 0, %v50
    %v52 = vsel %vm46, %v51, %v50
    %vm53 = vcmp.lt.s32.totalorder %v45, 0
    %v54 = vsub.s32 0, %v45
    %v55 = vsel %vm53, %v54, %v45
    %v56 = vshrl.u32 %v55, 4
    %v57 = vand.u32 %v55, 15
    %v58 = vsub.s32 0, %v57
    %v59 = vsel %vm53, %v58, %v57
    %vm60 = vcmp.ne.s32.totalorder %v52, 0
    %vm61 = vcmp.ne.s32.totalorder %v59, 0
    %vm62 = vcmp.lt.s32.totalorder %v52, 0
    %vm63 = vcmp.lt.s32.totalorder %v59, 0
    %vm64 = vmand %vm62, %vm60
    %vm65 = vmand %vm63, %vm61
    %v66 = vadd.s32 %v52, 16
    %v67 = vadd.s32 %v59, 16
    %v68 = vsel %vm64, %v66, %v52
    %v69 = vsel %vm65, %v67, %v59
    %vm70 = vcmp.ge.s32.totalorder %v68, 1
    %vm71 = vcmp.ge.s32.totalorder %v69, 1
    %vm72 = vcmp.lt.s32.totalorder %v68, 15
    %vm73 = vcmp.lt.s32.totalorder %v69, 15
    %74 = vst [vmem:[#allocation2] sm:$0xff] 0.0
    %75 = vst [vmem:[#allocation2 + $0x20] sm:$0xff] 0.0
    %vm76 = vcmask 130048
    %77 = vst.msk [vmem:[#allocation2 + $0x18] sm:$0xff] %vm76, 0.0
    %78 = vst.msk [vmem:[#allocation2 + $0x38] sm:$0xff] %vm76, 0.0
    %79 = vst [vmem:[#allocation3] sm:$0xff] 0.0
    %80 = vst [vmem:[#allocation3 + $0x20] sm:$0xff] 0.0
    %81 = vst [vmem:[#allocation3 + $0x40] sm:$0xff] 0.0
    %82 = vst [vmem:[#allocation3 + $0x60] sm:$0xff] 0.0
    %83 = vst [vmem:[#allocation3 + $0x18] sm:$0xff] 0.0
    %84 = vst [vmem:[#allocation3 + $0x38] sm:$0xff] 0.0
    %85 = vst [vmem:[#allocation3 + $0x58] sm:$0xff] 0.0
    %86 = vst [vmem:[#allocation3 + $0x78] sm:$0xff] 0.0
    %v87 = vld [vmem:[%s0] sm:$0xff]
    %v88 = vld [vmem:[%s0 + $0x8] sm:$0xff]
    %90 = vset.pattern.permute.xlu0 0
    %91 = vperm.xlu0 %90, %v41
    %v92 = vpop.permute.xlu0 %91
    %95 = vset.pattern.permute.xlu0 0
    %96 = vperm.xlu0 %95, %v42
    %v97 = vpop.permute.xlu0 %96
    %vm99 = vcmask 64512
    %v101 = vsel %vm99, %v39, 0
    %v104 = vsel %vm99, %v40, 0
    %106 = vmatprep.subr.mxu0 0.0
    %107 = vmatpush1.msra.mxu0 0.0
    %108 = vmatprep.subr.mxu0 0.0
    %109 = vmatpush1.msra.mxu0 0.0
    %110 = vmatprep.subr.mxu0 0.0
    %111 = vmatpush1.msra.mxu0 0.0
    %112 = vmatprep.subr.mxu0 0.0
    %113 = vmatpush1.msra.mxu0 0.0
    %114 = vmatprep.subr.mxu0 0.0
    %115 = vmatpush1.msra.mxu0 0.0
    %116 = vmatprep.subr.mxu0 0.0
    %117 = vmatpush1.msra.mxu0 0.0
    %118 = vmatprep.subr.mxu0 0.0
    %119 = vmatpush1.msra.mxu0 0.0
    %120 = vmatprep.subr.mxu0 0.0
    %121 = vmatpush1.msra.mxu0 0.0
    %122 = vmatprep.subr.mxu0 0.0
    %123 = vmatpush1.msra.mxu0 0.0
    %124 = vmatprep.subr.mxu0 0.0
    %125 = vmatpush1.msra.mxu0 0.0
    %126 = vmatprep.subr.mxu0 0.0
    %127 = vmatpush1.msra.mxu0 0.0
    %128 = vmatprep.subr.mxu0 0.0
    %129 = vmatpush1.msra.mxu0 0.0
    %130 = vmatprep.subr.mxu0 0.0
    %131 = vmatpush1.msra.mxu0 0.0
    %132 = vmatprep.subr.mxu0 0.0
    %133 = vmatpush1.msra.mxu0 0.0
    %134 = vmatprep.subr.mxu0 0.0
    %135 = vmatpush1.msra.mxu0 0.0
    %136 = vmatprep.subr.mxu0 %v88
    %137 = vmatpush1.msra.mxu0 %v87
    %138 = vmatprep.subr.mxu0 0.0
    %139 = vmatpush2.msra.mxu0 0.0
    %140 = vmatprep.subr.mxu0 0.0
    %141 = vmatpush2.msra.mxu0 0.0
    %142 = vmatprep.subr.mxu0 0.0
    %143 = vmatpush2.msra.mxu0 0.0
    %144 = vmatprep.subr.mxu0 0.0
    %145 = vmatpush2.msra.mxu0 0.0
    %146 = vmatprep.subr.mxu0 0.0
    %147 = vmatpush2.msra.mxu0 0.0
    %148 = vmatprep.subr.mxu0 0.0
    %149 = vmatpush2.msra.mxu0 0.0
    %150 = vmatprep.subr.mxu0 0.0
    %151 = vmatpush2.msra.mxu0 0.0
    %152 = vmatprep.subr.mxu0 0.0
    %153 = vmatpush2.msra.mxu0 0.0
    %154 = vmatprep.subr.mxu0 0.0
    %155 = vmatpush2.msra.mxu0 0.0
    %156 = vmatprep.subr.mxu0 0.0
    %157 = vmatpush2.msra.mxu0 0.0
    %158 = vmatprep.subr.mxu0 0.0
    %159 = vmatpush2.msra.mxu0 0.0
    %160 = vmatprep.subr.mxu0 0.0
    %161 = vmatpush2.msra.mxu0 0.0
    %162 = vmatprep.subr.mxu0 0.0
    %163 = vmatpush2.msra.mxu0 0.0
    %164 = vmatprep.subr.mxu0 0.0
    %165 = vmatpush2.msra.mxu0 0.0
    %166 = vmatprep.subr.mxu0 0.0
    %167 = vmatpush2.msra.mxu0 0.0
    %168 = vmatprep.subr.mxu0 0.0
    %169 = vmatpush2.msra.mxu0 0.0
    %170 = vmatprep.mubr.f32.mxu0 0.0
    %171 = vmatmul.mubr.f32.gmra.mxu0 %v101
    %v172 = vpop.f32.mrf.mxu0
    %v173 = vadd.f32 %v92, %v172
    %v174 = vpop.f32.mrf.mxu0
    %v175 = vadd.f32 %v92, %v174
    %176 = vmatprep.mubr.f32.mxu0 0.0
    %177 = vmatmul.mubr.f32.gmra.mxu0 %v104
    %v178 = vpop.f32.mrf.mxu0
    %v179 = vadd.f32 %v97, %v178
    %v180 = vpop.f32.mrf.mxu0
    %v181 = vadd.f32 %v97, %v180
    %182 = vdwg.mxu0
    %v183 = vadd.f32 %v173, 3.0
    %v184 = vadd.f32 %v175, 3.0
    %v185 = vadd.f32 %v179, 3.0
    %v186 = vadd.f32 %v181, 3.0
    %v187 = vmax.f32 %v183, 0.0
    %v188 = vmax.f32 %v184, 0.0
    %v189 = vmax.f32 %v185, 0.0
    %v190 = vmax.f32 %v186, 0.0
    %v191 = vmin.f32 %v187, 6.0
    %v192 = vmin.f32 %v188, 6.0
    %v193 = vmin.f32 %v189, 6.0
    %v194 = vmin.f32 %v190, 6.0
    %v195 = vmul.f32 %v173, %v191
    %v196 = vmul.f32 %v175, %v192
    %v197 = vmul.f32 %v179, %v193
    %v198 = vmul.f32 %v181, %v194
    %v199 = vmul.f32 %v195, 0.16666667
    %v200 = vmul.f32 %v196, 0.16666667
    %v201 = vmul.f32 %v197, 0.16666667
    %v202 = vmul.f32 %v198, 0.16666667
    %203 = vst [vmem:[#allocation2 + $0x8] sm:$0xff] %v199
    %204 = vst [vmem:[#allocation2 + $0x10] sm:$0xff] %v200
    %205 = vst [vmem:[#allocation2 + $0x28] sm:$0xff] %v201
    %206 = vst [vmem:[#allocation2 + $0x30] sm:$0xff] %v202
    %v207 = vld [vmem:[#allocation2] sm:$0xff]
    %v208 = vld [vmem:[#allocation2 + $0x8] sm:$0xff]
    %v209 = vld [vmem:[#allocation2 + $0x10] sm:$0xff]
    %v210 = vld [vmem:[#allocation2 + $0x20] sm:$0xff]
    %v211 = vld [vmem:[#allocation2 + $0x28] sm:$0xff]
    %v212 = vld [vmem:[#allocation2 + $0x30] sm:$0xff]
    %v213 = vld [vmem:[#allocation2 + $0x18] sm:$0xff]
    %v214 = vld [vmem:[#allocation2 + $0x38] sm:$0xff]
    %216 = vset.pattern.permute.xlu0 0
    %217 = vperm.xlu0 %216, %v27
    %v218 = vpop.permute.xlu0 %217
    %221 = vset.pattern.permute.xlu0 0
    %222 = vperm.xlu0 %221, %v28
    %v223 = vpop.permute.xlu0 %222
    %v225 = vmul.f32 %v207, %v218
    %v226 = vmul.f32 %v208, %v218
    %v227 = vmul.f32 %v209, %v218
    %v228 = vmul.f32 %v210, %v223
    %v229 = vmul.f32 %v211, %v223
    %v230 = vmul.f32 %v212, %v223
    %231 = vset.pattern.permute.xlu0 3
    %232 = vperm.xlu0 %231, %v27
    %v233 = vpop.permute.xlu0 %232
    %235 = vset.pattern.permute.xlu0 3
    %236 = vperm.xlu0 %235, %v28
    %v237 = vpop.permute.xlu0 %236
    %v239 = vmul.f32 %v208, %v233
    %v240 = vmul.f32 %v209, %v233
    %v241 = vmul.f32 %v211, %v237
    %v242 = vmul.f32 %v212, %v237
    %247 = vrot.lane.b32.xlu0 %v239, 112
    %v248 = vpop.permute.xlu0 %247
    %249 = vrot.lane.b32.xlu0 %v240, 112
    %v250 = vpop.permute.xlu0 %249
    %251 = vrot.lane.b32.xlu0 %v241, 112
    %v252 = vpop.permute.xlu0 %251
    %253 = vrot.lane.b32.xlu0 %v242, 112
    %v254 = vpop.permute.xlu0 %253
    %vm255 = vcmask 916480
    %v256 = vsel %vm255, %v248, %v250
    %v257 = vsel %vm255, %v252, %v254
    %v264 = vadd.f32 %v225, %v248
    %v265 = vadd.f32 %v226, %v256
    %v266 = vadd.f32 %v227, %v250
    %v267 = vadd.f32 %v228, %v252
    %v268 = vadd.f32 %v229, %v257
    %v269 = vadd.f32 %v230, %v254
    %270 = vset.pattern.permute.xlu0 6
    %271 = vperm.xlu0 %270, %v27
    %v272 = vpop.permute.xlu0 %271
    %274 = vset.pattern.permute.xlu0 6
    %275 = vperm.xlu0 %274, %v28
    %v276 = vpop.permute.xlu0 %275
    %v278 = vmul.f32 %v208, %v272
    %v279 = vmul.f32 %v209, %v272
    %v280 = vmul.f32 %v213, %v272
    %v281 = vmul.f32 %v211, %v276
    %v282 = vmul.f32 %v212, %v276
    %v283 = vmul.f32 %v214, %v276
    %290 = vrot.lane.b32.xlu0 %v278, 96
    %v291 = vpop.permute.xlu0 %290
    %292 = vrot.lane.b32.xlu0 %v279, 96
    %v293 = vpop.permute.xlu0 %292
    %294 = vrot.lane.b32.xlu0 %v280, 96
    %v295 = vpop.permute.xlu0 %294
    %296 = vrot.lane.b32.xlu0 %v281, 96
    %v297 = vpop.permute.xlu0 %296
    %298 = vrot.lane.b32.xlu0 %v282, 96
    %v299 = vpop.permute.xlu0 %298
    %300 = vrot.lane.b32.xlu0 %v283, 96
    %v301 = vpop.permute.xlu0 %300
    %vm302 = vcmask 785408
    %v303 = vsel %vm302, %v291, %v293
    %v304 = vsel %vm302, %v293, %v295
    %v305 = vsel %vm302, %v297, %v299
    %v306 = vsel %vm302, %v299, %v301
    %v313 = vadd.f32 %v264, %v291
    %v314 = vadd.f32 %v265, %v303
    %v315 = vadd.f32 %v266, %v304
    %v316 = vadd.f32 %v267, %v297
    %v317 = vadd.f32 %v268, %v305
    %v318 = vadd.f32 %v269, %v306
    %325 = vrot.lane.b32.xlu0 %v313, 16
    %v326 = vpop.permute.xlu0 %325
    %327 = vrot.lane.b32.xlu0 %v314, 16
    %v328 = vpop.permute.xlu0 %327
    %329 = vrot.lane.b32.xlu0 %v315, 16
    %v330 = vpop.permute.xlu0 %329
    %331 = vrot.lane.b32.xlu0 %v316, 16
    %v332 = vpop.permute.xlu0 %331
    %333 = vrot.lane.b32.xlu0 %v317, 16
    %v334 = vpop.permute.xlu0 %333
    %335 = vrot.lane.b32.xlu0 %v318, 16
    %v336 = vpop.permute.xlu0 %335
    %v337 = vsel %vm76, %v326, %v328
    %v338 = vsel %vm76, %v328, %v330
    %v339 = vsel %vm76, %v332, %v334
    %v340 = vsel %vm76, %v334, %v336
    %345 = vst [vmem:[#allocation3 + $0x8] sm:$0xff] %v337
    %346 = vst [vmem:[#allocation3 + $0x10] sm:$0xff] %v338
    %347 = vst [vmem:[#allocation3 + $0x28] sm:$0xff] %v339
    %348 = vst [vmem:[#allocation3 + $0x30] sm:$0xff] %v340
    %v349 = vld [vmem:[#allocation3] sm:$0xff]
    %v350 = vld [vmem:[#allocation3 + $0x8] sm:$0xff]
    %v351 = vld [vmem:[#allocation3 + $0x10] sm:$0xff]
    %v352 = vld [vmem:[#allocation3 + $0x20] sm:$0xff]
    %v353 = vld [vmem:[#allocation3 + $0x28] sm:$0xff]
    %v354 = vld [vmem:[#allocation3 + $0x30] sm:$0xff]
    %v355 = vsel %vm70, 1, 0
    %v356 = vsel %vm71, 1, 0
    %vm357 = vcmp.eq.s32.totalorder %v355, 1
    %vm358 = vcmp.eq.s32.totalorder %v356, 1
    %365 = vrot.lane.b32.xlu0 %v349, 1
    %v366 = vpop.permute.xlu0 %365
    %367 = vrot.lane.b32.xlu0 %v350, 1
    %v368 = vpop.permute.xlu0 %367
    %369 = vrot.lane.b32.xlu0 %v351, 1
    %v370 = vpop.permute.xlu0 %369
    %371 = vrot.lane.b32.xlu0 %v352, 1
    %v372 = vpop.permute.xlu0 %371
    %373 = vrot.lane.b32.xlu0 %v353, 1
    %v374 = vpop.permute.xlu0 %373
    %375 = vrot.lane.b32.xlu0 %v354, 1
    %v376 = vpop.permute.xlu0 %375
    %vm377 = vcmask 7168
    %v378 = vsel %vm377, %v366, %v368
    %v379 = vsel %vm377, %v368, %v370
    %v380 = vsel %vm377, %v372, %v374
    %v381 = vsel %vm377, %v374, %v376
    %v386 = vsel %vm357, %v378, 0.0
    %v387 = vsel %vm358, %v379, 0.0
    %v388 = vsel %vm357, %v380, 0.0
    %v389 = vsel %vm358, %v381, 0.0
    %390 = vset.pattern.permute.xlu0 1
    %391 = vperm.xlu0 %390, %v27
    %v392 = vpop.permute.xlu0 %391
    %394 = vset.pattern.permute.xlu0 1
    %395 = vperm.xlu0 %394, %v28
    %v396 = vpop.permute.xlu0 %395
    %v398 = vmul.f32 %v207, %v392
    %v399 = vmul.f32 %v208, %v392
    %v400 = vmul.f32 %v209, %v392
    %v401 = vmul.f32 %v210, %v396
    %v402 = vmul.f32 %v211, %v396
    %v403 = vmul.f32 %v212, %v396
    %404 = vset.pattern.permute.xlu0 4
    %405 = vperm.xlu0 %404, %v27
    %v406 = vpop.permute.xlu0 %405
    %408 = vset.pattern.permute.xlu0 4
    %409 = vperm.xlu0 %408, %v28
    %v410 = vpop.permute.xlu0 %409
    %v412 = vmul.f32 %v208, %v406
    %v413 = vmul.f32 %v209, %v406
    %v414 = vmul.f32 %v211, %v410
    %v415 = vmul.f32 %v212, %v410
    %420 = vrot.lane.b32.xlu0 %v412, 112
    %v421 = vpop.permute.xlu0 %420
    %422 = vrot.lane.b32.xlu0 %v413, 112
    %v423 = vpop.permute.xlu0 %422
    %424 = vrot.lane.b32.xlu0 %v414, 112
    %v425 = vpop.permute.xlu0 %424
    %426 = vrot.lane.b32.xlu0 %v415, 112
    %v427 = vpop.permute.xlu0 %426
    %v428 = vsel %vm255, %v421, %v423
    %v429 = vsel %vm255, %v425, %v427
    %v436 = vadd.f32 %v398, %v421
    %v437 = vadd.f32 %v399, %v428
    %v438 = vadd.f32 %v400, %v423
    %v439 = vadd.f32 %v401, %v425
    %v440 = vadd.f32 %v402, %v429
    %v441 = vadd.f32 %v403, %v427
    %442 = vset.pattern.permute.xlu0 7
    %443 = vperm.xlu0 %442, %v27
    %v444 = vpop.permute.xlu0 %443
    %446 = vset.pattern.permute.xlu0 7
    %447 = vperm.xlu0 %446, %v28
    %v448 = vpop.permute.xlu0 %447
    %v450 = vmul.f32 %v208, %v444
    %v451 = vmul.f32 %v209, %v444
    %v452 = vmul.f32 %v213, %v444
    %v453 = vmul.f32 %v211, %v448
    %v454 = vmul.f32 %v212, %v448
    %v455 = vmul.f32 %v214, %v448
    %462 = vrot.lane.b32.xlu0 %v450, 96
    %v463 = vpop.permute.xlu0 %462
    %464 = vrot.lane.b32.xlu0 %v451, 96
    %v465 = vpop.permute.xlu0 %464
    %466 = vrot.lane.b32.xlu0 %v452, 96
    %v467 = vpop.permute.xlu0 %466
    %468 = vrot.lane.b32.xlu0 %v453, 96
    %v469 = vpop.permute.xlu0 %468
    %470 = vrot.lane.b32.xlu0 %v454, 96
    %v471 = vpop.permute.xlu0 %470
    %472 = vrot.lane.b32.xlu0 %v455, 96
    %v473 = vpop.permute.xlu0 %472
    %v474 = vsel %vm302, %v463, %v465
    %v475 = vsel %vm302, %v465, %v467
    %v476 = vsel %vm302, %v469, %v471
    %v477 = vsel %vm302, %v471, %v473
    %v484 = vadd.f32 %v436, %v463
    %v485 = vadd.f32 %v437, %v474
    %v486 = vadd.f32 %v438, %v475
    %v487 = vadd.f32 %v439, %v469
    %v488 = vadd.f32 %v440, %v476
    %v489 = vadd.f32 %v441, %v477
    %496 = vrot.lane.b32.xlu0 %v484, 16
    %v497 = vpop.permute.xlu0 %496
    %498 = vrot.lane.b32.xlu0 %v485, 16
    %v499 = vpop.permute.xlu0 %498
    %500 = vrot.lane.b32.xlu0 %v486, 16
    %v501 = vpop.permute.xlu0 %500
    %502 = vrot.lane.b32.xlu0 %v487, 16
    %v503 = vpop.permute.xlu0 %502
    %504 = vrot.lane.b32.xlu0 %v488, 16
    %v505 = vpop.permute.xlu0 %504
    %506 = vrot.lane.b32.xlu0 %v489, 16
    %v507 = vpop.permute.xlu0 %506
    %v508 = vsel %vm76, %v497, %v499
    %v509 = vsel %vm76, %v499, %v501
    %v510 = vsel %vm76, %v503, %v505
    %v511 = vsel %vm76, %v505, %v507
    %v516 = vadd.f32 %v386, %v508
    %v517 = vadd.f32 %v387, %v509
    %v518 = vadd.f32 %v388, %v510
    %v519 = vadd.f32 %v389, %v511
    %520 = vset.pattern.permute.xlu0 2
    %521 = vperm.xlu0 %520, %v27
    %v522 = vpop.permute.xlu0 %521
    %524 = vset.pattern.permute.xlu0 2
    %525 = vperm.xlu0 %524, %v28
    %v526 = vpop.permute.xlu0 %525
    %v528 = vmul.f32 %v207, %v522
    %v529 = vmul.f32 %v208, %v522
    %v530 = vmul.f32 %v209, %v522
    %v531 = vmul.f32 %v210, %v526
    %v532 = vmul.f32 %v211, %v526
    %v533 = vmul.f32 %v212, %v526
    %534 = vset.pattern.permute.xlu0 5
    %535 = vperm.xlu0 %534, %v27
    %v536 = vpop.permute.xlu0 %535
    %538 = vset.pattern.permute.xlu0 5
    %539 = vperm.xlu0 %538, %v28
    %v540 = vpop.permute.xlu0 %539
    %v542 = vmul.f32 %v208, %v536
    %v543 = vmul.f32 %v209, %v536
    %v544 = vmul.f32 %v211, %v540
    %v545 = vmul.f32 %v212, %v540
    %550 = vrot.lane.b32.xlu0 %v542, 112
    %v551 = vpop.permute.xlu0 %550
    %552 = vrot.lane.b32.xlu0 %v543, 112
    %v553 = vpop.permute.xlu0 %552
    %554 = vrot.lane.b32.xlu0 %v544, 112
    %v555 = vpop.permute.xlu0 %554
    %556 = vrot.lane.b32.xlu0 %v545, 112
    %v557 = vpop.permute.xlu0 %556
    %v558 = vsel %vm255, %v551, %v553
    %v559 = vsel %vm255, %v555, %v557
    %v566 = vadd.f32 %v528, %v551
    %v567 = vadd.f32 %v529, %v558
    %v568 = vadd.f32 %v530, %v553
    %v569 = vadd.f32 %v531, %v555
    %v570 = vadd.f32 %v532, %v559
    %v571 = vadd.f32 %v533, %v557
    %572 = vset.pattern.permute.xlu0 8
    %573 = vperm.xlu0 %572, %v27
    %v574 = vpop.permute.xlu0 %573
    %576 = vset.pattern.permute.xlu0 8
    %577 = vperm.xlu0 %576, %v28
    %v578 = vpop.permute.xlu0 %577
    %v580 = vmul.f32 %v208, %v574
    %v581 = vmul.f32 %v209, %v574
    %v582 = vmul.f32 %v213, %v574
    %v583 = vmul.f32 %v211, %v578
    %v584 = vmul.f32 %v212, %v578
    %v585 = vmul.f32 %v214, %v578
    %592 = vrot.lane.b32.xlu0 %v580, 96
    %v593 = vpop.permute.xlu0 %592
    %594 = vrot.lane.b32.xlu0 %v581, 96
    %v595 = vpop.permute.xlu0 %594
    %596 = vrot.lane.b32.xlu0 %v582, 96
    %v597 = vpop.permute.xlu0 %596
    %598 = vrot.lane.b32.xlu0 %v583, 96
    %v599 = vpop.permute.xlu0 %598
    %600 = vrot.lane.b32.xlu0 %v584, 96
    %v601 = vpop.permute.xlu0 %600
    %602 = vrot.lane.b32.xlu0 %v585, 96
    %v603 = vpop.permute.xlu0 %602
    %v604 = vsel %vm302, %v593, %v595
    %v605 = vsel %vm302, %v595, %v597
    %v606 = vsel %vm302, %v599, %v601
    %v607 = vsel %vm302, %v601, %v603
    %v614 = vadd.f32 %v566, %v593
    %v615 = vadd.f32 %v567, %v604
    %v616 = vadd.f32 %v568, %v605
    %v617 = vadd.f32 %v569, %v599
    %v618 = vadd.f32 %v570, %v606
    %v619 = vadd.f32 %v571, %v607
    %626 = vrot.lane.b32.xlu0 %v614, 16
    %v627 = vpop.permute.xlu0 %626
    %628 = vrot.lane.b32.xlu0 %v615, 16
    %v629 = vpop.permute.xlu0 %628
    %630 = vrot.lane.b32.xlu0 %v616, 16
    %v631 = vpop.permute.xlu0 %630
    %632 = vrot.lane.b32.xlu0 %v617, 16
    %v633 = vpop.permute.xlu0 %632
    %634 = vrot.lane.b32.xlu0 %v618, 16
    %v635 = vpop.permute.xlu0 %634
    %636 = vrot.lane.b32.xlu0 %v619, 16
    %v637 = vpop.permute.xlu0 %636
    %v638 = vsel %vm76, %v627, %v629
    %v639 = vsel %vm76, %v629, %v631
    %v640 = vsel %vm76, %v633, %v635
    %v641 = vsel %vm76, %v635, %v637
    %s646 = scalar_lea.vmem [#allocation3], 64
    %647 = vst [vmem:[%s646 + $0x8] sm:$0xff] %v638
    %648 = vst [vmem:[%s646 + $0x10] sm:$0xff] %v639
    %649 = vst [vmem:[%s646 + $0x28] sm:$0xff] %v640
    %650 = vst [vmem:[%s646 + $0x30] sm:$0xff] %v641
    %v651 = vld [vmem:[%s646 + $0x8] sm:$0xff]
    %v652 = vld [vmem:[%s646 + $0x10] sm:$0xff]
    %v653 = vld [vmem:[%s646 + $0x18] sm:$0xff]
    %v654 = vld [vmem:[%s646 + $0x28] sm:$0xff]
    %v655 = vld [vmem:[%s646 + $0x30] sm:$0xff]
    %v656 = vld [vmem:[%s646 + $0x38] sm:$0xff]
    %v657 = vsel %vm72, 1, 0
    %v658 = vsel %vm73, 1, 0
    %vm659 = vcmp.eq.s32.totalorder %v657, 1
    %vm660 = vcmp.eq.s32.totalorder %v658, 1
    %667 = vrot.lane.b32.xlu0 %v651, 127
    %v668 = vpop.permute.xlu0 %667
    %669 = vrot.lane.b32.xlu0 %v652, 127
    %v670 = vpop.permute.xlu0 %669
    %671 = vrot.lane.b32.xlu0 %v653, 127
    %v672 = vpop.permute.xlu0 %671
    %673 = vrot.lane.b32.xlu0 %v654, 127
    %v674 = vpop.permute.xlu0 %673
    %675 = vrot.lane.b32.xlu0 %v655, 127
    %v676 = vpop.permute.xlu0 %675
    %677 = vrot.lane.b32.xlu0 %v656, 127
    %v678 = vpop.permute.xlu0 %677
    %vm679 = vcmask 1039360
    %v680 = vsel %vm679, %v668, %v670
    %v681 = vsel %vm679, %v670, %v672
    %v682 = vsel %vm679, %v674, %v676
    %v683 = vsel %vm679, %v676, %v678
    %v688 = vsel %vm659, %v680, 0.0
    %v689 = vsel %vm660, %v681, 0.0
    %v690 = vsel %vm659, %v682, 0.0
    %v691 = vsel %vm660, %v683, 0.0
    %v692 = vadd.f32 %v516, %v688
    %v693 = vadd.f32 %v517, %v689
    %v694 = vadd.f32 %v518, %v690
    %v695 = vadd.f32 %v519, %v691
    %697 = vset.pattern.permute.xlu0 0
    %698 = vperm.xlu0 %697, %v29
    %v699 = vpop.permute.xlu0 %698
    %702 = vset.pattern.permute.xlu0 0
    %703 = vperm.xlu0 %702, %v30
    %v704 = vpop.permute.xlu0 %703
    %v706 = vadd.f32 %v692, %v699
    %v707 = vadd.f32 %v693, %v699
    %v708 = vadd.f32 %v694, %v704
    %v709 = vadd.f32 %v695, %v704
    %v710 = vadd.f32 %v706, 3.0
    %v711 = vadd.f32 %v707, 3.0
    %v712 = vadd.f32 %v708, 3.0
    %v713 = vadd.f32 %v709, 3.0
    %v714 = vmax.f32 %v710, 0.0
    %v715 = vmax.f32 %v711, 0.0
    %v716 = vmax.f32 %v712, 0.0
    %v717 = vmax.f32 %v713, 0.0
    %v718 = vmin.f32 %v714, 6.0
    %v719 = vmin.f32 %v715, 6.0
    %v720 = vmin.f32 %v716, 6.0
    %v721 = vmin.f32 %v717, 6.0
    %v722 = vmul.f32 %v706, %v718
    %v723 = vmul.f32 %v707, %v719
    %v724 = vmul.f32 %v708, %v720
    %v725 = vmul.f32 %v709, %v721
    %v726 = vmul.f32 %v722, 0.16666667
    %v727 = vmul.f32 %v723, 0.16666667
    %v728 = vmul.f32 %v724, 0.16666667
    %v729 = vmul.f32 %v725, 0.16666667
    %v730 = vadd.f32 %v726, %v727
    %731 = vadd.xlane.f32.xlu0 %v730
    %v732 = vpop.xlane.xlu0 %731
    %v733 = vadd.f32 %v728, %v729
    %734 = vadd.xlane.f32.xlu0 %v733
    %v735 = vpop.xlane.xlu0 %734
    %v736 = vrcp.pop 256.0
    %v737 = vmul.f32 %v732, %v736
    %v738 = vmul.f32 %v735, %v736
    %v740 = vsel %vm76, %v31, 0
    %742 = vmatprep.subr.mxu0 0.0
    %743 = vmatpush1.msra.mxu0 0.0
    %744 = vmatprep.subr.mxu0 0.0
    %745 = vmatpush1.msra.mxu0 0.0
    %746 = vmatprep.subr.mxu0 0.0
    %747 = vmatpush1.msra.mxu0 0.0
    %748 = vmatprep.subr.mxu0 0.0
    %749 = vmatpush1.msra.mxu0 0.0
    %750 = vmatprep.subr.mxu0 0.0
    %751 = vmatpush1.msra.mxu0 0.0
    %752 = vmatprep.subr.mxu0 0.0
    %753 = vmatpush1.msra.mxu0 0.0
    %754 = vmatprep.subr.mxu0 0.0
    %755 = vmatpush1.msra.mxu0 0.0
    %756 = vmatprep.subr.mxu0 0.0
    %757 = vmatpush1.msra.mxu0 0.0
    %758 = vmatprep.subr.mxu0 0.0
    %759 = vmatpush1.msra.mxu0 0.0
    %760 = vmatprep.subr.mxu0 0.0
    %761 = vmatpush1.msra.mxu0 0.0
    %762 = vmatprep.subr.mxu0 0.0
    %763 = vmatpush1.msra.mxu0 0.0
    %764 = vmatprep.subr.mxu0 0.0
    %765 = vmatpush1.msra.mxu0 0.0
    %766 = vmatprep.subr.mxu0 0.0
    %767 = vmatpush1.msra.mxu0 0.0
    %768 = vmatprep.subr.mxu0 0.0
    %769 = vmatpush1.msra.mxu0 0.0
    %770 = vmatprep.subr.mxu0 0.0
    %771 = vmatpush1.msra.mxu0 %v738
    %772 = vmatprep.subr.mxu0 0.0
    %773 = vmatpush1.msra.mxu0 %v737
    %774 = vmatprep.subr.mxu0 0.0
    %775 = vmatpush2.msra.mxu0 0.0
    %776 = vmatprep.subr.mxu0 0.0
    %777 = vmatpush2.msra.mxu0 0.0
    %778 = vmatprep.subr.mxu0 0.0
    %779 = vmatpush2.msra.mxu0 0.0
    %780 = vmatprep.subr.mxu0 0.0
    %781 = vmatpush2.msra.mxu0 0.0
    %782 = vmatprep.subr.mxu0 0.0
    %783 = vmatpush2.msra.mxu0 0.0
    %784 = vmatprep.subr.mxu0 0.0
    %785 = vmatpush2.msra.mxu0 0.0
    %786 = vmatprep.subr.mxu0 0.0
    %787 = vmatpush2.msra.mxu0 0.0
    %788 = vmatprep.subr.mxu0 0.0
    %789 = vmatpush2.msra.mxu0 0.0
    %790 = vmatprep.subr.mxu0 0.0
    %791 = vmatpush2.msra.mxu0 0.0
    %792 = vmatprep.subr.mxu0 0.0
    %793 = vmatpush2.msra.mxu0 0.0
    %794 = vmatprep.subr.mxu0 0.0
    %795 = vmatpush2.msra.mxu0 0.0
    %796 = vmatprep.subr.mxu0 0.0
    %797 = vmatpush2.msra.mxu0 0.0
    %798 = vmatprep.subr.mxu0 0.0
    %799 = vmatpush2.msra.mxu0 0.0
    %800 = vmatprep.subr.mxu0 0.0
    %801 = vmatpush2.msra.mxu0 0.0
    %802 = vmatprep.subr.mxu0 0.0
    %803 = vmatpush2.msra.mxu0 0.0
    %804 = vmatprep.subr.mxu0 0.0
    %805 = vmatpush2.msra.mxu0 0.0
    %806 = vmatprep.mubr.f32.mxu0 0.0
    %807 = vmatmul.mubr.f32.gmra.mxu0 %v740
    %v808 = vpop.f32.mrf.mxu0
    %v809 = vadd.f32 %v32, %v808
    %v810 = vpop.f32.mrf.mxu0
    %811 = vdwg.mxu0
    %v812 = vadd.f32 %v809, 3.0
    %v813 = vmax.f32 %v812, 0.0
    %v814 = vmin.f32 %v813, 6.0
    %v815 = vmul.f32 %v809, %v814
    %v816 = vmul.f32 %v815, 0.16666667
    %v818 = vsel %vm99, %v33, 0
    %v821 = vsel %vm99, %v34, 0
    %823 = vmatprep.subr.mxu0 0.0
    %824 = vmatpush1.msra.mxu0 0.0
    %825 = vmatprep.subr.mxu0 0.0
    %826 = vmatpush1.msra.mxu0 0.0
    %827 = vmatprep.subr.mxu0 0.0
    %828 = vmatpush1.msra.mxu0 0.0
    %829 = vmatprep.subr.mxu0 0.0
    %830 = vmatpush1.msra.mxu0 0.0
    %831 = vmatprep.subr.mxu0 0.0
    %832 = vmatpush1.msra.mxu0 0.0
    %833 = vmatprep.subr.mxu0 0.0
    %834 = vmatpush1.msra.mxu0 0.0
    %835 = vmatprep.subr.mxu0 0.0
    %836 = vmatpush1.msra.mxu0 0.0
    %837 = vmatprep.subr.mxu0 0.0
    %838 = vmatpush1.msra.mxu0 0.0
    %839 = vmatprep.subr.mxu0 0.0
    %840 = vmatpush1.msra.mxu0 0.0
    %841 = vmatprep.subr.mxu0 0.0
    %842 = vmatpush1.msra.mxu0 0.0
    %843 = vmatprep.subr.mxu0 0.0
    %844 = vmatpush1.msra.mxu0 0.0
    %845 = vmatprep.subr.mxu0 0.0
    %846 = vmatpush1.msra.mxu0 0.0
    %847 = vmatprep.subr.mxu0 0.0
    %848 = vmatpush1.msra.mxu0 0.0
    %849 = vmatprep.subr.mxu0 0.0
    %850 = vmatpush1.msra.mxu0 0.0
    %851 = vmatprep.subr.mxu0 0.0
    %852 = vmatpush1.msra.mxu0 0.0
    %853 = vmatprep.subr.mxu0 0.0
    %854 = vmatpush1.msra.mxu0 %v816
    %855 = vmatprep.subr.mxu0 0.0
    %856 = vmatpush2.msra.mxu0 0.0
    %857 = vmatprep.subr.mxu0 0.0
    %858 = vmatpush2.msra.mxu0 0.0
    %859 = vmatprep.subr.mxu0 0.0
    %860 = vmatpush2.msra.mxu0 0.0
    %861 = vmatprep.subr.mxu0 0.0
    %862 = vmatpush2.msra.mxu0 0.0
    %863 = vmatprep.subr.mxu0 0.0
    %864 = vmatpush2.msra.mxu0 0.0
    %865 = vmatprep.subr.mxu0 0.0
    %866 = vmatpush2.msra.mxu0 0.0
    %867 = vmatprep.subr.mxu0 0.0
    %868 = vmatpush2.msra.mxu0 0.0
    %869 = vmatprep.subr.mxu0 0.0
    %870 = vmatpush2.msra.mxu0 0.0
    %871 = vmatprep.subr.mxu0 0.0
    %872 = vmatpush2.msra.mxu0 0.0
    %873 = vmatprep.subr.mxu0 0.0
    %874 = vmatpush2.msra.mxu0 0.0
    %875 = vmatprep.subr.mxu0 0.0
    %876 = vmatpush2.msra.mxu0 0.0
    %877 = vmatprep.subr.mxu0 0.0
    %878 = vmatpush2.msra.mxu0 0.0
    %879 = vmatprep.subr.mxu0 0.0
    %880 = vmatpush2.msra.mxu0 0.0
    %881 = vmatprep.subr.mxu0 0.0
    %882 = vmatpush2.msra.mxu0 0.0
    %883 = vmatprep.subr.mxu0 0.0
    %884 = vmatpush2.msra.mxu0 0.0
    %885 = vmatprep.subr.mxu0 0.0
    %886 = vmatpush2.msra.mxu0 0.0
    %887 = vmatprep.mubr.f32.mxu0 0.0
    %888 = vmatmul.mubr.f32.gmra.mxu0 %v818
    %v889 = vpop.f32.mrf.mxu0
    %v890 = vadd.f32 %v35, %v889
    %v891 = vpop.f32.mrf.mxu0
    %892 = vmatprep.mubr.f32.mxu0 0.0
    %893 = vmatmul.mubr.f32.gmra.mxu0 %v821
    %v894 = vpop.f32.mrf.mxu0
    %v895 = vadd.f32 %v36, %v894
    %v896 = vpop.f32.mrf.mxu0
    %897 = vdwg.mxu0
    %v898 = vadd.f32 %v890, 3.0
    %v899 = vadd.f32 %v895, 3.0
    %v900 = vmax.f32 %v898, 0.0
    %v901 = vmax.f32 %v899, 0.0
    %v902 = vmin.f32 %v900, 6.0
    %v903 = vmin.f32 %v901, 6.0
    %v904 = vmul.f32 %v902, 0.16666667
    %v905 = vmul.f32 %v903, 0.16666667
    %907 = vset.pattern.permute.xlu0 0
    %908 = vperm.xlu0 %907, %v904
    %v909 = vpop.permute.xlu0 %908
    %912 = vset.pattern.permute.xlu0 0
    %913 = vperm.xlu0 %912, %v905
    %v914 = vpop.permute.xlu0 %913
    %v916 = vmul.f32 %v726, %v909
    %v917 = vmul.f32 %v727, %v909
    %v918 = vmul.f32 %v728, %v914
    %v919 = vmul.f32 %v729, %v914
    %921 = vset.pattern.permute.xlu0 0
    %922 = vperm.xlu0 %921, %v38
    %v923 = vpop.permute.xlu0 %922
    %v926 = vsel %vm76, %v37, 0
    %928 = vmatprep.subr.mxu0 0.0
    %929 = vmatpush1.msra.mxu0 0.0
    %930 = vmatprep.subr.mxu0 0.0
    %931 = vmatpush1.msra.mxu0 0.0
    %932 = vmatprep.subr.mxu0 0.0
    %933 = vmatpush1.msra.mxu0 0.0
    %934 = vmatprep.subr.mxu0 0.0
    %935 = vmatpush1.msra.mxu0 0.0
    %936 = vmatprep.subr.mxu0 0.0
    %937 = vmatpush1.msra.mxu0 0.0
    %938 = vmatprep.subr.mxu0 0.0
    %939 = vmatpush1.msra.mxu0 0.0
    %940 = vmatprep.subr.mxu0 0.0
    %941 = vmatpush1.msra.mxu0 0.0
    %942 = vmatprep.subr.mxu0 0.0
    %943 = vmatpush1.msra.mxu0 0.0
    %944 = vmatprep.subr.mxu0 0.0
    %945 = vmatpush1.msra.mxu0 0.0
    %946 = vmatprep.subr.mxu0 0.0
    %947 = vmatpush1.msra.mxu0 0.0
    %948 = vmatprep.subr.mxu0 0.0
    %949 = vmatpush1.msra.mxu0 0.0
    %950 = vmatprep.subr.mxu0 0.0
    %951 = vmatpush1.msra.mxu0 0.0
    %952 = vmatprep.subr.mxu0 0.0
    %953 = vmatpush1.msra.mxu0 0.0
    %954 = vmatprep.subr.mxu0 0.0
    %955 = vmatpush1.msra.mxu0 0.0
    %956 = vmatprep.subr.mxu0 %v919
    %957 = vmatpush1.msra.mxu0 %v918
    %958 = vmatprep.subr.mxu0 %v917
    %959 = vmatpush1.msra.mxu0 %v916
    %960 = vmatprep.subr.mxu0 0.0
    %961 = vmatpush2.msra.mxu0 0.0
    %962 = vmatprep.subr.mxu0 0.0
    %963 = vmatpush2.msra.mxu0 0.0
    %964 = vmatprep.subr.mxu0 0.0
    %965 = vmatpush2.msra.mxu0 0.0
    %966 = vmatprep.subr.mxu0 0.0
    %967 = vmatpush2.msra.mxu0 0.0
    %968 = vmatprep.subr.mxu0 0.0
    %969 = vmatpush2.msra.mxu0 0.0
    %970 = vmatprep.subr.mxu0 0.0
    %971 = vmatpush2.msra.mxu0 0.0
    %972 = vmatprep.subr.mxu0 0.0
    %973 = vmatpush2.msra.mxu0 0.0
    %974 = vmatprep.subr.mxu0 0.0
    %975 = vmatpush2.msra.mxu0 0.0
    %976 = vmatprep.subr.mxu0 0.0
    %977 = vmatpush2.msra.mxu0 0.0
    %978 = vmatprep.subr.mxu0 0.0
    %979 = vmatpush2.msra.mxu0 0.0
    %980 = vmatprep.subr.mxu0 0.0
    %981 = vmatpush2.msra.mxu0 0.0
    %982 = vmatprep.subr.mxu0 0.0
    %983 = vmatpush2.msra.mxu0 0.0
    %984 = vmatprep.subr.mxu0 0.0
    %985 = vmatpush2.msra.mxu0 0.0
    %986 = vmatprep.subr.mxu0 0.0
    %987 = vmatpush2.msra.mxu0 0.0
    %988 = vmatprep.subr.mxu0 0.0
    %989 = vmatpush2.msra.mxu0 0.0
    %990 = vmatprep.subr.mxu0 0.0
    %991 = vmatpush2.msra.mxu0 0.0
    %992 = vmatprep.mubr.f32.mxu0 0.0
    %993 = vmatmul.mubr.f32.gmra.mxu0 %v926
    %v994 = vpop.f32.mrf.mxu0
    %v995 = vadd.f32 %v923, %v994
    %v996 = vpop.f32.mrf.mxu0
    %v997 = vadd.f32 %v923, %v996
    %998 = vdwg.mxu0
    %v999 = vadd.f32 %v995, %v87
    %v1000 = vadd.f32 %v997, %v88
    %1001 = vst [vmem:[#allocation4] sm:$0xff] %v999
    %1002 = vst [vmem:[#allocation4 + $0x8] sm:$0xff] %v1000
    %s1003 = scalar_lea.vmem %s0, 16
    %v1004 = vld [vmem:[%s1003] sm:$0xff]
    %v1005 = vld [vmem:[%s1003 + $0x8] sm:$0xff]
    %1006 = vmatprep.subr.mxu0 0.0
    %1007 = vmatpush1.msra.mxu0 0.0
    %1008 = vmatprep.subr.mxu0 0.0
    %1009 = vmatpush1.msra.mxu0 0.0
    %1010 = vmatprep.subr.mxu0 0.0
    %1011 = vmatpush1.msra.mxu0 0.0
    %1012 = vmatprep.subr.mxu0 0.0
    %1013 = vmatpush1.msra.mxu0 0.0
    %1014 = vmatprep.subr.mxu0 0.0
    %1015 = vmatpush1.msra.mxu0 0.0
    %1016 = vmatprep.subr.mxu0 0.0
    %1017 = vmatpush1.msra.mxu0 0.0
    %1018 = vmatprep.subr.mxu0 0.0
    %1019 = vmatpush1.msra.mxu0 0.0
    %1020 = vmatprep.subr.mxu0 0.0
    %1021 = vmatpush1.msra.mxu0 0.0
    %1022 = vmatprep.subr.mxu0 0.0
    %1023 = vmatpush1.msra.mxu0 0.0
    %1024 = vmatprep.subr.mxu0 0.0
    %1025 = vmatpush1.msra.mxu0 0.0
    %1026 = vmatprep.subr.mxu0 0.0
    %1027 = vmatpush1.msra.mxu0 0.0
    %1028 = vmatprep.subr.mxu0 0.0
    %1029 = vmatpush1.msra.mxu0 0.0
    %1030 = vmatprep.subr.mxu0 0.0
    %1031 = vmatpush1.msra.mxu0 0.0
    %1032 = vmatprep.subr.mxu0 0.0
    %1033 = vmatpush1.msra.mxu0 0.0
    %1034 = vmatprep.subr.mxu0 0.0
    %1035 = vmatpush1.msra.mxu0 0.0
    %1036 = vmatprep.subr.mxu0 %v1005
    %1037 = vmatpush1.msra.mxu0 %v1004
    %1038 = vmatprep.subr.mxu0 0.0
    %1039 = vmatpush2.msra.mxu0 0.0
    %1040 = vmatprep.subr.mxu0 0.0
    %1041 = vmatpush2.msra.mxu0 0.0
    %1042 = vmatprep.subr.mxu0 0.0
    %1043 = vmatpush2.msra.mxu0 0.0
    %1044 = vmatprep.subr.mxu0 0.0
    %1045 = vmatpush2.msra.mxu0 0.0
    %1046 = vmatprep.subr.mxu0 0.0
    %1047 = vmatpush2.msra.mxu0 0.0
    %1048 = vmatprep.subr.mxu0 0.0
    %1049 = vmatpush2.msra.mxu0 0.0
    %1050 = vmatprep.subr.mxu0 0.0
    %1051 = vmatpush2.msra.mxu0 0.0
    %1052 = vmatprep.subr.mxu0 0.0
    %1053 = vmatpush2.msra.mxu0 0.0
    %1054 = vmatprep.subr.mxu0 0.0
    %1055 = vmatpush2.msra.mxu0 0.0
    %1056 = vmatprep.subr.mxu0 0.0
    %1057 = vmatpush2.msra.mxu0 0.0
    %1058 = vmatprep.subr.mxu0 0.0
    %1059 = vmatpush2.msra.mxu0 0.0
    %1060 = vmatprep.subr.mxu0 0.0
    %1061 = vmatpush2.msra.mxu0 0.0
    %1062 = vmatprep.subr.mxu0 0.0
    %1063 = vmatpush2.msra.mxu0 0.0
    %1064 = vmatprep.subr.mxu0 0.0
    %1065 = vmatpush2.msra.mxu0 0.0
    %1066 = vmatprep.subr.mxu0 0.0
    %1067 = vmatpush2.msra.mxu0 0.0
    %1068 = vmatprep.subr.mxu0 0.0
    %1069 = vmatpush2.msra.mxu0 0.0
    %1070 = vmatprep.mubr.f32.mxu0 0.0
    %1071 = vmatmul.mubr.f32.gmra.mxu0 %v101
    %v1072 = vpop.f32.mrf.mxu0
    %v1073 = vadd.f32 %v92, %v1072
    %v1074 = vpop.f32.mrf.mxu0
    %v1075 = vadd.f32 %v92, %v1074
    %1076 = vmatprep.mubr.f32.mxu0 0.0
    %1077 = vmatmul.mubr.f32.gmra.mxu0 %v104
    %v1078 = vpop.f32.mrf.mxu0
    %v1079 = vadd.f32 %v97, %v1078
    %v1080 = vpop.f32.mrf.mxu0
    %v1081 = vadd.f32 %v97, %v1080
    %1082 = vdwg.mxu0
    %v1083 = vadd.f32 %v1073, 3.0
    %v1084 = vadd.f32 %v1075, 3.0
    %v1085 = vadd.f32 %v1079, 3.0
    %v1086 = vadd.f32 %v1081, 3.0
    %v1087 = vmax.f32 %v1083, 0.0
    %v1088 = vmax.f32 %v1084, 0.0
    %v1089 = vmax.f32 %v1085, 0.0
    %v1090 = vmax.f32 %v1086, 0.0
    %v1091 = vmin.f32 %v1087, 6.0
    %v1092 = vmin.f32 %v1088, 6.0
    %v1093 = vmin.f32 %v1089, 6.0
    %v1094 = vmin.f32 %v1090, 6.0
    %v1095 = vmul.f32 %v1073, %v1091
    %v1096 = vmul.f32 %v1075, %v1092
    %v1097 = vmul.f32 %v1079, %v1093
    %v1098 = vmul.f32 %v1081, %v1094
    %v1099 = vmul.f32 %v1095, 0.16666667
    %v1100 = vmul.f32 %v1096, 0.16666667
    %v1101 = vmul.f32 %v1097, 0.16666667
    %v1102 = vmul.f32 %v1098, 0.16666667
    %1103 = vst [vmem:[#allocation2 + $0x8] sm:$0xff] %v1099
    %1104 = vst [vmem:[#allocation2 + $0x10] sm:$0xff] %v1100
    %1105 = vst [vmem:[#allocation2 + $0x28] sm:$0xff] %v1101
    %1106 = vst [vmem:[#allocation2 + $0x30] sm:$0xff] %v1102
    %v1107 = vld [vmem:[#allocation2] sm:$0xff]
    %v1108 = vld [vmem:[#allocation2 + $0x8] sm:$0xff]
    %v1109 = vld [vmem:[#allocation2 + $0x10] sm:$0xff]
    %v1110 = vld [vmem:[#allocation2 + $0x20] sm:$0xff]
    %v1111 = vld [vmem:[#allocation2 + $0x28] sm:$0xff]
    %v1112 = vld [vmem:[#allocation2 + $0x30] sm:$0xff]
    %v1113 = vld [vmem:[#allocation2 + $0x18] sm:$0xff]
    %v1114 = vld [vmem:[#allocation2 + $0x38] sm:$0xff]
    %v1115 = vmul.f32 %v1107, %v218
    %v1116 = vmul.f32 %v1108, %v218
    %v1117 = vmul.f32 %v1109, %v218
    %v1118 = vmul.f32 %v1110, %v223
    %v1119 = vmul.f32 %v1111, %v223
    %v1120 = vmul.f32 %v1112, %v223
    %v1121 = vmul.f32 %v1108, %v233
    %v1122 = vmul.f32 %v1109, %v233
    %v1123 = vmul.f32 %v1111, %v237
    %v1124 = vmul.f32 %v1112, %v237
    %1129 = vrot.lane.b32.xlu0 %v1121, 112
    %v1130 = vpop.permute.xlu0 %1129
    %1131 = vrot.lane.b32.xlu0 %v1122, 112
    %v1132 = vpop.permute.xlu0 %1131
    %1133 = vrot.lane.b32.xlu0 %v1123, 112
    %v1134 = vpop.permute.xlu0 %1133
    %1135 = vrot.lane.b32.xlu0 %v1124, 112
    %v1136 = vpop.permute.xlu0 %1135
    %v1137 = vsel %vm255, %v1130, %v1132
    %v1138 = vsel %vm255, %v1134, %v1136
    %v1145 = vadd.f32 %v1115, %v1130
    %v1146 = vadd.f32 %v1116, %v1137
    %v1147 = vadd.f32 %v1117, %v1132
    %v1148 = vadd.f32 %v1118, %v1134
    %v1149 = vadd.f32 %v1119, %v1138
    %v1150 = vadd.f32 %v1120, %v1136
    %v1151 = vmul.f32 %v1108, %v272
    %v1152 = vmul.f32 %v1109, %v272
    %v1153 = vmul.f32 %v1113, %v272
    %v1154 = vmul.f32 %v1111, %v276
    %v1155 = vmul.f32 %v1112, %v276
    %v1156 = vmul.f32 %v1114, %v276
    %1163 = vrot.lane.b32.xlu0 %v1151, 96
    %v1164 = vpop.permute.xlu0 %1163
    %1165 = vrot.lane.b32.xlu0 %v1152, 96
    %v1166 = vpop.permute.xlu0 %1165
    %1167 = vrot.lane.b32.xlu0 %v1153, 96
    %v1168 = vpop.permute.xlu0 %1167
    %1169 = vrot.lane.b32.xlu0 %v1154, 96
    %v1170 = vpop.permute.xlu0 %1169
    %1171 = vrot.lane.b32.xlu0 %v1155, 96
    %v1172 = vpop.permute.xlu0 %1171
    %1173 = vrot.lane.b32.xlu0 %v1156, 96
    %v1174 = vpop.permute.xlu0 %1173
    %v1175 = vsel %vm302, %v1164, %v1166
    %v1176 = vsel %vm302, %v1166, %v1168
    %v1177 = vsel %vm302, %v1170, %v1172
    %v1178 = vsel %vm302, %v1172, %v1174
    %v1185 = vadd.f32 %v1145, %v1164
    %v1186 = vadd.f32 %v1146, %v1175
    %v1187 = vadd.f32 %v1147, %v1176
    %v1188 = vadd.f32 %v1148, %v1170
    %v1189 = vadd.f32 %v1149, %v1177
    %v1190 = vadd.f32 %v1150, %v1178
    %1197 = vrot.lane.b32.xlu0 %v1185, 16
    %v1198 = vpop.permute.xlu0 %1197
    %1199 = vrot.lane.b32.xlu0 %v1186, 16
    %v1200 = vpop.permute.xlu0 %1199
    %1201 = vrot.lane.b32.xlu0 %v1187, 16
    %v1202 = vpop.permute.xlu0 %1201
    %1203 = vrot.lane.b32.xlu0 %v1188, 16
    %v1204 = vpop.permute.xlu0 %1203
    %1205 = vrot.lane.b32.xlu0 %v1189, 16
    %v1206 = vpop.permute.xlu0 %1205
    %1207 = vrot.lane.b32.xlu0 %v1190, 16
    %v1208 = vpop.permute.xlu0 %1207
    %v1209 = vsel %vm76, %v1198, %v1200
    %v1210 = vsel %vm76, %v1200, %v1202
    %v1211 = vsel %vm76, %v1204, %v1206
    %v1212 = vsel %vm76, %v1206, %v1208
    %1217 = vst [vmem:[#allocation3 + $0x8] sm:$0xff] %v1209
    %1218 = vst [vmem:[#allocation3 + $0x10] sm:$0xff] %v1210
    %1219 = vst [vmem:[#allocation3 + $0x28] sm:$0xff] %v1211
    %1220 = vst [vmem:[#allocation3 + $0x30] sm:$0xff] %v1212
    %v1221 = vld [vmem:[#allocation3] sm:$0xff]
    %v1222 = vld [vmem:[#allocation3 + $0x8] sm:$0xff]
    %v1223 = vld [vmem:[#allocation3 + $0x10] sm:$0xff]
    %v1224 = vld [vmem:[#allocation3 + $0x20] sm:$0xff]
    %v1225 = vld [vmem:[#allocation3 + $0x28] sm:$0xff]
    %v1226 = vld [vmem:[#allocation3 + $0x30] sm:$0xff]
    %1233 = vrot.lane.b32.xlu0 %v1221, 1
    %v1234 = vpop.permute.xlu0 %1233
    %1235 = vrot.lane.b32.xlu0 %v1222, 1
    %v1236 = vpop.permute.xlu0 %1235
    %1237 = vrot.lane.b32.xlu0 %v1223, 1
    %v1238 = vpop.permute.xlu0 %1237
    %1239 = vrot.lane.b32.xlu0 %v1224, 1
    %v1240 = vpop.permute.xlu0 %1239
    %1241 = vrot.lane.b32.xlu0 %v1225, 1
    %v1242 = vpop.permute.xlu0 %1241
    %1243 = vrot.lane.b32.xlu0 %v1226, 1
    %v1244 = vpop.permute.xlu0 %1243
    %v1245 = vsel %vm377, %v1234, %v1236
    %v1246 = vsel %vm377, %v1236, %v1238
    %v1247 = vsel %vm377, %v1240, %v1242
    %v1248 = vsel %vm377, %v1242, %v1244
    %v1253 = vsel %vm357, %v1245, 0.0
    %v1254 = vsel %vm358, %v1246, 0.0
    %v1255 = vsel %vm357, %v1247, 0.0
    %v1256 = vsel %vm358, %v1248, 0.0
    %v1257 = vmul.f32 %v1107, %v392
    %v1258 = vmul.f32 %v1108, %v392
    %v1259 = vmul.f32 %v1109, %v392
    %v1260 = vmul.f32 %v1110, %v396
    %v1261 = vmul.f32 %v1111, %v396
    %v1262 = vmul.f32 %v1112, %v396
    %v1263 = vmul.f32 %v1108, %v406
    %v1264 = vmul.f32 %v1109, %v406
    %v1265 = vmul.f32 %v1111, %v410
    %v1266 = vmul.f32 %v1112, %v410
    %1271 = vrot.lane.b32.xlu0 %v1263, 112
    %v1272 = vpop.permute.xlu0 %1271
    %1273 = vrot.lane.b32.xlu0 %v1264, 112
    %v1274 = vpop.permute.xlu0 %1273
    %1275 = vrot.lane.b32.xlu0 %v1265, 112
    %v1276 = vpop.permute.xlu0 %1275
    %1277 = vrot.lane.b32.xlu0 %v1266, 112
    %v1278 = vpop.permute.xlu0 %1277
    %v1279 = vsel %vm255, %v1272, %v1274
    %v1280 = vsel %vm255, %v1276, %v1278
    %v1287 = vadd.f32 %v1257, %v1272
    %v1288 = vadd.f32 %v1258, %v1279
    %v1289 = vadd.f32 %v1259, %v1274
    %v1290 = vadd.f32 %v1260, %v1276
    %v1291 = vadd.f32 %v1261, %v1280
    %v1292 = vadd.f32 %v1262, %v1278
    %v1293 = vmul.f32 %v1108, %v444
    %v1294 = vmul.f32 %v1109, %v444
    %v1295 = vmul.f32 %v1113, %v444
    %v1296 = vmul.f32 %v1111, %v448
    %v1297 = vmul.f32 %v1112, %v448
    %v1298 = vmul.f32 %v1114, %v448
    %1305 = vrot.lane.b32.xlu0 %v1293, 96
    %v1306 = vpop.permute.xlu0 %1305
    %1307 = vrot.lane.b32.xlu0 %v1294, 96
    %v1308 = vpop.permute.xlu0 %1307
    %1309 = vrot.lane.b32.xlu0 %v1295, 96
    %v1310 = vpop.permute.xlu0 %1309
    %1311 = vrot.lane.b32.xlu0 %v1296, 96
    %v1312 = vpop.permute.xlu0 %1311
    %1313 = vrot.lane.b32.xlu0 %v1297, 96
    %v1314 = vpop.permute.xlu0 %1313
    %1315 = vrot.lane.b32.xlu0 %v1298, 96
    %v1316 = vpop.permute.xlu0 %1315
    %v1317 = vsel %vm302, %v1306, %v1308
    %v1318 = vsel %vm302, %v1308, %v1310
    %v1319 = vsel %vm302, %v1312, %v1314
    %v1320 = vsel %vm302, %v1314, %v1316
    %v1327 = vadd.f32 %v1287, %v1306
    %v1328 = vadd.f32 %v1288, %v1317
    %v1329 = vadd.f32 %v1289, %v1318
    %v1330 = vadd.f32 %v1290, %v1312
    %v1331 = vadd.f32 %v1291, %v1319
    %v1332 = vadd.f32 %v1292, %v1320
    %1339 = vrot.lane.b32.xlu0 %v1327, 16
    %v1340 = vpop.permute.xlu0 %1339
    %1341 = vrot.lane.b32.xlu0 %v1328, 16
    %v1342 = vpop.permute.xlu0 %1341
    %1343 = vrot.lane.b32.xlu0 %v1329, 16
    %v1344 = vpop.permute.xlu0 %1343
    %1345 = vrot.lane.b32.xlu0 %v1330, 16
    %v1346 = vpop.permute.xlu0 %1345
    %1347 = vrot.lane.b32.xlu0 %v1331, 16
    %v1348 = vpop.permute.xlu0 %1347
    %1349 = vrot.lane.b32.xlu0 %v1332, 16
    %v1350 = vpop.permute.xlu0 %1349
    %v1351 = vsel %vm76, %v1340, %v1342
    %v1352 = vsel %vm76, %v1342, %v1344
    %v1353 = vsel %vm76, %v1346, %v1348
    %v1354 = vsel %vm76, %v1348, %v1350
    %v1359 = vadd.f32 %v1253, %v1351
    %v1360 = vadd.f32 %v1254, %v1352
    %v1361 = vadd.f32 %v1255, %v1353
    %v1362 = vadd.f32 %v1256, %v1354
    %v1363 = vmul.f32 %v1107, %v522
    %v1364 = vmul.f32 %v1108, %v522
    %v1365 = vmul.f32 %v1109, %v522
    %v1366 = vmul.f32 %v1110, %v526
    %v1367 = vmul.f32 %v1111, %v526
    %v1368 = vmul.f32 %v1112, %v526
    %v1369 = vmul.f32 %v1108, %v536
    %v1370 = vmul.f32 %v1109, %v536
    %v1371 = vmul.f32 %v1111, %v540
    %v1372 = vmul.f32 %v1112, %v540
    %1377 = vrot.lane.b32.xlu0 %v1369, 112
    %v1378 = vpop.permute.xlu0 %1377
    %1379 = vrot.lane.b32.xlu0 %v1370, 112
    %v1380 = vpop.permute.xlu0 %1379
    %1381 = vrot.lane.b32.xlu0 %v1371, 112
    %v1382 = vpop.permute.xlu0 %1381
    %1383 = vrot.lane.b32.xlu0 %v1372, 112
    %v1384 = vpop.permute.xlu0 %1383
    %v1385 = vsel %vm255, %v1378, %v1380
    %v1386 = vsel %vm255, %v1382, %v1384
    %v1393 = vadd.f32 %v1363, %v1378
    %v1394 = vadd.f32 %v1364, %v1385
    %v1395 = vadd.f32 %v1365, %v1380
    %v1396 = vadd.f32 %v1366, %v1382
    %v1397 = vadd.f32 %v1367, %v1386
    %v1398 = vadd.f32 %v1368, %v1384
    %v1399 = vmul.f32 %v1108, %v574
    %v1400 = vmul.f32 %v1109, %v574
    %v1401 = vmul.f32 %v1113, %v574
    %v1402 = vmul.f32 %v1111, %v578
    %v1403 = vmul.f32 %v1112, %v578
    %v1404 = vmul.f32 %v1114, %v578
    %1411 = vrot.lane.b32.xlu0 %v1399, 96
    %v1412 = vpop.permute.xlu0 %1411
    %1413 = vrot.lane.b32.xlu0 %v1400, 96
    %v1414 = vpop.permute.xlu0 %1413
    %1415 = vrot.lane.b32.xlu0 %v1401, 96
    %v1416 = vpop.permute.xlu0 %1415
    %1417 = vrot.lane.b32.xlu0 %v1402, 96
    %v1418 = vpop.permute.xlu0 %1417
    %1419 = vrot.lane.b32.xlu0 %v1403, 96
    %v1420 = vpop.permute.xlu0 %1419
    %1421 = vrot.lane.b32.xlu0 %v1404, 96
    %v1422 = vpop.permute.xlu0 %1421
    %v1423 = vsel %vm302, %v1412, %v1414
    %v1424 = vsel %vm302, %v1414, %v1416
    %v1425 = vsel %vm302, %v1418, %v1420
    %v1426 = vsel %vm302, %v1420, %v1422
    %v1433 = vadd.f32 %v1393, %v1412
    %v1434 = vadd.f32 %v1394, %v1423
    %v1435 = vadd.f32 %v1395, %v1424
    %v1436 = vadd.f32 %v1396, %v1418
    %v1437 = vadd.f32 %v1397, %v1425
    %v1438 = vadd.f32 %v1398, %v1426
    %1445 = vrot.lane.b32.xlu0 %v1433, 16
    %v1446 = vpop.permute.xlu0 %1445
    %1447 = vrot.lane.b32.xlu0 %v1434, 16
    %v1448 = vpop.permute.xlu0 %1447
    %1449 = vrot.lane.b32.xlu0 %v1435, 16
    %v1450 = vpop.permute.xlu0 %1449
    %1451 = vrot.lane.b32.xlu0 %v1436, 16
    %v1452 = vpop.permute.xlu0 %1451
    %1453 = vrot.lane.b32.xlu0 %v1437, 16
    %v1454 = vpop.permute.xlu0 %1453
    %1455 = vrot.lane.b32.xlu0 %v1438, 16
    %v1456 = vpop.permute.xlu0 %1455
    %v1457 = vsel %vm76, %v1446, %v1448
    %v1458 = vsel %vm76, %v1448, %v1450
    %v1459 = vsel %vm76, %v1452, %v1454
    %v1460 = vsel %vm76, %v1454, %v1456
    %1465 = vst [vmem:[%s646 + $0x8] sm:$0xff] %v1457
    %1466 = vst [vmem:[%s646 + $0x10] sm:$0xff] %v1458
    %1467 = vst [vmem:[%s646 + $0x28] sm:$0xff] %v1459
    %1468 = vst [vmem:[%s646 + $0x30] sm:$0xff] %v1460
    %v1469 = vld [vmem:[%s646 + $0x8] sm:$0xff]
    %v1470 = vld [vmem:[%s646 + $0x10] sm:$0xff]
    %v1471 = vld [vmem:[%s646 + $0x18] sm:$0xff]
    %v1472 = vld [vmem:[%s646 + $0x28] sm:$0xff]
    %v1473 = vld [vmem:[%s646 + $0x30] sm:$0xff]
    %v1474 = vld [vmem:[%s646 + $0x38] sm:$0xff]
    %1481 = vrot.lane.b32.xlu0 %v1469, 127
    %v1482 = vpop.permute.xlu0 %1481
    %1483 = vrot.lane.b32.xlu0 %v1470, 127
    %v1484 = vpop.permute.xlu0 %1483
    %1485 = vrot.lane.b32.xlu0 %v1471, 127
    %v1486 = vpop.permute.xlu0 %1485
    %1487 = vrot.lane.b32.xlu0 %v1472, 127
    %v1488 = vpop.permute.xlu0 %1487
    %1489 = vrot.lane.b32.xlu0 %v1473, 127
    %v1490 = vpop.permute.xlu0 %1489
    %1491 = vrot.lane.b32.xlu0 %v1474, 127
    %v1492 = vpop.permute.xlu0 %1491
    %v1493 = vsel %vm679, %v1482, %v1484
    %v1494 = vsel %vm679, %v1484, %v1486
    %v1495 = vsel %vm679, %v1488, %v1490
    %v1496 = vsel %vm679, %v1490, %v1492
    %v1501 = vsel %vm659, %v1493, 0.0
    %v1502 = vsel %vm660, %v1494, 0.0
    %v1503 = vsel %vm659, %v1495, 0.0
    %v1504 = vsel %vm660, %v1496, 0.0
    %v1505 = vadd.f32 %v1359, %v1501
    %v1506 = vadd.f32 %v1360, %v1502
    %v1507 = vadd.f32 %v1361, %v1503
    %v1508 = vadd.f32 %v1362, %v1504
    %v1509 = vadd.f32 %v1505, %v699
    %v1510 = vadd.f32 %v1506, %v699
    %v1511 = vadd.f32 %v1507, %v704
    %v1512 = vadd.f32 %v1508, %v704
    %v1513 = vadd.f32 %v1509, 3.0
    %v1514 = vadd.f32 %v1510, 3.0
    %v1515 = vadd.f32 %v1511, 3.0
    %v1516 = vadd.f32 %v1512, 3.0
    %v1517 = vmax.f32 %v1513, 0.0
    %v1518 = vmax.f32 %v1514, 0.0
    %v1519 = vmax.f32 %v1515, 0.0
    %v1520 = vmax.f32 %v1516, 0.0
    %v1521 = vmin.f32 %v1517, 6.0
    %v1522 = vmin.f32 %v1518, 6.0
    %v1523 = vmin.f32 %v1519, 6.0
    %v1524 = vmin.f32 %v1520, 6.0
    %v1525 = vmul.f32 %v1509, %v1521
    %v1526 = vmul.f32 %v1510, %v1522
    %v1527 = vmul.f32 %v1511, %v1523
    %v1528 = vmul.f32 %v1512, %v1524
    %v1529 = vmul.f32 %v1525, 0.16666667
    %v1530 = vmul.f32 %v1526, 0.16666667
    %v1531 = vmul.f32 %v1527, 0.16666667
    %v1532 = vmul.f32 %v1528, 0.16666667
    %v1533 = vadd.f32 %v1529, %v1530
    %1534 = vadd.xlane.f32.xlu0 %v1533
    %v1535 = vpop.xlane.xlu0 %1534
    %v1536 = vadd.f32 %v1531, %v1532
    %1537 = vadd.xlane.f32.xlu0 %v1536
    %v1538 = vpop.xlane.xlu0 %1537
    %v1539 = vmul.f32 %v1535, %v736
    %v1540 = vmul.f32 %v1538, %v736
    %1541 = vmatprep.subr.mxu0 0.0
    %1542 = vmatpush1.msra.mxu0 0.0
    %1543 = vmatprep.subr.mxu0 0.0
    %1544 = vmatpush1.msra.mxu0 0.0
    %1545 = vmatprep.subr.mxu0 0.0
    %1546 = vmatpush1.msra.mxu0 0.0
    %1547 = vmatprep.subr.mxu0 0.0
    %1548 = vmatpush1.msra.mxu0 0.0
    %1549 = vmatprep.subr.mxu0 0.0
    %1550 = vmatpush1.msra.mxu0 0.0
    %1551 = vmatprep.subr.mxu0 0.0
    %1552 = vmatpush1.msra.mxu0 0.0
    %1553 = vmatprep.subr.mxu0 0.0
    %1554 = vmatpush1.msra.mxu0 0.0
    %1555 = vmatprep.subr.mxu0 0.0
    %1556 = vmatpush1.msra.mxu0 0.0
    %1557 = vmatprep.subr.mxu0 0.0
    %1558 = vmatpush1.msra.mxu0 0.0
    %1559 = vmatprep.subr.mxu0 0.0
    %1560 = vmatpush1.msra.mxu0 0.0
    %1561 = vmatprep.subr.mxu0 0.0
    %1562 = vmatpush1.msra.mxu0 0.0
    %1563 = vmatprep.subr.mxu0 0.0
    %1564 = vmatpush1.msra.mxu0 0.0
    %1565 = vmatprep.subr.mxu0 0.0
    %1566 = vmatpush1.msra.mxu0 0.0
    %1567 = vmatprep.subr.mxu0 0.0
    %1568 = vmatpush1.msra.mxu0 0.0
    %1569 = vmatprep.subr.mxu0 0.0
    %1570 = vmatpush1.msra.mxu0 %v1540
    %1571 = vmatprep.subr.mxu0 0.0
    %1572 = vmatpush1.msra.mxu0 %v1539
    %1573 = vmatprep.subr.mxu0 0.0
    %1574 = vmatpush2.msra.mxu0 0.0
    %1575 = vmatprep.subr.mxu0 0.0
    %1576 = vmatpush2.msra.mxu0 0.0
    %1577 = vmatprep.subr.mxu0 0.0
    %1578 = vmatpush2.msra.mxu0 0.0
    %1579 = vmatprep.subr.mxu0 0.0
    %1580 = vmatpush2.msra.mxu0 0.0
    %1581 = vmatprep.subr.mxu0 0.0
    %1582 = vmatpush2.msra.mxu0 0.0
    %1583 = vmatprep.subr.mxu0 0.0
    %1584 = vmatpush2.msra.mxu0 0.0
    %1585 = vmatprep.subr.mxu0 0.0
    %1586 = vmatpush2.msra.mxu0 0.0
    %1587 = vmatprep.subr.mxu0 0.0
    %1588 = vmatpush2.msra.mxu0 0.0
    %1589 = vmatprep.subr.mxu0 0.0
    %1590 = vmatpush2.msra.mxu0 0.0
    %1591 = vmatprep.subr.mxu0 0.0
    %1592 = vmatpush2.msra.mxu0 0.0
    %1593 = vmatprep.subr.mxu0 0.0
    %1594 = vmatpush2.msra.mxu0 0.0
    %1595 = vmatprep.subr.mxu0 0.0
    %1596 = vmatpush2.msra.mxu0 0.0
    %1597 = vmatprep.subr.mxu0 0.0
    %1598 = vmatpush2.msra.mxu0 0.0
    %1599 = vmatprep.subr.mxu0 0.0
    %1600 = vmatpush2.msra.mxu0 0.0
    %1601 = vmatprep.subr.mxu0 0.0
    %1602 = vmatpush2.msra.mxu0 0.0
    %1603 = vmatprep.subr.mxu0 0.0
    %1604 = vmatpush2.msra.mxu0 0.0
    %1605 = vmatprep.mubr.f32.mxu0 0.0
    %1606 = vmatmul.mubr.f32.gmra.mxu0 %v740
    %v1607 = vpop.f32.mrf.mxu0
    %v1608 = vadd.f32 %v32, %v1607
    %v1609 = vpop.f32.mrf.mxu0
    %1610 = vdwg.mxu0
    %v1611 = vadd.f32 %v1608, 3.0
    %v1612 = vmax.f32 %v1611, 0.0
    %v1613 = vmin.f32 %v1612, 6.0
    %v1614 = vmul.f32 %v1608, %v1613
    %v1615 = vmul.f32 %v1614, 0.16666667
    %1616 = vmatprep.subr.mxu0 0.0
    %1617 = vmatpush1.msra.mxu0 0.0
    %1618 = vmatprep.subr.mxu0 0.0
    %1619 = vmatpush1.msra.mxu0 0.0
    %1620 = vmatprep.subr.mxu0 0.0
    %1621 = vmatpush1.msra.mxu0 0.0
    %1622 = vmatprep.subr.mxu0 0.0
    %1623 = vmatpush1.msra.mxu0 0.0
    %1624 = vmatprep.subr.mxu0 0.0
    %1625 = vmatpush1.msra.mxu0 0.0
    %1626 = vmatprep.subr.mxu0 0.0
    %1627 = vmatpush1.msra.mxu0 0.0
    %1628 = vmatprep.subr.mxu0 0.0
    %1629 = vmatpush1.msra.mxu0 0.0
    %1630 = vmatprep.subr.mxu0 0.0
    %1631 = vmatpush1.msra.mxu0 0.0
    %1632 = vmatprep.subr.mxu0 0.0
    %1633 = vmatpush1.msra.mxu0 0.0
    %1634 = vmatprep.subr.mxu0 0.0
    %1635 = vmatpush1.msra.mxu0 0.0
    %1636 = vmatprep.subr.mxu0 0.0
    %1637 = vmatpush1.msra.mxu0 0.0
    %1638 = vmatprep.subr.mxu0 0.0
    %1639 = vmatpush1.msra.mxu0 0.0
    %1640 = vmatprep.subr.mxu0 0.0
    %1641 = vmatpush1.msra.mxu0 0.0
    %1642 = vmatprep.subr.mxu0 0.0
    %1643 = vmatpush1.msra.mxu0 0.0
    %1644 = vmatprep.subr.mxu0 0.0
    %1645 = vmatpush1.msra.mxu0 0.0
    %1646 = vmatprep.subr.mxu0 0.0
    %1647 = vmatpush1.msra.mxu0 %v1615
    %1648 = vmatprep.subr.mxu0 0.0
    %1649 = vmatpush2.msra.mxu0 0.0
    %1650 = vmatprep.subr.mxu0 0.0
    %1651 = vmatpush2.msra.mxu0 0.0
    %1652 = vmatprep.subr.mxu0 0.0
    %1653 = vmatpush2.msra.mxu0 0.0
    %1654 = vmatprep.subr.mxu0 0.0
    %1655 = vmatpush2.msra.mxu0 0.0
    %1656 = vmatprep.subr.mxu0 0.0
    %1657 = vmatpush2.msra.mxu0 0.0
    %1658 = vmatprep.subr.mxu0 0.0
    %1659 = vmatpush2.msra.mxu0 0.0
    %1660 = vmatprep.subr.mxu0 0.0
    %1661 = vmatpush2.msra.mxu0 0.0
    %1662 = vmatprep.subr.mxu0 0.0
    %1663 = vmatpush2.msra.mxu0 0.0
    %1664 = vmatprep.subr.mxu0 0.0
    %1665 = vmatpush2.msra.mxu0 0.0
    %1666 = vmatprep.subr.mxu0 0.0
    %1667 = vmatpush2.msra.mxu0 0.0
    %1668 = vmatprep.subr.mxu0 0.0
    %1669 = vmatpush2.msra.mxu0 0.0
    %1670 = vmatprep.subr.mxu0 0.0
    %1671 = vmatpush2.msra.mxu0 0.0
    %1672 = vmatprep.subr.mxu0 0.0
    %1673 = vmatpush2.msra.mxu0 0.0
    %1674 = vmatprep.subr.mxu0 0.0
    %1675 = vmatpush2.msra.mxu0 0.0
    %1676 = vmatprep.subr.mxu0 0.0
    %1677 = vmatpush2.msra.mxu0 0.0
    %1678 = vmatprep.subr.mxu0 0.0
    %1679 = vmatpush2.msra.mxu0 0.0
    %1680 = vmatprep.mubr.f32.mxu0 0.0
    %1681 = vmatmul.mubr.f32.gmra.mxu0 %v818
    %v1682 = vpop.f32.mrf.mxu0
    %v1683 = vadd.f32 %v35, %v1682
    %v1684 = vpop.f32.mrf.mxu0
    %1685 = vmatprep.mubr.f32.mxu0 0.0
    %1686 = vmatmul.mubr.f32.gmra.mxu0 %v821
    %v1687 = vpop.f32.mrf.mxu0
    %v1688 = vadd.f32 %v36, %v1687
    %v1689 = vpop.f32.mrf.mxu0
    %1690 = vdwg.mxu0
    %v1691 = vadd.f32 %v1683, 3.0
    %v1692 = vadd.f32 %v1688, 3.0
    %v1693 = vmax.f32 %v1691, 0.0
    %v1694 = vmax.f32 %v1692, 0.0
    %v1695 = vmin.f32 %v1693, 6.0
    %v1696 = vmin.f32 %v1694, 6.0
    %v1697 = vmul.f32 %v1695, 0.16666667
    %v1698 = vmul.f32 %v1696, 0.16666667
    %1700 = vset.pattern.permute.xlu0 0
    %1701 = vperm.xlu0 %1700, %v1697
    %v1702 = vpop.permute.xlu0 %1701
    %1705 = vset.pattern.permute.xlu0 0
    %1706 = vperm.xlu0 %1705, %v1698
    %v1707 = vpop.permute.xlu0 %1706
    %v1709 = vmul.f32 %v1529, %v1702
    %v1710 = vmul.f32 %v1530, %v1702
    %v1711 = vmul.f32 %v1531, %v1707
    %v1712 = vmul.f32 %v1532, %v1707
    %1713 = vmatprep.subr.mxu0 0.0
    %1714 = vmatpush1.msra.mxu0 0.0
    %1715 = vmatprep.subr.mxu0 0.0
    %1716 = vmatpush1.msra.mxu0 0.0
    %1717 = vmatprep.subr.mxu0 0.0
    %1718 = vmatpush1.msra.mxu0 0.0
    %1719 = vmatprep.subr.mxu0 0.0
    %1720 = vmatpush1.msra.mxu0 0.0
    %1721 = vmatprep.subr.mxu0 0.0
    %1722 = vmatpush1.msra.mxu0 0.0
    %1723 = vmatprep.subr.mxu0 0.0
    %1724 = vmatpush1.msra.mxu0 0.0
    %1725 = vmatprep.subr.mxu0 0.0
    %1726 = vmatpush1.msra.mxu0 0.0
    %1727 = vmatprep.subr.mxu0 0.0
    %1728 = vmatpush1.msra.mxu0 0.0
    %1729 = vmatprep.subr.mxu0 0.0
    %1730 = vmatpush1.msra.mxu0 0.0
    %1731 = vmatprep.subr.mxu0 0.0
    %1732 = vmatpush1.msra.mxu0 0.0
    %1733 = vmatprep.subr.mxu0 0.0
    %1734 = vmatpush1.msra.mxu0 0.0
    %1735 = vmatprep.subr.mxu0 0.0
    %1736 = vmatpush1.msra.mxu0 0.0
    %1737 = vmatprep.subr.mxu0 0.0
    %1738 = vmatpush1.msra.mxu0 0.0
    %1739 = vmatprep.subr.mxu0 0.0
    %1740 = vmatpush1.msra.mxu0 0.0
    %1741 = vmatprep.subr.mxu0 %v1712
    %1742 = vmatpush1.msra.mxu0 %v1711
    %1743 = vmatprep.subr.mxu0 %v1710
    %1744 = vmatpush1.msra.mxu0 %v1709
    %1745 = vmatprep.subr.mxu0 0.0
    %1746 = vmatpush2.msra.mxu0 0.0
    %1747 = vmatprep.subr.mxu0 0.0
    %1748 = vmatpush2.msra.mxu0 0.0
    %1749 = vmatprep.subr.mxu0 0.0
    %1750 = vmatpush2.msra.mxu0 0.0
    %1751 = vmatprep.subr.mxu0 0.0
    %1752 = vmatpush2.msra.mxu0 0.0
    %1753 = vmatprep.subr.mxu0 0.0
    %1754 = vmatpush2.msra.mxu0 0.0
    %1755 = vmatprep.subr.mxu0 0.0
    %1756 = vmatpush2.msra.mxu0 0.0
    %1757 = vmatprep.subr.mxu0 0.0
    %1758 = vmatpush2.msra.mxu0 0.0
    %1759 = vmatprep.subr.mxu0 0.0
    %1760 = vmatpush2.msra.mxu0 0.0
    %1761 = vmatprep.subr.mxu0 0.0
    %1762 = vmatpush2.msra.mxu0 0.0
    %1763 = vmatprep.subr.mxu0 0.0
    %1764 = vmatpush2.msra.mxu0 0.0
    %1765 = vmatprep.subr.mxu0 0.0
    %1766 = vmatpush2.msra.mxu0 0.0
    %1767 = vmatprep.subr.mxu0 0.0
    %1768 = vmatpush2.msra.mxu0 0.0
    %1769 = vmatprep.subr.mxu0 0.0
    %1770 = vmatpush2.msra.mxu0 0.0
    %1771 = vmatprep.subr.mxu0 0.0
    %1772 = vmatpush2.msra.mxu0 0.0
    %1773 = vmatprep.subr.mxu0 0.0
    %1774 = vmatpush2.msra.mxu0 0.0
    %1775 = vmatprep.subr.mxu0 0.0
    %1776 = vmatpush2.msra.mxu0 0.0
    %1777 = vmatprep.mubr.f32.mxu0 0.0
    %1778 = vmatmul.mubr.f32.gmra.mxu0 %v926
    %v1779 = vpop.f32.mrf.mxu0
    %v1780 = vadd.f32 %v923, %v1779
    %v1781 = vpop.f32.mrf.mxu0
    %v1782 = vadd.f32 %v923, %v1781
    %1783 = vdwg.mxu0
    %v1784 = vadd.f32 %v1780, %v1004
    %v1785 = vadd.f32 %v1782, %v1005
    %s1786 = scalar_lea.vmem [#allocation4], 16
    %1787 = vst [vmem:[%s1786] sm:$0xff] %v1784
    %1788 = vst [vmem:[%s1786 + $0x8] sm:$0xff] %v1785
    %s1789 = scalar_lea.vmem %s0, 32
    %v1790 = vld [vmem:[%s1789] sm:$0xff]
    %v1791 = vld [vmem:[%s1789 + $0x8] sm:$0xff]
    %1792 = vmatprep.subr.mxu0 0.0
    %1793 = vmatpush1.msra.mxu0 0.0
    %1794 = vmatprep.subr.mxu0 0.0
    %1795 = vmatpush1.msra.mxu0 0.0
    %1796 = vmatprep.subr.mxu0 0.0
    %1797 = vmatpush1.msra.mxu0 0.0
    %1798 = vmatprep.subr.mxu0 0.0
    %1799 = vmatpush1.msra.mxu0 0.0
    %1800 = vmatprep.subr.mxu0 0.0
    %1801 = vmatpush1.msra.mxu0 0.0
    %1802 = vmatprep.subr.mxu0 0.0
    %1803 = vmatpush1.msra.mxu0 0.0
    %1804 = vmatprep.subr.mxu0 0.0
    %1805 = vmatpush1.msra.mxu0 0.0
    %1806 = vmatprep.subr.mxu0 0.0
    %1807 = vmatpush1.msra.mxu0 0.0
    %1808 = vmatprep.subr.mxu0 0.0
    %1809 = vmatpush1.msra.mxu0 0.0
    %1810 = vmatprep.subr.mxu0 0.0
    %1811 = vmatpush1.msra.mxu0 0.0
    %1812 = vmatprep.subr.mxu0 0.0
    %1813 = vmatpush1.msra.mxu0 0.0
    %1814 = vmatprep.subr.mxu0 0.0
    %1815 = vmatpush1.msra.mxu0 0.0
    %1816 = vmatprep.subr.mxu0 0.0
    %1817 = vmatpush1.msra.mxu0 0.0
    %1818 = vmatprep.subr.mxu0 0.0
    %1819 = vmatpush1.msra.mxu0 0.0
    %1820 = vmatprep.subr.mxu0 0.0
    %1821 = vmatpush1.msra.mxu0 0.0
    %1822 = vmatprep.subr.mxu0 %v1791
    %1823 = vmatpush1.msra.mxu0 %v1790
    %1824 = vmatprep.subr.mxu0 0.0
    %1825 = vmatpush2.msra.mxu0 0.0
    %1826 = vmatprep.subr.mxu0 0.0
    %1827 = vmatpush2.msra.mxu0 0.0
    %1828 = vmatprep.subr.mxu0 0.0
    %1829 = vmatpush2.msra.mxu0 0.0
    %1830 = vmatprep.subr.mxu0 0.0
    %1831 = vmatpush2.msra.mxu0 0.0
    %1832 = vmatprep.subr.mxu0 0.0
    %1833 = vmatpush2.msra.mxu0 0.0
    %1834 = vmatprep.subr.mxu0 0.0
    %1835 = vmatpush2.msra.mxu0 0.0
    %1836 = vmatprep.subr.mxu0 0.0
    %1837 = vmatpush2.msra.mxu0 0.0
    %1838 = vmatprep.subr.mxu0 0.0
    %1839 = vmatpush2.msra.mxu0 0.0
    %1840 = vmatprep.subr.mxu0 0.0
    %1841 = vmatpush2.msra.mxu0 0.0
    %1842 = vmatprep.subr.mxu0 0.0
    %1843 = vmatpush2.msra.mxu0 0.0
    %1844 = vmatprep.subr.mxu0 0.0
    %1845 = vmatpush2.msra.mxu0 0.0
    %1846 = vmatprep.subr.mxu0 0.0
    %1847 = vmatpush2.msra.mxu0 0.0
    %1848 = vmatprep.subr.mxu0 0.0
    %1849 = vmatpush2.msra.mxu0 0.0
    %1850 = vmatprep.subr.mxu0 0.0
    %1851 = vmatpush2.msra.mxu0 0.0
    %1852 = vmatprep.subr.mxu0 0.0
    %1853 = vmatpush2.msra.mxu0 0.0
    %1854 = vmatprep.subr.mxu0 0.0
    %1855 = vmatpush2.msra.mxu0 0.0
    %1856 = vmatprep.mubr.f32.mxu0 0.0
    %1857 = vmatmul.mubr.f32.gmra.mxu0 %v101
    %v1858 = vpop.f32.mrf.mxu0
    %v1859 = vadd.f32 %v92, %v1858
    %v1860 = vpop.f32.mrf.mxu0
    %v1861 = vadd.f32 %v92, %v1860
    %1862 = vmatprep.mubr.f32.mxu0 0.0
    %1863 = vmatmul.mubr.f32.gmra.mxu0 %v104
    %v1864 = vpop.f32.mrf.mxu0
    %v1865 = vadd.f32 %v97, %v1864
    %v1866 = vpop.f32.mrf.mxu0
    %v1867 = vadd.f32 %v97, %v1866
    %1868 = vdwg.mxu0
    %v1869 = vadd.f32 %v1859, 3.0
    %v1870 = vadd.f32 %v1861, 3.0
    %v1871 = vadd.f32 %v1865, 3.0
    %v1872 = vadd.f32 %v1867, 3.0
    %v1873 = vmax.f32 %v1869, 0.0
    %v1874 = vmax.f32 %v1870, 0.0
    %v1875 = vmax.f32 %v1871, 0.0
    %v1876 = vmax.f32 %v1872, 0.0
    %v1877 = vmin.f32 %v1873, 6.0
    %v1878 = vmin.f32 %v1874, 6.0
    %v1879 = vmin.f32 %v1875, 6.0
    %v1880 = vmin.f32 %v1876, 6.0
    %v1881 = vmul.f32 %v1859, %v1877
    %v1882 = vmul.f32 %v1861, %v1878
    %v1883 = vmul.f32 %v1865, %v1879
    %v1884 = vmul.f32 %v1867, %v1880
    %v1885 = vmul.f32 %v1881, 0.16666667
    %v1886 = vmul.f32 %v1882, 0.16666667
    %v1887 = vmul.f32 %v1883, 0.16666667
    %v1888 = vmul.f32 %v1884, 0.16666667
    %1889 = vst [vmem:[#allocation2 + $0x8] sm:$0xff] %v1885
    %1890 = vst [vmem:[#allocation2 + $0x10] sm:$0xff] %v1886
    %1891 = vst [vmem:[#allocation2 + $0x28] sm:$0xff] %v1887
    %1892 = vst [vmem:[#allocation2 + $0x30] sm:$0xff] %v1888
    %v1893 = vld [vmem:[#allocation2] sm:$0xff]
    %v1894 = vld [vmem:[#allocation2 + $0x8] sm:$0xff]
    %v1895 = vld [vmem:[#allocation2 + $0x10] sm:$0xff]
    %v1896 = vld [vmem:[#allocation2 + $0x20] sm:$0xff]
    %v1897 = vld [vmem:[#allocation2 + $0x28] sm:$0xff]
    %v1898 = vld [vmem:[#allocation2 + $0x30] sm:$0xff]
    %v1899 = vld [vmem:[#allocation2 + $0x18] sm:$0xff]
    %v1900 = vld [vmem:[#allocation2 + $0x38] sm:$0xff]
    %v1901 = vmul.f32 %v1893, %v218
    %v1902 = vmul.f32 %v1894, %v218
    %v1903 = vmul.f32 %v1895, %v218
    %v1904 = vmul.f32 %v1896, %v223
    %v1905 = vmul.f32 %v1897, %v223
    %v1906 = vmul.f32 %v1898, %v223
    %v1907 = vmul.f32 %v1894, %v233
    %v1908 = vmul.f32 %v1895, %v233
    %v1909 = vmul.f32 %v1897, %v237
    %v1910 = vmul.f32 %v1898, %v237
    %1915 = vrot.lane.b32.xlu0 %v1907, 112
    %v1916 = vpop.permute.xlu0 %1915
    %1917 = vrot.lane.b32.xlu0 %v1908, 112
    %v1918 = vpop.permute.xlu0 %1917
    %1919 = vrot.lane.b32.xlu0 %v1909, 112
    %v1920 = vpop.permute.xlu0 %1919
    %1921 = vrot.lane.b32.xlu0 %v1910, 112
    %v1922 = vpop.permute.xlu0 %1921
    %v1923 = vsel %vm255, %v1916, %v1918
    %v1924 = vsel %vm255, %v1920, %v1922
    %v1931 = vadd.f32 %v1901, %v1916
    %v1932 = vadd.f32 %v1902, %v1923
    %v1933 = vadd.f32 %v1903, %v1918
    %v1934 = vadd.f32 %v1904, %v1920
    %v1935 = vadd.f32 %v1905, %v1924
    %v1936 = vadd.f32 %v1906, %v1922
    %v1937 = vmul.f32 %v1894, %v272
    %v1938 = vmul.f32 %v1895, %v272
    %v1939 = vmul.f32 %v1899, %v272
    %v1940 = vmul.f32 %v1897, %v276
    %v1941 = vmul.f32 %v1898, %v276
    %v1942 = vmul.f32 %v1900, %v276
    %1949 = vrot.lane.b32.xlu0 %v1937, 96
    %v1950 = vpop.permute.xlu0 %1949
    %1951 = vrot.lane.b32.xlu0 %v1938, 96
    %v1952 = vpop.permute.xlu0 %1951
    %1953 = vrot.lane.b32.xlu0 %v1939, 96
    %v1954 = vpop.permute.xlu0 %1953
    %1955 = vrot.lane.b32.xlu0 %v1940, 96
    %v1956 = vpop.permute.xlu0 %1955
    %1957 = vrot.lane.b32.xlu0 %v1941, 96
    %v1958 = vpop.permute.xlu0 %1957
    %1959 = vrot.lane.b32.xlu0 %v1942, 96
    %v1960 = vpop.permute.xlu0 %1959
    %v1961 = vsel %vm302, %v1950, %v1952
    %v1962 = vsel %vm302, %v1952, %v1954
    %v1963 = vsel %vm302, %v1956, %v1958
    %v1964 = vsel %vm302, %v1958, %v1960
    %v1971 = vadd.f32 %v1931, %v1950
    %v1972 = vadd.f32 %v1932, %v1961
    %v1973 = vadd.f32 %v1933, %v1962
    %v1974 = vadd.f32 %v1934, %v1956
    %v1975 = vadd.f32 %v1935, %v1963
    %v1976 = vadd.f32 %v1936, %v1964
    %1983 = vrot.lane.b32.xlu0 %v1971, 16
    %v1984 = vpop.permute.xlu0 %1983
    %1985 = vrot.lane.b32.xlu0 %v1972, 16
    %v1986 = vpop.permute.xlu0 %1985
    %1987 = vrot.lane.b32.xlu0 %v1973, 16
    %v1988 = vpop.permute.xlu0 %1987
    %1989 = vrot.lane.b32.xlu0 %v1974, 16
    %v1990 = vpop.permute.xlu0 %1989
    %1991 = vrot.lane.b32.xlu0 %v1975, 16
    %v1992 = vpop.permute.xlu0 %1991
    %1993 = vrot.lane.b32.xlu0 %v1976, 16
    %v1994 = vpop.permute.xlu0 %1993
    %v1995 = vsel %vm76, %v1984, %v1986
    %v1996 = vsel %vm76, %v1986, %v1988
    %v1997 = vsel %vm76, %v1990, %v1992
    %v1998 = vsel %vm76, %v1992, %v1994
    %2003 = vst [vmem:[#allocation3 + $0x8] sm:$0xff] %v1995
    %2004 = vst [vmem:[#allocation3 + $0x10] sm:$0xff] %v1996
    %2005 = vst [vmem:[#allocation3 + $0x28] sm:$0xff] %v1997
    %2006 = vst [vmem:[#allocation3 + $0x30] sm:$0xff] %v1998
    %v2007 = vld [vmem:[#allocation3] sm:$0xff]
    %v2008 = vld [vmem:[#allocation3 + $0x8] sm:$0xff]
    %v2009 = vld [vmem:[#allocation3 + $0x10] sm:$0xff]
    %v2010 = vld [vmem:[#allocation3 + $0x20] sm:$0xff]
    %v2011 = vld [vmem:[#allocation3 + $0x28] sm:$0xff]
    %v2012 = vld [vmem:[#allocation3 + $0x30] sm:$0xff]
    %2019 = vrot.lane.b32.xlu0 %v2007, 1
    %v2020 = vpop.permute.xlu0 %2019
    %2021 = vrot.lane.b32.xlu0 %v2008, 1
    %v2022 = vpop.permute.xlu0 %2021
    %2023 = vrot.lane.b32.xlu0 %v2009, 1
    %v2024 = vpop.permute.xlu0 %2023
    %2025 = vrot.lane.b32.xlu0 %v2010, 1
    %v2026 = vpop.permute.xlu0 %2025
    %2027 = vrot.lane.b32.xlu0 %v2011, 1
    %v2028 = vpop.permute.xlu0 %2027
    %2029 = vrot.lane.b32.xlu0 %v2012, 1
    %v2030 = vpop.permute.xlu0 %2029
    %v2031 = vsel %vm377, %v2020, %v2022
    %v2032 = vsel %vm377, %v2022, %v2024
    %v2033 = vsel %vm377, %v2026, %v2028
    %v2034 = vsel %vm377, %v2028, %v2030
    %v2039 = vsel %vm357, %v2031, 0.0
    %v2040 = vsel %vm358, %v2032, 0.0
    %v2041 = vsel %vm357, %v2033, 0.0
    %v2042 = vsel %vm358, %v2034, 0.0
    %v2043 = vmul.f32 %v1893, %v392
    %v2044 = vmul.f32 %v1894, %v392
    %v2045 = vmul.f32 %v1895, %v392
    %v2046 = vmul.f32 %v1896, %v396
    %v2047 = vmul.f32 %v1897, %v396
    %v2048 = vmul.f32 %v1898, %v396
    %v2049 = vmul.f32 %v1894, %v406
    %v2050 = vmul.f32 %v1895, %v406
    %v2051 = vmul.f32 %v1897, %v410
    %v2052 = vmul.f32 %v1898, %v410
    %2057 = vrot.lane.b32.xlu0 %v2049, 112
    %v2058 = vpop.permute.xlu0 %2057
    %2059 = vrot.lane.b32.xlu0 %v2050, 112
    %v2060 = vpop.permute.xlu0 %2059
    %2061 = vrot.lane.b32.xlu0 %v2051, 112
    %v2062 = vpop.permute.xlu0 %2061
    %2063 = vrot.lane.b32.xlu0 %v2052, 112
    %v2064 = vpop.permute.xlu0 %2063
    %v2065 = vsel %vm255, %v2058, %v2060
    %v2066 = vsel %vm255, %v2062, %v2064
    %v2073 = vadd.f32 %v2043, %v2058
    %v2074 = vadd.f32 %v2044, %v2065
    %v2075 = vadd.f32 %v2045, %v2060
    %v2076 = vadd.f32 %v2046, %v2062
    %v2077 = vadd.f32 %v2047, %v2066
    %v2078 = vadd.f32 %v2048, %v2064
    %v2079 = vmul.f32 %v1894, %v444
    %v2080 = vmul.f32 %v1895, %v444
    %v2081 = vmul.f32 %v1899, %v444
    %v2082 = vmul.f32 %v1897, %v448
    %v2083 = vmul.f32 %v1898, %v448
    %v2084 = vmul.f32 %v1900, %v448
    %2091 = vrot.lane.b32.xlu0 %v2079, 96
    %v2092 = vpop.permute.xlu0 %2091
    %2093 = vrot.lane.b32.xlu0 %v2080, 96
    %v2094 = vpop.permute.xlu0 %2093
    %2095 = vrot.lane.b32.xlu0 %v2081, 96
    %v2096 = vpop.permute.xlu0 %2095
    %2097 = vrot.lane.b32.xlu0 %v2082, 96
    %v2098 = vpop.permute.xlu0 %2097
    %2099 = vrot.lane.b32.xlu0 %v2083, 96
    %v2100 = vpop.permute.xlu0 %2099
    %2101 = vrot.lane.b32.xlu0 %v2084, 96
    %v2102 = vpop.permute.xlu0 %2101
    %v2103 = vsel %vm302, %v2092, %v2094
    %v2104 = vsel %vm302, %v2094, %v2096
    %v2105 = vsel %vm302, %v2098, %v2100
    %v2106 = vsel %vm302, %v2100, %v2102
    %v2113 = vadd.f32 %v2073, %v2092
    %v2114 = vadd.f32 %v2074, %v2103
    %v2115 = vadd.f32 %v2075, %v2104
    %v2116 = vadd.f32 %v2076, %v2098
    %v2117 = vadd.f32 %v2077, %v2105
    %v2118 = vadd.f32 %v2078, %v2106
    %2125 = vrot.lane.b32.xlu0 %v2113, 16
    %v2126 = vpop.permute.xlu0 %2125
    %2127 = vrot.lane.b32.xlu0 %v2114, 16
    %v2128 = vpop.permute.xlu0 %2127
    %2129 = vrot.lane.b32.xlu0 %v2115, 16
    %v2130 = vpop.permute.xlu0 %2129
    %2131 = vrot.lane.b32.xlu0 %v2116, 16
    %v2132 = vpop.permute.xlu0 %2131
    %2133 = vrot.lane.b32.xlu0 %v2117, 16
    %v2134 = vpop.permute.xlu0 %2133
    %2135 = vrot.lane.b32.xlu0 %v2118, 16
    %v2136 = vpop.permute.xlu0 %2135
    %v2137 = vsel %vm76, %v2126, %v2128
    %v2138 = vsel %vm76, %v2128, %v2130
    %v2139 = vsel %vm76, %v2132, %v2134
    %v2140 = vsel %vm76, %v2134, %v2136
    %v2145 = vadd.f32 %v2039, %v2137
    %v2146 = vadd.f32 %v2040, %v2138
    %v2147 = vadd.f32 %v2041, %v2139
    %v2148 = vadd.f32 %v2042, %v2140
    %v2149 = vmul.f32 %v1893, %v522
    %v2150 = vmul.f32 %v1894, %v522
    %v2151 = vmul.f32 %v1895, %v522
    %v2152 = vmul.f32 %v1896, %v526
    %v2153 = vmul.f32 %v1897, %v526
    %v2154 = vmul.f32 %v1898, %v526
    %v2155 = vmul.f32 %v1894, %v536
    %v2156 = vmul.f32 %v1895, %v536
    %v2157 = vmul.f32 %v1897, %v540
    %v2158 = vmul.f32 %v1898, %v540
    %2163 = vrot.lane.b32.xlu0 %v2155, 112
    %v2164 = vpop.permute.xlu0 %2163
    %2165 = vrot.lane.b32.xlu0 %v2156, 112
    %v2166 = vpop.permute.xlu0 %2165
    %2167 = vrot.lane.b32.xlu0 %v2157, 112
    %v2168 = vpop.permute.xlu0 %2167
    %2169 = vrot.lane.b32.xlu0 %v2158, 112
    %v2170 = vpop.permute.xlu0 %2169
    %v2171 = vsel %vm255, %v2164, %v2166
    %v2172 = vsel %vm255, %v2168, %v2170
    %v2179 = vadd.f32 %v2149, %v2164
    %v2180 = vadd.f32 %v2150, %v2171
    %v2181 = vadd.f32 %v2151, %v2166
    %v2182 = vadd.f32 %v2152, %v2168
    %v2183 = vadd.f32 %v2153, %v2172
    %v2184 = vadd.f32 %v2154, %v2170
    %v2185 = vmul.f32 %v1894, %v574
    %v2186 = vmul.f32 %v1895, %v574
    %v2187 = vmul.f32 %v1899, %v574
    %v2188 = vmul.f32 %v1897, %v578
    %v2189 = vmul.f32 %v1898, %v578
    %v2190 = vmul.f32 %v1900, %v578
    %2197 = vrot.lane.b32.xlu0 %v2185, 96
    %v2198 = vpop.permute.xlu0 %2197
    %2199 = vrot.lane.b32.xlu0 %v2186, 96
    %v2200 = vpop.permute.xlu0 %2199
    %2201 = vrot.lane.b32.xlu0 %v2187, 96
    %v2202 = vpop.permute.xlu0 %2201
    %2203 = vrot.lane.b32.xlu0 %v2188, 96
    %v2204 = vpop.permute.xlu0 %2203
    %2205 = vrot.lane.b32.xlu0 %v2189, 96
    %v2206 = vpop.permute.xlu0 %2205
    %2207 = vrot.lane.b32.xlu0 %v2190, 96
    %v2208 = vpop.permute.xlu0 %2207
    %v2209 = vsel %vm302, %v2198, %v2200
    %v2210 = vsel %vm302, %v2200, %v2202
    %v2211 = vsel %vm302, %v2204, %v2206
    %v2212 = vsel %vm302, %v2206, %v2208
    %v2219 = vadd.f32 %v2179, %v2198
    %v2220 = vadd.f32 %v2180, %v2209
    %v2221 = vadd.f32 %v2181, %v2210
    %v2222 = vadd.f32 %v2182, %v2204
    %v2223 = vadd.f32 %v2183, %v2211
    %v2224 = vadd.f32 %v2184, %v2212
    %2231 = vrot.lane.b32.xlu0 %v2219, 16
    %v2232 = vpop.permute.xlu0 %2231
    %2233 = vrot.lane.b32.xlu0 %v2220, 16
    %v2234 = vpop.permute.xlu0 %2233
    %2235 = vrot.lane.b32.xlu0 %v2221, 16
    %v2236 = vpop.permute.xlu0 %2235
    %2237 = vrot.lane.b32.xlu0 %v2222, 16
    %v2238 = vpop.permute.xlu0 %2237
    %2239 = vrot.lane.b32.xlu0 %v2223, 16
    %v2240 = vpop.permute.xlu0 %2239
    %2241 = vrot.lane.b32.xlu0 %v2224, 16
    %v2242 = vpop.permute.xlu0 %2241
    %v2243 = vsel %vm76, %v2232, %v2234
    %v2244 = vsel %vm76, %v2234, %v2236
    %v2245 = vsel %vm76, %v2238, %v2240
    %v2246 = vsel %vm76, %v2240, %v2242
    %2251 = vst [vmem:[%s646 + $0x8] sm:$0xff] %v2243
    %2252 = vst [vmem:[%s646 + $0x10] sm:$0xff] %v2244
    %2253 = vst [vmem:[%s646 + $0x28] sm:$0xff] %v2245
    %2254 = vst [vmem:[%s646 + $0x30] sm:$0xff] %v2246
    %v2255 = vld [vmem:[%s646 + $0x8] sm:$0xff]
    %v2256 = vld [vmem:[%s646 + $0x10] sm:$0xff]
    %v2257 = vld [vmem:[%s646 + $0x18] sm:$0xff]
    %v2258 = vld [vmem:[%s646 + $0x28] sm:$0xff]
    %v2259 = vld [vmem:[%s646 + $0x30] sm:$0xff]
    %v2260 = vld [vmem:[%s646 + $0x38] sm:$0xff]
    %2267 = vrot.lane.b32.xlu0 %v2255, 127
    %v2268 = vpop.permute.xlu0 %2267
    %2269 = vrot.lane.b32.xlu0 %v2256, 127
    %v2270 = vpop.permute.xlu0 %2269
    %2271 = vrot.lane.b32.xlu0 %v2257, 127
    %v2272 = vpop.permute.xlu0 %2271
    %2273 = vrot.lane.b32.xlu0 %v2258, 127
    %v2274 = vpop.permute.xlu0 %2273
    %2275 = vrot.lane.b32.xlu0 %v2259, 127
    %v2276 = vpop.permute.xlu0 %2275
    %2277 = vrot.lane.b32.xlu0 %v2260, 127
    %v2278 = vpop.permute.xlu0 %2277
    %v2279 = vsel %vm679, %v2268, %v2270
    %v2280 = vsel %vm679, %v2270, %v2272
    %v2281 = vsel %vm679, %v2274, %v2276
    %v2282 = vsel %vm679, %v2276, %v2278
    %v2287 = vsel %vm659, %v2279, 0.0
    %v2288 = vsel %vm660, %v2280, 0.0
    %v2289 = vsel %vm659, %v2281, 0.0
    %v2290 = vsel %vm660, %v2282, 0.0
    %v2291 = vadd.f32 %v2145, %v2287
    %v2292 = vadd.f32 %v2146, %v2288
    %v2293 = vadd.f32 %v2147, %v2289
    %v2294 = vadd.f32 %v2148, %v2290
    %v2295 = vadd.f32 %v2291, %v699
    %v2296 = vadd.f32 %v2292, %v699
    %v2297 = vadd.f32 %v2293, %v704
    %v2298 = vadd.f32 %v2294, %v704
    %v2299 = vadd.f32 %v2295, 3.0
    %v2300 = vadd.f32 %v2296, 3.0
    %v2301 = vadd.f32 %v2297, 3.0
    %v2302 = vadd.f32 %v2298, 3.0
    %v2303 = vmax.f32 %v2299, 0.0
    %v2304 = vmax.f32 %v2300, 0.0
    %v2305 = vmax.f32 %v2301, 0.0
    %v2306 = vmax.f32 %v2302, 0.0
    %v2307 = vmin.f32 %v2303, 6.0
    %v2308 = vmin.f32 %v2304, 6.0
    %v2309 = vmin.f32 %v2305, 6.0
    %v2310 = vmin.f32 %v2306, 6.0
    %v2311 = vmul.f32 %v2295, %v2307
    %v2312 = vmul.f32 %v2296, %v2308
    %v2313 = vmul.f32 %v2297, %v2309
    %v2314 = vmul.f32 %v2298, %v2310
    %v2315 = vmul.f32 %v2311, 0.16666667
    %v2316 = vmul.f32 %v2312, 0.16666667
    %v2317 = vmul.f32 %v2313, 0.16666667
    %v2318 = vmul.f32 %v2314, 0.16666667
    %v2319 = vadd.f32 %v2315, %v2316
    %2320 = vadd.xlane.f32.xlu0 %v2319
    %v2321 = vpop.xlane.xlu0 %2320
    %v2322 = vadd.f32 %v2317, %v2318
    %2323 = vadd.xlane.f32.xlu0 %v2322
    %v2324 = vpop.xlane.xlu0 %2323
    %v2325 = vmul.f32 %v2321, %v736
    %v2326 = vmul.f32 %v2324, %v736
    %2327 = vmatprep.subr.mxu0 0.0
    %2328 = vmatpush1.msra.mxu0 0.0
    %2329 = vmatprep.subr.mxu0 0.0
    %2330 = vmatpush1.msra.mxu0 0.0
    %2331 = vmatprep.subr.mxu0 0.0
    %2332 = vmatpush1.msra.mxu0 0.0
    %2333 = vmatprep.subr.mxu0 0.0
    %2334 = vmatpush1.msra.mxu0 0.0
    %2335 = vmatprep.subr.mxu0 0.0
    %2336 = vmatpush1.msra.mxu0 0.0
    %2337 = vmatprep.subr.mxu0 0.0
    %2338 = vmatpush1.msra.mxu0 0.0
    %2339 = vmatprep.subr.mxu0 0.0
    %2340 = vmatpush1.msra.mxu0 0.0
    %2341 = vmatprep.subr.mxu0 0.0
    %2342 = vmatpush1.msra.mxu0 0.0
    %2343 = vmatprep.subr.mxu0 0.0
    %2344 = vmatpush1.msra.mxu0 0.0
    %2345 = vmatprep.subr.mxu0 0.0
    %2346 = vmatpush1.msra.mxu0 0.0
    %2347 = vmatprep.subr.mxu0 0.0
    %2348 = vmatpush1.msra.mxu0 0.0
    %2349 = vmatprep.subr.mxu0 0.0
    %2350 = vmatpush1.msra.mxu0 0.0
    %2351 = vmatprep.subr.mxu0 0.0
    %2352 = vmatpush1.msra.mxu0 0.0
    %2353 = vmatprep.subr.mxu0 0.0
    %2354 = vmatpush1.msra.mxu0 0.0
    %2355 = vmatprep.subr.mxu0 0.0
    %2356 = vmatpush1.msra.mxu0 %v2326
    %2357 = vmatprep.subr.mxu0 0.0
    %2358 = vmatpush1.msra.mxu0 %v2325
    %2359 = vmatprep.subr.mxu0 0.0
    %2360 = vmatpush2.msra.mxu0 0.0
    %2361 = vmatprep.subr.mxu0 0.0
    %2362 = vmatpush2.msra.mxu0 0.0
    %2363 = vmatprep.subr.mxu0 0.0
    %2364 = vmatpush2.msra.mxu0 0.0
    %2365 = vmatprep.subr.mxu0 0.0
    %2366 = vmatpush2.msra.mxu0 0.0
    %2367 = vmatprep.subr.mxu0 0.0
    %2368 = vmatpush2.msra.mxu0 0.0
    %2369 = vmatprep.subr.mxu0 0.0
    %2370 = vmatpush2.msra.mxu0 0.0
    %2371 = vmatprep.subr.mxu0 0.0
    %2372 = vmatpush2.msra.mxu0 0.0
    %2373 = vmatprep.subr.mxu0 0.0
    %2374 = vmatpush2.msra.mxu0 0.0
    %2375 = vmatprep.subr.mxu0 0.0
    %2376 = vmatpush2.msra.mxu0 0.0
    %2377 = vmatprep.subr.mxu0 0.0
    %2378 = vmatpush2.msra.mxu0 0.0
    %2379 = vmatprep.subr.mxu0 0.0
    %2380 = vmatpush2.msra.mxu0 0.0
    %2381 = vmatprep.subr.mxu0 0.0
    %2382 = vmatpush2.msra.mxu0 0.0
    %2383 = vmatprep.subr.mxu0 0.0
    %2384 = vmatpush2.msra.mxu0 0.0
    %2385 = vmatprep.subr.mxu0 0.0
    %2386 = vmatpush2.msra.mxu0 0.0
    %2387 = vmatprep.subr.mxu0 0.0
    %2388 = vmatpush2.msra.mxu0 0.0
    %2389 = vmatprep.subr.mxu0 0.0
    %2390 = vmatpush2.msra.mxu0 0.0
    %2391 = vmatprep.mubr.f32.mxu0 0.0
    %2392 = vmatmul.mubr.f32.gmra.mxu0 %v740
    %v2393 = vpop.f32.mrf.mxu0
    %v2394 = vadd.f32 %v32, %v2393
    %v2395 = vpop.f32.mrf.mxu0
    %2396 = vdwg.mxu0
    %v2397 = vadd.f32 %v2394, 3.0
    %v2398 = vmax.f32 %v2397, 0.0
    %v2399 = vmin.f32 %v2398, 6.0
    %v2400 = vmul.f32 %v2394, %v2399
    %v2401 = vmul.f32 %v2400, 0.16666667
    %2402 = vmatprep.subr.mxu0 0.0
    %2403 = vmatpush1.msra.mxu0 0.0
    %2404 = vmatprep.subr.mxu0 0.0
    %2405 = vmatpush1.msra.mxu0 0.0
    %2406 = vmatprep.subr.mxu0 0.0
    %2407 = vmatpush1.msra.mxu0 0.0
    %2408 = vmatprep.subr.mxu0 0.0
    %2409 = vmatpush1.msra.mxu0 0.0
    %2410 = vmatprep.subr.mxu0 0.0
    %2411 = vmatpush1.msra.mxu0 0.0
    %2412 = vmatprep.subr.mxu0 0.0
    %2413 = vmatpush1.msra.mxu0 0.0
    %2414 = vmatprep.subr.mxu0 0.0
    %2415 = vmatpush1.msra.mxu0 0.0
    %2416 = vmatprep.subr.mxu0 0.0
    %2417 = vmatpush1.msra.mxu0 0.0
    %2418 = vmatprep.subr.mxu0 0.0
    %2419 = vmatpush1.msra.mxu0 0.0
    %2420 = vmatprep.subr.mxu0 0.0
    %2421 = vmatpush1.msra.mxu0 0.0
    %2422 = vmatprep.subr.mxu0 0.0
    %2423 = vmatpush1.msra.mxu0 0.0
    %2424 = vmatprep.subr.mxu0 0.0
    %2425 = vmatpush1.msra.mxu0 0.0
    %2426 = vmatprep.subr.mxu0 0.0
    %2427 = vmatpush1.msra.mxu0 0.0
    %2428 = vmatprep.subr.mxu0 0.0
    %2429 = vmatpush1.msra.mxu0 0.0
    %2430 = vmatprep.subr.mxu0 0.0
    %2431 = vmatpush1.msra.mxu0 0.0
    %2432 = vmatprep.subr.mxu0 0.0
    %2433 = vmatpush1.msra.mxu0 %v2401
    %2434 = vmatprep.subr.mxu0 0.0
    %2435 = vmatpush2.msra.mxu0 0.0
    %2436 = vmatprep.subr.mxu0 0.0
    %2437 = vmatpush2.msra.mxu0 0.0
    %2438 = vmatprep.subr.mxu0 0.0
    %2439 = vmatpush2.msra.mxu0 0.0
    %2440 = vmatprep.subr.mxu0 0.0
    %2441 = vmatpush2.msra.mxu0 0.0
    %2442 = vmatprep.subr.mxu0 0.0
    %2443 = vmatpush2.msra.mxu0 0.0
    %2444 = vmatprep.subr.mxu0 0.0
    %2445 = vmatpush2.msra.mxu0 0.0
    %2446 = vmatprep.subr.mxu0 0.0
    %2447 = vmatpush2.msra.mxu0 0.0
    %2448 = vmatprep.subr.mxu0 0.0
    %2449 = vmatpush2.msra.mxu0 0.0
    %2450 = vmatprep.subr.mxu0 0.0
    %2451 = vmatpush2.msra.mxu0 0.0
    %2452 = vmatprep.subr.mxu0 0.0
    %2453 = vmatpush2.msra.mxu0 0.0
    %2454 = vmatprep.subr.mxu0 0.0
    %2455 = vmatpush2.msra.mxu0 0.0
    %2456 = vmatprep.subr.mxu0 0.0
    %2457 = vmatpush2.msra.mxu0 0.0
    %2458 = vmatprep.subr.mxu0 0.0
    %2459 = vmatpush2.msra.mxu0 0.0
    %2460 = vmatprep.subr.mxu0 0.0
    %2461 = vmatpush2.msra.mxu0 0.0
    %2462 = vmatprep.subr.mxu0 0.0
    %2463 = vmatpush2.msra.mxu0 0.0
    %2464 = vmatprep.subr.mxu0 0.0
    %2465 = vmatpush2.msra.mxu0 0.0
    %2466 = vmatprep.mubr.f32.mxu0 0.0
    %2467 = vmatmul.mubr.f32.gmra.mxu0 %v818
    %v2468 = vpop.f32.mrf.mxu0
    %v2469 = vadd.f32 %v35, %v2468
    %v2470 = vpop.f32.mrf.mxu0
    %2471 = vmatprep.mubr.f32.mxu0 0.0
    %2472 = vmatmul.mubr.f32.gmra.mxu0 %v821
    %v2473 = vpop.f32.mrf.mxu0
    %v2474 = vadd.f32 %v36, %v2473
    %v2475 = vpop.f32.mrf.mxu0
    %2476 = vdwg.mxu0
    %v2477 = vadd.f32 %v2469, 3.0
    %v2478 = vadd.f32 %v2474, 3.0
    %v2479 = vmax.f32 %v2477, 0.0
    %v2480 = vmax.f32 %v2478, 0.0
    %v2481 = vmin.f32 %v2479, 6.0
    %v2482 = vmin.f32 %v2480, 6.0
    %v2483 = vmul.f32 %v2481, 0.16666667
    %v2484 = vmul.f32 %v2482, 0.16666667
    %2486 = vset.pattern.permute.xlu0 0
    %2487 = vperm.xlu0 %2486, %v2483
    %v2488 = vpop.permute.xlu0 %2487
    %2491 = vset.pattern.permute.xlu0 0
    %2492 = vperm.xlu0 %2491, %v2484
    %v2493 = vpop.permute.xlu0 %2492
    %v2495 = vmul.f32 %v2315, %v2488
    %v2496 = vmul.f32 %v2316, %v2488
    %v2497 = vmul.f32 %v2317, %v2493
    %v2498 = vmul.f32 %v2318, %v2493
    %2499 = vmatprep.subr.mxu0 0.0
    %2500 = vmatpush1.msra.mxu0 0.0
    %2501 = vmatprep.subr.mxu0 0.0
    %2502 = vmatpush1.msra.mxu0 0.0
    %2503 = vmatprep.subr.mxu0 0.0
    %2504 = vmatpush1.msra.mxu0 0.0
    %2505 = vmatprep.subr.mxu0 0.0
    %2506 = vmatpush1.msra.mxu0 0.0
    %2507 = vmatprep.subr.mxu0 0.0
    %2508 = vmatpush1.msra.mxu0 0.0
    %2509 = vmatprep.subr.mxu0 0.0
    %2510 = vmatpush1.msra.mxu0 0.0
    %2511 = vmatprep.subr.mxu0 0.0
    %2512 = vmatpush1.msra.mxu0 0.0
    %2513 = vmatprep.subr.mxu0 0.0
    %2514 = vmatpush1.msra.mxu0 0.0
    %2515 = vmatprep.subr.mxu0 0.0
    %2516 = vmatpush1.msra.mxu0 0.0
    %2517 = vmatprep.subr.mxu0 0.0
    %2518 = vmatpush1.msra.mxu0 0.0
    %2519 = vmatprep.subr.mxu0 0.0
    %2520 = vmatpush1.msra.mxu0 0.0
    %2521 = vmatprep.subr.mxu0 0.0
    %2522 = vmatpush1.msra.mxu0 0.0
    %2523 = vmatprep.subr.mxu0 0.0
    %2524 = vmatpush1.msra.mxu0 0.0
    %2525 = vmatprep.subr.mxu0 0.0
    %2526 = vmatpush1.msra.mxu0 0.0
    %2527 = vmatprep.subr.mxu0 %v2498
    %2528 = vmatpush1.msra.mxu0 %v2497
    %2529 = vmatprep.subr.mxu0 %v2496
    %2530 = vmatpush1.msra.mxu0 %v2495
    %2531 = vmatprep.subr.mxu0 0.0
    %2532 = vmatpush2.msra.mxu0 0.0
    %2533 = vmatprep.subr.mxu0 0.0
    %2534 = vmatpush2.msra.mxu0 0.0
    %2535 = vmatprep.subr.mxu0 0.0
    %2536 = vmatpush2.msra.mxu0 0.0
    %2537 = vmatprep.subr.mxu0 0.0
    %2538 = vmatpush2.msra.mxu0 0.0
    %2539 = vmatprep.subr.mxu0 0.0
    %2540 = vmatpush2.msra.mxu0 0.0
    %2541 = vmatprep.subr.mxu0 0.0
    %2542 = vmatpush2.msra.mxu0 0.0
    %2543 = vmatprep.subr.mxu0 0.0
    %2544 = vmatpush2.msra.mxu0 0.0
    %2545 = vmatprep.subr.mxu0 0.0
    %2546 = vmatpush2.msra.mxu0 0.0
    %2547 = vmatprep.subr.mxu0 0.0
    %2548 = vmatpush2.msra.mxu0 0.0
    %2549 = vmatprep.subr.mxu0 0.0
    %2550 = vmatpush2.msra.mxu0 0.0
    %2551 = vmatprep.subr.mxu0 0.0
    %2552 = vmatpush2.msra.mxu0 0.0
    %2553 = vmatprep.subr.mxu0 0.0
    %2554 = vmatpush2.msra.mxu0 0.0
    %2555 = vmatprep.subr.mxu0 0.0
    %2556 = vmatpush2.msra.mxu0 0.0
    %2557 = vmatprep.subr.mxu0 0.0
    %2558 = vmatpush2.msra.mxu0 0.0
    %2559 = vmatprep.subr.mxu0 0.0
    %2560 = vmatpush2.msra.mxu0 0.0
    %2561 = vmatprep.subr.mxu0 0.0
    %2562 = vmatpush2.msra.mxu0 0.0
    %2563 = vmatprep.mubr.f32.mxu0 0.0
    %2564 = vmatmul.mubr.f32.gmra.mxu0 %v926
    %v2565 = vpop.f32.mrf.mxu0
    %v2566 = vadd.f32 %v923, %v2565
    %v2567 = vpop.f32.mrf.mxu0
    %v2568 = vadd.f32 %v923, %v2567
    %2569 = vdwg.mxu0
    %v2570 = vadd.f32 %v2566, %v1790
    %v2571 = vadd.f32 %v2568, %v1791
    %s2572 = scalar_lea.vmem [#allocation4], 32
    %2573 = vst [vmem:[%s2572] sm:$0xff] %v2570
    %2574 = vst [vmem:[%s2572 + $0x8] sm:$0xff] %v2571
    %s2575 = scalar_lea.vmem %s0, 48
    %v2576 = vld [vmem:[%s2575] sm:$0xff]
    %v2577 = vld [vmem:[%s2575 + $0x8] sm:$0xff]
    %2578 = vmatprep.subr.mxu0 0.0
    %2579 = vmatpush1.msra.mxu0 0.0
    %2580 = vmatprep.subr.mxu0 0.0
    %2581 = vmatpush1.msra.mxu0 0.0
    %2582 = vmatprep.subr.mxu0 0.0
    %2583 = vmatpush1.msra.mxu0 0.0
    %2584 = vmatprep.subr.mxu0 0.0
    %2585 = vmatpush1.msra.mxu0 0.0
    %2586 = vmatprep.subr.mxu0 0.0
    %2587 = vmatpush1.msra.mxu0 0.0
    %2588 = vmatprep.subr.mxu0 0.0
    %2589 = vmatpush1.msra.mxu0 0.0
    %2590 = vmatprep.subr.mxu0 0.0
    %2591 = vmatpush1.msra.mxu0 0.0
    %2592 = vmatprep.subr.mxu0 0.0
    %2593 = vmatpush1.msra.mxu0 0.0
    %2594 = vmatprep.subr.mxu0 0.0
    %2595 = vmatpush1.msra.mxu0 0.0
    %2596 = vmatprep.subr.mxu0 0.0
    %2597 = vmatpush1.msra.mxu0 0.0
    %2598 = vmatprep.subr.mxu0 0.0
    %2599 = vmatpush1.msra.mxu0 0.0
    %2600 = vmatprep.subr.mxu0 0.0
    %2601 = vmatpush1.msra.mxu0 0.0
    %2602 = vmatprep.subr.mxu0 0.0
    %2603 = vmatpush1.msra.mxu0 0.0
    %2604 = vmatprep.subr.mxu0 0.0
    %2605 = vmatpush1.msra.mxu0 0.0
    %2606 = vmatprep.subr.mxu0 0.0
    %2607 = vmatpush1.msra.mxu0 0.0
    %2608 = vmatprep.subr.mxu0 %v2577
    %2609 = vmatpush1.msra.mxu0 %v2576
    %2610 = vmatprep.subr.mxu0 0.0
    %2611 = vmatpush2.msra.mxu0 0.0
    %2612 = vmatprep.subr.mxu0 0.0
    %2613 = vmatpush2.msra.mxu0 0.0
    %2614 = vmatprep.subr.mxu0 0.0
    %2615 = vmatpush2.msra.mxu0 0.0
    %2616 = vmatprep.subr.mxu0 0.0
    %2617 = vmatpush2.msra.mxu0 0.0
    %2618 = vmatprep.subr.mxu0 0.0
    %2619 = vmatpush2.msra.mxu0 0.0
    %2620 = vmatprep.subr.mxu0 0.0
    %2621 = vmatpush2.msra.mxu0 0.0
    %2622 = vmatprep.subr.mxu0 0.0
    %2623 = vmatpush2.msra.mxu0 0.0
    %2624 = vmatprep.subr.mxu0 0.0
    %2625 = vmatpush2.msra.mxu0 0.0
    %2626 = vmatprep.subr.mxu0 0.0
    %2627 = vmatpush2.msra.mxu0 0.0
    %2628 = vmatprep.subr.mxu0 0.0
    %2629 = vmatpush2.msra.mxu0 0.0
    %2630 = vmatprep.subr.mxu0 0.0
    %2631 = vmatpush2.msra.mxu0 0.0
    %2632 = vmatprep.subr.mxu0 0.0
    %2633 = vmatpush2.msra.mxu0 0.0
    %2634 = vmatprep.subr.mxu0 0.0
    %2635 = vmatpush2.msra.mxu0 0.0
    %2636 = vmatprep.subr.mxu0 0.0
    %2637 = vmatpush2.msra.mxu0 0.0
    %2638 = vmatprep.subr.mxu0 0.0
    %2639 = vmatpush2.msra.mxu0 0.0
    %2640 = vmatprep.subr.mxu0 0.0
    %2641 = vmatpush2.msra.mxu0 0.0
    %2642 = vmatprep.mubr.f32.mxu0 0.0
    %2643 = vmatmul.mubr.f32.gmra.mxu0 %v101
    %v2644 = vpop.f32.mrf.mxu0
    %v2645 = vadd.f32 %v92, %v2644
    %v2646 = vpop.f32.mrf.mxu0
    %v2647 = vadd.f32 %v92, %v2646
    %2648 = vmatprep.mubr.f32.mxu0 0.0
    %2649 = vmatmul.mubr.f32.gmra.mxu0 %v104
    %v2650 = vpop.f32.mrf.mxu0
    %v2651 = vadd.f32 %v97, %v2650
    %v2652 = vpop.f32.mrf.mxu0
    %v2653 = vadd.f32 %v97, %v2652
    %2654 = vdwg.mxu0
    %v2655 = vadd.f32 %v2645, 3.0
    %v2656 = vadd.f32 %v2647, 3.0
    %v2657 = vadd.f32 %v2651, 3.0
    %v2658 = vadd.f32 %v2653, 3.0
    %v2659 = vmax.f32 %v2655, 0.0
    %v2660 = vmax.f32 %v2656, 0.0
    %v2661 = vmax.f32 %v2657, 0.0
    %v2662 = vmax.f32 %v2658, 0.0
    %v2663 = vmin.f32 %v2659, 6.0
    %v2664 = vmin.f32 %v2660, 6.0
    %v2665 = vmin.f32 %v2661, 6.0
    %v2666 = vmin.f32 %v2662, 6.0
    %v2667 = vmul.f32 %v2645, %v2663
    %v2668 = vmul.f32 %v2647, %v2664
    %v2669 = vmul.f32 %v2651, %v2665
    %v2670 = vmul.f32 %v2653, %v2666
    %v2671 = vmul.f32 %v2667, 0.16666667
    %v2672 = vmul.f32 %v2668, 0.16666667
    %v2673 = vmul.f32 %v2669, 0.16666667
    %v2674 = vmul.f32 %v2670, 0.16666667
    %2675 = vst [vmem:[#allocation2 + $0x8] sm:$0xff] %v2671
    %2676 = vst [vmem:[#allocation2 + $0x10] sm:$0xff] %v2672
    %2677 = vst [vmem:[#allocation2 + $0x28] sm:$0xff] %v2673
    %2678 = vst [vmem:[#allocation2 + $0x30] sm:$0xff] %v2674
    %v2679 = vld [vmem:[#allocation2] sm:$0xff]
    %v2680 = vld [vmem:[#allocation2 + $0x8] sm:$0xff]
    %v2681 = vld [vmem:[#allocation2 + $0x10] sm:$0xff]
    %v2682 = vld [vmem:[#allocation2 + $0x20] sm:$0xff]
    %v2683 = vld [vmem:[#allocation2 + $0x28] sm:$0xff]
    %v2684 = vld [vmem:[#allocation2 + $0x30] sm:$0xff]
    %v2685 = vld [vmem:[#allocation2 + $0x18] sm:$0xff]
    %v2686 = vld [vmem:[#allocation2 + $0x38] sm:$0xff]
    %v2687 = vmul.f32 %v2679, %v218
    %v2688 = vmul.f32 %v2680, %v218
    %v2689 = vmul.f32 %v2681, %v218
    %v2690 = vmul.f32 %v2682, %v223
    %v2691 = vmul.f32 %v2683, %v223
    %v2692 = vmul.f32 %v2684, %v223
    %v2693 = vmul.f32 %v2680, %v233
    %v2694 = vmul.f32 %v2681, %v233
    %v2695 = vmul.f32 %v2683, %v237
    %v2696 = vmul.f32 %v2684, %v237
    %2701 = vrot.lane.b32.xlu0 %v2693, 112
    %v2702 = vpop.permute.xlu0 %2701
    %2703 = vrot.lane.b32.xlu0 %v2694, 112
    %v2704 = vpop.permute.xlu0 %2703
    %2705 = vrot.lane.b32.xlu0 %v2695, 112
    %v2706 = vpop.permute.xlu0 %2705
    %2707 = vrot.lane.b32.xlu0 %v2696, 112
    %v2708 = vpop.permute.xlu0 %2707
    %v2709 = vsel %vm255, %v2702, %v2704
    %v2710 = vsel %vm255, %v2706, %v2708
    %v2717 = vadd.f32 %v2687, %v2702
    %v2718 = vadd.f32 %v2688, %v2709
    %v2719 = vadd.f32 %v2689, %v2704
    %v2720 = vadd.f32 %v2690, %v2706
    %v2721 = vadd.f32 %v2691, %v2710
    %v2722 = vadd.f32 %v2692, %v2708
    %v2723 = vmul.f32 %v2680, %v272
    %v2724 = vmul.f32 %v2681, %v272
    %v2725 = vmul.f32 %v2685, %v272
    %v2726 = vmul.f32 %v2683, %v276
    %v2727 = vmul.f32 %v2684, %v276
    %v2728 = vmul.f32 %v2686, %v276
    %2735 = vrot.lane.b32.xlu0 %v2723, 96
    %v2736 = vpop.permute.xlu0 %2735
    %2737 = vrot.lane.b32.xlu0 %v2724, 96
    %v2738 = vpop.permute.xlu0 %2737
    %2739 = vrot.lane.b32.xlu0 %v2725, 96
    %v2740 = vpop.permute.xlu0 %2739
    %2741 = vrot.lane.b32.xlu0 %v2726, 96
    %v2742 = vpop.permute.xlu0 %2741
    %2743 = vrot.lane.b32.xlu0 %v2727, 96
    %v2744 = vpop.permute.xlu0 %2743
    %2745 = vrot.lane.b32.xlu0 %v2728, 96
    %v2746 = vpop.permute.xlu0 %2745
    %v2747 = vsel %vm302, %v2736, %v2738
    %v2748 = vsel %vm302, %v2738, %v2740
    %v2749 = vsel %vm302, %v2742, %v2744
    %v2750 = vsel %vm302, %v2744, %v2746
    %v2757 = vadd.f32 %v2717, %v2736
    %v2758 = vadd.f32 %v2718, %v2747
    %v2759 = vadd.f32 %v2719, %v2748
    %v2760 = vadd.f32 %v2720, %v2742
    %v2761 = vadd.f32 %v2721, %v2749
    %v2762 = vadd.f32 %v2722, %v2750
    %2769 = vrot.lane.b32.xlu0 %v2757, 16
    %v2770 = vpop.permute.xlu0 %2769
    %2771 = vrot.lane.b32.xlu0 %v2758, 16
    %v2772 = vpop.permute.xlu0 %2771
    %2773 = vrot.lane.b32.xlu0 %v2759, 16
    %v2774 = vpop.permute.xlu0 %2773
    %2775 = vrot.lane.b32.xlu0 %v2760, 16
    %v2776 = vpop.permute.xlu0 %2775
    %2777 = vrot.lane.b32.xlu0 %v2761, 16
    %v2778 = vpop.permute.xlu0 %2777
    %2779 = vrot.lane.b32.xlu0 %v2762, 16
    %v2780 = vpop.permute.xlu0 %2779
    %v2781 = vsel %vm76, %v2770, %v2772
    %v2782 = vsel %vm76, %v2772, %v2774
    %v2783 = vsel %vm76, %v2776, %v2778
    %v2784 = vsel %vm76, %v2778, %v2780
    %2789 = vst [vmem:[#allocation3 + $0x8] sm:$0xff] %v2781
    %2790 = vst [vmem:[#allocation3 + $0x10] sm:$0xff] %v2782
    %2791 = vst [vmem:[#allocation3 + $0x28] sm:$0xff] %v2783
    %2792 = vst [vmem:[#allocation3 + $0x30] sm:$0xff] %v2784
    %v2793 = vld [vmem:[#allocation3] sm:$0xff]
    %v2794 = vld [vmem:[#allocation3 + $0x8] sm:$0xff]
    %v2795 = vld [vmem:[#allocation3 + $0x10] sm:$0xff]
    %v2796 = vld [vmem:[#allocation3 + $0x20] sm:$0xff]
    %v2797 = vld [vmem:[#allocation3 + $0x28] sm:$0xff]
    %v2798 = vld [vmem:[#allocation3 + $0x30] sm:$0xff]
    %2805 = vrot.lane.b32.xlu0 %v2793, 1
    %v2806 = vpop.permute.xlu0 %2805
    %2807 = vrot.lane.b32.xlu0 %v2794, 1
    %v2808 = vpop.permute.xlu0 %2807
    %2809 = vrot.lane.b32.xlu0 %v2795, 1
    %v2810 = vpop.permute.xlu0 %2809
    %2811 = vrot.lane.b32.xlu0 %v2796, 1
    %v2812 = vpop.permute.xlu0 %2811
    %2813 = vrot.lane.b32.xlu0 %v2797, 1
    %v2814 = vpop.permute.xlu0 %2813
    %2815 = vrot.lane.b32.xlu0 %v2798, 1
    %v2816 = vpop.permute.xlu0 %2815
    %v2817 = vsel %vm377, %v2806, %v2808
    %v2818 = vsel %vm377, %v2808, %v2810
    %v2819 = vsel %vm377, %v2812, %v2814
    %v2820 = vsel %vm377, %v2814, %v2816
    %v2825 = vsel %vm357, %v2817, 0.0
    %v2826 = vsel %vm358, %v2818, 0.0
    %v2827 = vsel %vm357, %v2819, 0.0
    %v2828 = vsel %vm358, %v2820, 0.0
    %v2829 = vmul.f32 %v2679, %v392
    %v2830 = vmul.f32 %v2680, %v392
    %v2831 = vmul.f32 %v2681, %v392
    %v2832 = vmul.f32 %v2682, %v396
    %v2833 = vmul.f32 %v2683, %v396
    %v2834 = vmul.f32 %v2684, %v396
    %v2835 = vmul.f32 %v2680, %v406
    %v2836 = vmul.f32 %v2681, %v406
    %v2837 = vmul.f32 %v2683, %v410
    %v2838 = vmul.f32 %v2684, %v410
    %2843 = vrot.lane.b32.xlu0 %v2835, 112
    %v2844 = vpop.permute.xlu0 %2843
    %2845 = vrot.lane.b32.xlu0 %v2836, 112
    %v2846 = vpop.permute.xlu0 %2845
    %2847 = vrot.lane.b32.xlu0 %v2837, 112
    %v2848 = vpop.permute.xlu0 %2847
    %2849 = vrot.lane.b32.xlu0 %v2838, 112
    %v2850 = vpop.permute.xlu0 %2849
    %v2851 = vsel %vm255, %v2844, %v2846
    %v2852 = vsel %vm255, %v2848, %v2850
    %v2859 = vadd.f32 %v2829, %v2844
    %v2860 = vadd.f32 %v2830, %v2851
    %v2861 = vadd.f32 %v2831, %v2846
    %v2862 = vadd.f32 %v2832, %v2848
    %v2863 = vadd.f32 %v2833, %v2852
    %v2864 = vadd.f32 %v2834, %v2850
    %v2865 = vmul.f32 %v2680, %v444
    %v2866 = vmul.f32 %v2681, %v444
    %v2867 = vmul.f32 %v2685, %v444
    %v2868 = vmul.f32 %v2683, %v448
    %v2869 = vmul.f32 %v2684, %v448
    %v2870 = vmul.f32 %v2686, %v448
    %2877 = vrot.lane.b32.xlu0 %v2865, 96
    %v2878 = vpop.permute.xlu0 %2877
    %2879 = vrot.lane.b32.xlu0 %v2866, 96
    %v2880 = vpop.permute.xlu0 %2879
    %2881 = vrot.lane.b32.xlu0 %v2867, 96
    %v2882 = vpop.permute.xlu0 %2881
    %2883 = vrot.lane.b32.xlu0 %v2868, 96
    %v2884 = vpop.permute.xlu0 %2883
    %2885 = vrot.lane.b32.xlu0 %v2869, 96
    %v2886 = vpop.permute.xlu0 %2885
    %2887 = vrot.lane.b32.xlu0 %v2870, 96
    %v2888 = vpop.permute.xlu0 %2887
    %v2889 = vsel %vm302, %v2878, %v2880
    %v2890 = vsel %vm302, %v2880, %v2882
    %v2891 = vsel %vm302, %v2884, %v2886
    %v2892 = vsel %vm302, %v2886, %v2888
    %v2899 = vadd.f32 %v2859, %v2878
    %v2900 = vadd.f32 %v2860, %v2889
    %v2901 = vadd.f32 %v2861, %v2890
    %v2902 = vadd.f32 %v2862, %v2884
    %v2903 = vadd.f32 %v2863, %v2891
    %v2904 = vadd.f32 %v2864, %v2892
    %2911 = vrot.lane.b32.xlu0 %v2899, 16
    %v2912 = vpop.permute.xlu0 %2911
    %2913 = vrot.lane.b32.xlu0 %v2900, 16
    %v2914 = vpop.permute.xlu0 %2913
    %2915 = vrot.lane.b32.xlu0 %v2901, 16
    %v2916 = vpop.permute.xlu0 %2915
    %2917 = vrot.lane.b32.xlu0 %v2902, 16
    %v2918 = vpop.permute.xlu0 %2917
    %2919 = vrot.lane.b32.xlu0 %v2903, 16
    %v2920 = vpop.permute.xlu0 %2919
    %2921 = vrot.lane.b32.xlu0 %v2904, 16
    %v2922 = vpop.permute.xlu0 %2921
    %v2923 = vsel %vm76, %v2912, %v2914
    %v2924 = vsel %vm76, %v2914, %v2916
    %v2925 = vsel %vm76, %v2918, %v2920
    %v2926 = vsel %vm76, %v2920, %v2922
    %v2931 = vadd.f32 %v2825, %v2923
    %v2932 = vadd.f32 %v2826, %v2924
    %v2933 = vadd.f32 %v2827, %v2925
    %v2934 = vadd.f32 %v2828, %v2926
    %v2935 = vmul.f32 %v2679, %v522
    %v2936 = vmul.f32 %v2680, %v522
    %v2937 = vmul.f32 %v2681, %v522
    %v2938 = vmul.f32 %v2682, %v526
    %v2939 = vmul.f32 %v2683, %v526
    %v2940 = vmul.f32 %v2684, %v526
    %v2941 = vmul.f32 %v2680, %v536
    %v2942 = vmul.f32 %v2681, %v536
    %v2943 = vmul.f32 %v2683, %v540
    %v2944 = vmul.f32 %v2684, %v540
    %2949 = vrot.lane.b32.xlu0 %v2941, 112
    %v2950 = vpop.permute.xlu0 %2949
    %2951 = vrot.lane.b32.xlu0 %v2942, 112
    %v2952 = vpop.permute.xlu0 %2951
    %2953 = vrot.lane.b32.xlu0 %v2943, 112
    %v2954 = vpop.permute.xlu0 %2953
    %2955 = vrot.lane.b32.xlu0 %v2944, 112
    %v2956 = vpop.permute.xlu0 %2955
    %v2957 = vsel %vm255, %v2950, %v2952
    %v2958 = vsel %vm255, %v2954, %v2956
    %v2965 = vadd.f32 %v2935, %v2950
    %v2966 = vadd.f32 %v2936, %v2957
    %v2967 = vadd.f32 %v2937, %v2952
    %v2968 = vadd.f32 %v2938, %v2954
    %v2969 = vadd.f32 %v2939, %v2958
    %v2970 = vadd.f32 %v2940, %v2956
    %v2971 = vmul.f32 %v2680, %v574
    %v2972 = vmul.f32 %v2681, %v574
    %v2973 = vmul.f32 %v2685, %v574
    %v2974 = vmul.f32 %v2683, %v578
    %v2975 = vmul.f32 %v2684, %v578
    %v2976 = vmul.f32 %v2686, %v578
    %2983 = vrot.lane.b32.xlu0 %v2971, 96
    %v2984 = vpop.permute.xlu0 %2983
    %2985 = vrot.lane.b32.xlu0 %v2972, 96
    %v2986 = vpop.permute.xlu0 %2985
    %2987 = vrot.lane.b32.xlu0 %v2973, 96
    %v2988 = vpop.permute.xlu0 %2987
    %2989 = vrot.lane.b32.xlu0 %v2974, 96
    %v2990 = vpop.permute.xlu0 %2989
    %2991 = vrot.lane.b32.xlu0 %v2975, 96
    %v2992 = vpop.permute.xlu0 %2991
    %2993 = vrot.lane.b32.xlu0 %v2976, 96
    %v2994 = vpop.permute.xlu0 %2993
    %v2995 = vsel %vm302, %v2984, %v2986
    %v2996 = vsel %vm302, %v2986, %v2988
    %v2997 = vsel %vm302, %v2990, %v2992
    %v2998 = vsel %vm302, %v2992, %v2994
    %v3005 = vadd.f32 %v2965, %v2984
    %v3006 = vadd.f32 %v2966, %v2995
    %v3007 = vadd.f32 %v2967, %v2996
    %v3008 = vadd.f32 %v2968, %v2990
    %v3009 = vadd.f32 %v2969, %v2997
    %v3010 = vadd.f32 %v2970, %v2998
    %3017 = vrot.lane.b32.xlu0 %v3005, 16
    %v3018 = vpop.permute.xlu0 %3017
    %3019 = vrot.lane.b32.xlu0 %v3006, 16
    %v3020 = vpop.permute.xlu0 %3019
    %3021 = vrot.lane.b32.xlu0 %v3007, 16
    %v3022 = vpop.permute.xlu0 %3021
    %3023 = vrot.lane.b32.xlu0 %v3008, 16
    %v3024 = vpop.permute.xlu0 %3023
    %3025 = vrot.lane.b32.xlu0 %v3009, 16
    %v3026 = vpop.permute.xlu0 %3025
    %3027 = vrot.lane.b32.xlu0 %v3010, 16
    %v3028 = vpop.permute.xlu0 %3027
    %v3029 = vsel %vm76, %v3018, %v3020
    %v3030 = vsel %vm76, %v3020, %v3022
    %v3031 = vsel %vm76, %v3024, %v3026
    %v3032 = vsel %vm76, %v3026, %v3028
    %3037 = vst [vmem:[%s646 + $0x8] sm:$0xff] %v3029
    %3038 = vst [vmem:[%s646 + $0x10] sm:$0xff] %v3030
    %3039 = vst [vmem:[%s646 + $0x28] sm:$0xff] %v3031
    %3040 = vst [vmem:[%s646 + $0x30] sm:$0xff] %v3032
    %v3041 = vld [vmem:[%s646 + $0x8] sm:$0xff]
    %v3042 = vld [vmem:[%s646 + $0x10] sm:$0xff]
    %v3043 = vld [vmem:[%s646 + $0x18] sm:$0xff]
    %v3044 = vld [vmem:[%s646 + $0x28] sm:$0xff]
    %v3045 = vld [vmem:[%s646 + $0x30] sm:$0xff]
    %v3046 = vld [vmem:[%s646 + $0x38] sm:$0xff]
    %3053 = vrot.lane.b32.xlu0 %v3041, 127
    %v3054 = vpop.permute.xlu0 %3053
    %3055 = vrot.lane.b32.xlu0 %v3042, 127
    %v3056 = vpop.permute.xlu0 %3055
    %3057 = vrot.lane.b32.xlu0 %v3043, 127
    %v3058 = vpop.permute.xlu0 %3057
    %3059 = vrot.lane.b32.xlu0 %v3044, 127
    %v3060 = vpop.permute.xlu0 %3059
    %3061 = vrot.lane.b32.xlu0 %v3045, 127
    %v3062 = vpop.permute.xlu0 %3061
    %3063 = vrot.lane.b32.xlu0 %v3046, 127
    %v3064 = vpop.permute.xlu0 %3063
    %v3065 = vsel %vm679, %v3054, %v3056
    %v3066 = vsel %vm679, %v3056, %v3058
    %v3067 = vsel %vm679, %v3060, %v3062
    %v3068 = vsel %vm679, %v3062, %v3064
    %v3073 = vsel %vm659, %v3065, 0.0
    %v3074 = vsel %vm660, %v3066, 0.0
    %v3075 = vsel %vm659, %v3067, 0.0
    %v3076 = vsel %vm660, %v3068, 0.0
    %v3077 = vadd.f32 %v2931, %v3073
    %v3078 = vadd.f32 %v2932, %v3074
    %v3079 = vadd.f32 %v2933, %v3075
    %v3080 = vadd.f32 %v2934, %v3076
    %v3081 = vadd.f32 %v3077, %v699
    %v3082 = vadd.f32 %v3078, %v699
    %v3083 = vadd.f32 %v3079, %v704
    %v3084 = vadd.f32 %v3080, %v704
    %v3085 = vadd.f32 %v3081, 3.0
    %v3086 = vadd.f32 %v3082, 3.0
    %v3087 = vadd.f32 %v3083, 3.0
    %v3088 = vadd.f32 %v3084, 3.0
    %v3089 = vmax.f32 %v3085, 0.0
    %v3090 = vmax.f32 %v3086, 0.0
    %v3091 = vmax.f32 %v3087, 0.0
    %v3092 = vmax.f32 %v3088, 0.0
    %v3093 = vmin.f32 %v3089, 6.0
    %v3094 = vmin.f32 %v3090, 6.0
    %v3095 = vmin.f32 %v3091, 6.0
    %v3096 = vmin.f32 %v3092, 6.0
    %v3097 = vmul.f32 %v3081, %v3093
    %v3098 = vmul.f32 %v3082, %v3094
    %v3099 = vmul.f32 %v3083, %v3095
    %v3100 = vmul.f32 %v3084, %v3096
    %v3101 = vmul.f32 %v3097, 0.16666667
    %v3102 = vmul.f32 %v3098, 0.16666667
    %v3103 = vmul.f32 %v3099, 0.16666667
    %v3104 = vmul.f32 %v3100, 0.16666667
    %v3105 = vadd.f32 %v3101, %v3102
    %3106 = vadd.xlane.f32.xlu0 %v3105
    %v3107 = vpop.xlane.xlu0 %3106
    %v3108 = vadd.f32 %v3103, %v3104
    %3109 = vadd.xlane.f32.xlu0 %v3108
    %v3110 = vpop.xlane.xlu0 %3109
    %v3111 = vmul.f32 %v3107, %v736
    %v3112 = vmul.f32 %v3110, %v736
    %3113 = vmatprep.subr.mxu0 0.0
    %3114 = vmatpush1.msra.mxu0 0.0
    %3115 = vmatprep.subr.mxu0 0.0
    %3116 = vmatpush1.msra.mxu0 0.0
    %3117 = vmatprep.subr.mxu0 0.0
    %3118 = vmatpush1.msra.mxu0 0.0
    %3119 = vmatprep.subr.mxu0 0.0
    %3120 = vmatpush1.msra.mxu0 0.0
    %3121 = vmatprep.subr.mxu0 0.0
    %3122 = vmatpush1.msra.mxu0 0.0
    %3123 = vmatprep.subr.mxu0 0.0
    %3124 = vmatpush1.msra.mxu0 0.0
    %3125 = vmatprep.subr.mxu0 0.0
    %3126 = vmatpush1.msra.mxu0 0.0
    %3127 = vmatprep.subr.mxu0 0.0
    %3128 = vmatpush1.msra.mxu0 0.0
    %3129 = vmatprep.subr.mxu0 0.0
    %3130 = vmatpush1.msra.mxu0 0.0
    %3131 = vmatprep.subr.mxu0 0.0
    %3132 = vmatpush1.msra.mxu0 0.0
    %3133 = vmatprep.subr.mxu0 0.0
    %3134 = vmatpush1.msra.mxu0 0.0
    %3135 = vmatprep.subr.mxu0 0.0
    %3136 = vmatpush1.msra.mxu0 0.0
    %3137 = vmatprep.subr.mxu0 0.0
    %3138 = vmatpush1.msra.mxu0 0.0
    %3139 = vmatprep.subr.mxu0 0.0
    %3140 = vmatpush1.msra.mxu0 0.0
    %3141 = vmatprep.subr.mxu0 0.0
    %3142 = vmatpush1.msra.mxu0 %v3112
    %3143 = vmatprep.subr.mxu0 0.0
    %3144 = vmatpush1.msra.mxu0 %v3111
    %3145 = vmatprep.subr.mxu0 0.0
    %3146 = vmatpush2.msra.mxu0 0.0
    %3147 = vmatprep.subr.mxu0 0.0
    %3148 = vmatpush2.msra.mxu0 0.0
    %3149 = vmatprep.subr.mxu0 0.0
    %3150 = vmatpush2.msra.mxu0 0.0
    %3151 = vmatprep.subr.mxu0 0.0
    %3152 = vmatpush2.msra.mxu0 0.0
    %3153 = vmatprep.subr.mxu0 0.0
    %3154 = vmatpush2.msra.mxu0 0.0
    %3155 = vmatprep.subr.mxu0 0.0
    %3156 = vmatpush2.msra.mxu0 0.0
    %3157 = vmatprep.subr.mxu0 0.0
    %3158 = vmatpush2.msra.mxu0 0.0
    %3159 = vmatprep.subr.mxu0 0.0
    %3160 = vmatpush2.msra.mxu0 0.0
    %3161 = vmatprep.subr.mxu0 0.0
    %3162 = vmatpush2.msra.mxu0 0.0
    %3163 = vmatprep.subr.mxu0 0.0
    %3164 = vmatpush2.msra.mxu0 0.0
    %3165 = vmatprep.subr.mxu0 0.0
    %3166 = vmatpush2.msra.mxu0 0.0
    %3167 = vmatprep.subr.mxu0 0.0
    %3168 = vmatpush2.msra.mxu0 0.0
    %3169 = vmatprep.subr.mxu0 0.0
    %3170 = vmatpush2.msra.mxu0 0.0
    %3171 = vmatprep.subr.mxu0 0.0
    %3172 = vmatpush2.msra.mxu0 0.0
    %3173 = vmatprep.subr.mxu0 0.0
    %3174 = vmatpush2.msra.mxu0 0.0
    %3175 = vmatprep.subr.mxu0 0.0
    %3176 = vmatpush2.msra.mxu0 0.0
    %3177 = vmatprep.mubr.f32.mxu0 0.0
    %3178 = vmatmul.mubr.f32.gmra.mxu0 %v740
    %v3179 = vpop.f32.mrf.mxu0
    %v3180 = vadd.f32 %v32, %v3179
    %v3181 = vpop.f32.mrf.mxu0
    %3182 = vdwg.mxu0
    %v3183 = vadd.f32 %v3180, 3.0
    %v3184 = vmax.f32 %v3183, 0.0
    %v3185 = vmin.f32 %v3184, 6.0
    %v3186 = vmul.f32 %v3180, %v3185
    %v3187 = vmul.f32 %v3186, 0.16666667
    %3188 = vmatprep.subr.mxu0 0.0
    %3189 = vmatpush1.msra.mxu0 0.0
    %3190 = vmatprep.subr.mxu0 0.0
    %3191 = vmatpush1.msra.mxu0 0.0
    %3192 = vmatprep.subr.mxu0 0.0
    %3193 = vmatpush1.msra.mxu0 0.0
    %3194 = vmatprep.subr.mxu0 0.0
    %3195 = vmatpush1.msra.mxu0 0.0
    %3196 = vmatprep.subr.mxu0 0.0
    %3197 = vmatpush1.msra.mxu0 0.0
    %3198 = vmatprep.subr.mxu0 0.0
    %3199 = vmatpush1.msra.mxu0 0.0
    %3200 = vmatprep.subr.mxu0 0.0
    %3201 = vmatpush1.msra.mxu0 0.0
    %3202 = vmatprep.subr.mxu0 0.0
    %3203 = vmatpush1.msra.mxu0 0.0
    %3204 = vmatprep.subr.mxu0 0.0
    %3205 = vmatpush1.msra.mxu0 0.0
    %3206 = vmatprep.subr.mxu0 0.0
    %3207 = vmatpush1.msra.mxu0 0.0
    %3208 = vmatprep.subr.mxu0 0.0
    %3209 = vmatpush1.msra.mxu0 0.0
    %3210 = vmatprep.subr.mxu0 0.0
    %3211 = vmatpush1.msra.mxu0 0.0
    %3212 = vmatprep.subr.mxu0 0.0
    %3213 = vmatpush1.msra.mxu0 0.0
    %3214 = vmatprep.subr.mxu0 0.0
    %3215 = vmatpush1.msra.mxu0 0.0
    %3216 = vmatprep.subr.mxu0 0.0
    %3217 = vmatpush1.msra.mxu0 0.0
    %3218 = vmatprep.subr.mxu0 0.0
    %3219 = vmatpush1.msra.mxu0 %v3187
    %3220 = vmatprep.subr.mxu0 0.0
    %3221 = vmatpush2.msra.mxu0 0.0
    %3222 = vmatprep.subr.mxu0 0.0
    %3223 = vmatpush2.msra.mxu0 0.0
    %3224 = vmatprep.subr.mxu0 0.0
    %3225 = vmatpush2.msra.mxu0 0.0
    %3226 = vmatprep.subr.mxu0 0.0
    %3227 = vmatpush2.msra.mxu0 0.0
    %3228 = vmatprep.subr.mxu0 0.0
    %3229 = vmatpush2.msra.mxu0 0.0
    %3230 = vmatprep.subr.mxu0 0.0
    %3231 = vmatpush2.msra.mxu0 0.0
    %3232 = vmatprep.subr.mxu0 0.0
    %3233 = vmatpush2.msra.mxu0 0.0
    %3234 = vmatprep.subr.mxu0 0.0
    %3235 = vmatpush2.msra.mxu0 0.0
    %3236 = vmatprep.subr.mxu0 0.0
    %3237 = vmatpush2.msra.mxu0 0.0
    %3238 = vmatprep.subr.mxu0 0.0
    %3239 = vmatpush2.msra.mxu0 0.0
    %3240 = vmatprep.subr.mxu0 0.0
    %3241 = vmatpush2.msra.mxu0 0.0
    %3242 = vmatprep.subr.mxu0 0.0
    %3243 = vmatpush2.msra.mxu0 0.0
    %3244 = vmatprep.subr.mxu0 0.0
    %3245 = vmatpush2.msra.mxu0 0.0
    %3246 = vmatprep.subr.mxu0 0.0
    %3247 = vmatpush2.msra.mxu0 0.0
    %3248 = vmatprep.subr.mxu0 0.0
    %3249 = vmatpush2.msra.mxu0 0.0
    %3250 = vmatprep.subr.mxu0 0.0
    %3251 = vmatpush2.msra.mxu0 0.0
    %3252 = vmatprep.mubr.f32.mxu0 0.0
    %3253 = vmatmul.mubr.f32.gmra.mxu0 %v818
    %v3254 = vpop.f32.mrf.mxu0
    %v3255 = vadd.f32 %v35, %v3254
    %v3256 = vpop.f32.mrf.mxu0
    %3257 = vmatprep.mubr.f32.mxu0 0.0
    %3258 = vmatmul.mubr.f32.gmra.mxu0 %v821
    %v3259 = vpop.f32.mrf.mxu0
    %v3260 = vadd.f32 %v36, %v3259
    %v3261 = vpop.f32.mrf.mxu0
    %3262 = vdwg.mxu0
    %v3263 = vadd.f32 %v3255, 3.0
    %v3264 = vadd.f32 %v3260, 3.0
    %v3265 = vmax.f32 %v3263, 0.0
    %v3266 = vmax.f32 %v3264, 0.0
    %v3267 = vmin.f32 %v3265, 6.0
    %v3268 = vmin.f32 %v3266, 6.0
    %v3269 = vmul.f32 %v3267, 0.16666667
    %v3270 = vmul.f32 %v3268, 0.16666667
    %3272 = vset.pattern.permute.xlu0 0
    %3273 = vperm.xlu0 %3272, %v3269
    %v3274 = vpop.permute.xlu0 %3273
    %3277 = vset.pattern.permute.xlu0 0
    %3278 = vperm.xlu0 %3277, %v3270
    %v3279 = vpop.permute.xlu0 %3278
    %v3281 = vmul.f32 %v3101, %v3274
    %v3282 = vmul.f32 %v3102, %v3274
    %v3283 = vmul.f32 %v3103, %v3279
    %v3284 = vmul.f32 %v3104, %v3279
    %3285 = vmatprep.subr.mxu0 0.0
    %3286 = vmatpush1.msra.mxu0 0.0
    %3287 = vmatprep.subr.mxu0 0.0
    %3288 = vmatpush1.msra.mxu0 0.0
    %3289 = vmatprep.subr.mxu0 0.0
    %3290 = vmatpush1.msra.mxu0 0.0
    %3291 = vmatprep.subr.mxu0 0.0
    %3292 = vmatpush1.msra.mxu0 0.0
    %3293 = vmatprep.subr.mxu0 0.0
    %3294 = vmatpush1.msra.mxu0 0.0
    %3295 = vmatprep.subr.mxu0 0.0
    %3296 = vmatpush1.msra.mxu0 0.0
    %3297 = vmatprep.subr.mxu0 0.0
    %3298 = vmatpush1.msra.mxu0 0.0
    %3299 = vmatprep.subr.mxu0 0.0
    %3300 = vmatpush1.msra.mxu0 0.0
    %3301 = vmatprep.subr.mxu0 0.0
    %3302 = vmatpush1.msra.mxu0 0.0
    %3303 = vmatprep.subr.mxu0 0.0
    %3304 = vmatpush1.msra.mxu0 0.0
    %3305 = vmatprep.subr.mxu0 0.0
    %3306 = vmatpush1.msra.mxu0 0.0
    %3307 = vmatprep.subr.mxu0 0.0
    %3308 = vmatpush1.msra.mxu0 0.0
    %3309 = vmatprep.subr.mxu0 0.0
    %3310 = vmatpush1.msra.mxu0 0.0
    %3311 = vmatprep.subr.mxu0 0.0
    %3312 = vmatpush1.msra.mxu0 0.0
    %3313 = vmatprep.subr.mxu0 %v3284
    %3314 = vmatpush1.msra.mxu0 %v3283
    %3315 = vmatprep.subr.mxu0 %v3282
    %3316 = vmatpush1.msra.mxu0 %v3281
    %3317 = vmatprep.subr.mxu0 0.0
    %3318 = vmatpush2.msra.mxu0 0.0
    %3319 = vmatprep.subr.mxu0 0.0
    %3320 = vmatpush2.msra.mxu0 0.0
    %3321 = vmatprep.subr.mxu0 0.0
    %3322 = vmatpush2.msra.mxu0 0.0
    %3323 = vmatprep.subr.mxu0 0.0
    %3324 = vmatpush2.msra.mxu0 0.0
    %3325 = vmatprep.subr.mxu0 0.0
    %3326 = vmatpush2.msra.mxu0 0.0
    %3327 = vmatprep.subr.mxu0 0.0
    %3328 = vmatpush2.msra.mxu0 0.0
    %3329 = vmatprep.subr.mxu0 0.0
    %3330 = vmatpush2.msra.mxu0 0.0
    %3331 = vmatprep.subr.mxu0 0.0
    %3332 = vmatpush2.msra.mxu0 0.0
    %3333 = vmatprep.subr.mxu0 0.0
    %3334 = vmatpush2.msra.mxu0 0.0
    %3335 = vmatprep.subr.mxu0 0.0
    %3336 = vmatpush2.msra.mxu0 0.0
    %3337 = vmatprep.subr.mxu0 0.0
    %3338 = vmatpush2.msra.mxu0 0.0
    %3339 = vmatprep.subr.mxu0 0.0
    %3340 = vmatpush2.msra.mxu0 0.0
    %3341 = vmatprep.subr.mxu0 0.0
    %3342 = vmatpush2.msra.mxu0 0.0
    %3343 = vmatprep.subr.mxu0 0.0
    %3344 = vmatpush2.msra.mxu0 0.0
    %3345 = vmatprep.subr.mxu0 0.0
    %3346 = vmatpush2.msra.mxu0 0.0
    %3347 = vmatprep.subr.mxu0 0.0
    %3348 = vmatpush2.msra.mxu0 0.0
    %3349 = vmatprep.mubr.f32.mxu0 0.0
    %3350 = vmatmul.mubr.f32.gmra.mxu0 %v926
    %v3351 = vpop.f32.mrf.mxu0
    %v3352 = vadd.f32 %v923, %v3351
    %v3353 = vpop.f32.mrf.mxu0
    %v3354 = vadd.f32 %v923, %v3353
    %3355 = vdwg.mxu0
    %v3356 = vadd.f32 %v3352, %v2576
    %v3357 = vadd.f32 %v3354, %v2577
    %s3358 = scalar_lea.vmem [#allocation4], 48
    %3359 = vst [vmem:[%s3358] sm:$0xff] %v3356
    %3360 = vst [vmem:[%s3358 + $0x8] sm:$0xff] %v3357
    // Predicated region
    $region30: #{tpu_custom_call.1} parent=1 // pred_check
      _
    $region31: #{tpu_custom_call.1} parent=1 // pred_check_branch
      %3362 = sbr.rel (0) target = $region33
    $region32: #{tpu_custom_call.1} parent=1 // pred_region
      %s3364 = ssub.s32 1024, 1024
      %3365 = vsyncadd [#allocation5], %s3364
      %s3366 = sshll.u32 [#allocation4], 4
      %s3367 = int_to_ptr.vmem [resolvable:$true] %s3366
      %3372 = dma.vmem_to_hbm [thread:$0]  %s3367, 1024, %s7, [#allocation5], 256, 256, 16
    $region33: #{tpu_custom_call.1} parent=1 // pred_fallthru
      _
    // Predicated region
    $region34: #{tpu_custom_call.1} parent=1 // pred_check
      _
    $region35: #{tpu_custom_call.1} parent=1 // pred_check_branch
      %3374 = sbr.rel (0) target = $region37
    $region36: #{tpu_custom_call.1} parent=1 // pred_region
      %3375 = dma.done [#allocation5], 1024
    $region37: #{tpu_custom_call.1} parent=1 // pred_fallthru
      _
    %3376 = vsyncpa [#allocation5], 1

</llo_original>
